<compile_context>
chip_gen: v7x
topology: tpu7x:2x2x1
jax: 0.10.0
libtpu: 0.0.40
codegen_flags: <defaults>
</compile_context>

<pallas_src>
import jax
import jax.numpy as jnp
from jax.experimental import pallas as pl
from jax.experimental.pallas import tpu as pltpu

EPS = 1e-5


# ---------------------------------------------------------------------------
# Fused forward kernel (one block of B images per grid step)
# ---------------------------------------------------------------------------
def _fused_cnn_kernel(x_ref, w1_ref, b1_ref, w2_ref, b2_ref,
                      wf1_ref, bf1_ref, wf2_ref, bf2_ref, wf3_ref, bf3_ref,
                      o_ref, p1_ref, rp2_ref):
    """
    x_ref  : (B, H+2, W+2, 1)    zero-padded input block
    w1_ref : (3, 3, 1, 32) f32   conv1 HWIO
    w2_ref : (3, 3, 32, 64) bf16 conv2 HWIO
    wf1_ref: (FF, 64, 64) bf16   fc1 weights, rows pre-permuted, BN1 folded
    wf2_ref: (64, 32) bf16       fc2 weights, BN2 folded
    wf3_ref: (32, 2) bf16        fc3 weights
    b*_ref : (1, C) f32 biases (BN folded where applicable)
    o_ref  : (1, B, 2)           output logits for this block
    p1_ref : VMEM (B, H2+2, W2+9, 32) f32  zero-padded pool1 output
    rp2_ref: VMEM (B*H4*W2, 64) f32        H-pooled conv2 rows
    """
    B = x_ref.shape[0]
    Hp, Wp = x_ref.shape[1], x_ref.shape[2]
    H, W = Hp - 2, Wp - 2
    H2, W2 = H // 2, W // 2
    H4, W4 = H // 4, W // 4
    FF = H4 * W4
    M2 = H4 * W2
    C1 = w1_ref.shape[3]
    C2 = w2_ref.shape[3]
    N1 = wf1_ref.shape[2]
    WOFF = 8  # sublane-aligned column of pool1[:, 0] inside p1_ref

    # ---- conv1 (3x3, pad 1, Cin=1) + ReLU + 2x2/2 max pool (VPU) -----------
    # Column-parity accumulators: acc_b[b, h, u, c] = conv1[b, h, 2u + b, c]
    acc0 = jnp.zeros((B, H, W2, C1), jnp.float32)
    acc1 = jnp.zeros((B, H, W2, C1), jnp.float32)
    for ky in range(3):
        for kx in range(3):
            wrow = w1_ref[ky, kx]                                   # (1, C1)
            xe = x_ref[:, pl.ds(ky, H), pl.ds(kx, W2, 2), :]        # (B,H,W2,1)
            xo = x_ref[:, pl.ds(ky, H), pl.ds(kx + 1, W2, 2), :]
            acc0 = acc0 + xe * wrow
            acc1 = acc1 + xo * wrow
    cp = jnp.maximum(acc0, acc1)                       # pooled over W pairs
    cp = cp.reshape(B, H2, 2, W2, C1)                  # leading-dim split only
    pooled1 = jnp.maximum(cp[:, :, 0, :, :], cp[:, :, 1, :, :])  # H-pool
    pooled1 = jnp.maximum(pooled1 + b1_ref[...], 0.0)  # bias + ReLU (B,H2,W2,C1)

    # Zero-padded conv2 input staging: padded col w lives at ref col WOFF-1+w.
    # Re-zeroed every step: scratch is per-TensorCore, so a "first program
    # only" guard breaks when the parallel axis is split across cores.
    p1_ref[...] = jnp.zeros(p1_ref.shape, p1_ref.dtype)
    p1_ref[:, 1:H2 + 1, WOFF:WOFF + W2, :] = pooled1   # sublane-aligned store

    # ---- conv2 (3x3, pad 1) + ReLU + H-direction of 2x2/2 max pool (MXU) ----
    # Row-parity accumulators; 9 taps x 2 parities of (B*M2,C1)x(C1,C2) bf16
    # matmuls with f32 accumulation (the reshape keeps the last dim -> free).
    acc2e = jnp.zeros((B * M2, C2), jnp.float32)
    acc2o = jnp.zeros((B * M2, C2), jnp.float32)
    for ky in range(3):
        for kx in range(3):
            wtap = w2_ref[ky, kx]                                   # (C1,C2) bf16
            c0 = WOFF - 1 + kx
            qe = p1_ref[:, pl.ds(ky, H4, 2), pl.ds(c0, W2), :]      # (B,H4,W2,C1)
            qo = p1_ref[:, pl.ds(ky + 1, H4, 2), pl.ds(c0, W2), :]
            acc2e = acc2e + jnp.dot(
                qe.reshape(B * M2, C1).astype(jnp.bfloat16), wtap,
                preferred_element_type=jnp.float32)
            acc2o = acc2o + jnp.dot(
                qo.reshape(B * M2, C1).astype(jnp.bfloat16), wtap,
                preferred_element_type=jnp.float32)
    rp2 = jnp.maximum(acc2e, acc2o)                    # pooled over H pairs
    rp2 = jnp.maximum(rp2 + b2_ref[...], 0.0)          # bias + ReLU (B*M2, C2)
    rp2_ref[...] = rp2                                 # rows ordered (b, i, w)

    # ---- MLP head: fc1(+BN1)+ReLU -> fc2(+BN2)+ReLU -> fc3 ------------------
    # The W-direction of pool2 is fused into the strided LHS reads: for spatial
    # tile t=(i,j), rows {b*M2 + i*W2 + 2j, +1} hold the two pool candidates
    # for every image in the block.
    h = jnp.zeros((B, N1), jnp.float32)
    for t in range(FF):
        i, j = t // W4, t % W4
        r0 = i * W2 + 2 * j
        le = rp2_ref[pl.ds(r0, B, M2), :]              # (B, C2)
        lo = rp2_ref[pl.ds(r0 + 1, B, M2), :]
        lhs = jnp.maximum(le, lo).astype(jnp.bfloat16)
        h = h + jnp.dot(lhs, wf1_ref[t], preferred_element_type=jnp.float32)
    h = jnp.maximum(h + bf1_ref[...], 0.0)             # BN1 folded into wf1/bf1
    # TODO(synk): dropout == identity, BatchNorm1d uses running stats (eval).
    h = jnp.dot(h.astype(jnp.bfloat16), wf2_ref[...],
                preferred_element_type=jnp.float32) + bf2_ref[...]
    h = jnp.maximum(h, 0.0)
    out = jnp.dot(h.astype(jnp.bfloat16), wf3_ref[...],
                  preferred_element_type=jnp.float32) + bf3_ref[...]
    o_ref[0] = out


def _bcast_spec(arr):
    r = arr.ndim
    return pl.BlockSpec(arr.shape, lambda n, r=r: (0,) * r)


def fused_forward(x_pad, kp, block_b):
    npad, Hp, Wp, _ = x_pad.shape
    H, W = Hp - 2, Wp - 2
    H2, W2, H4 = H // 2, W // 2, H // 4
    C1 = kp["w1"].shape[3]
    C2 = kp["w2"].shape[3]
    n_out = kp["wf3"].shape[1]
    steps = npad // block_b
    WOFF = 8

    out = pl.pallas_call(
        _fused_cnn_kernel,
        out_shape=jax.ShapeDtypeStruct((steps, block_b, n_out), jnp.float32),
        grid_spec=pltpu.PrefetchScalarGridSpec(
            num_scalar_prefetch=0,
            grid=(steps,),
            in_specs=[
                pl.BlockSpec((block_b, Hp, Wp, 1), lambda n: (n, 0, 0, 0)),
                _bcast_spec(kp["w1"]), _bcast_spec(kp["b1"]),
                _bcast_spec(kp["w2"]), _bcast_spec(kp["b2"]),
                _bcast_spec(kp["wf1"]), _bcast_spec(kp["bf1"]),
                _bcast_spec(kp["wf2"]), _bcast_spec(kp["bf2"]),
                _bcast_spec(kp["wf3"]), _bcast_spec(kp["bf3"]),
            ],
            out_specs=pl.BlockSpec((1, block_b, n_out), lambda n: (n, 0, 0)),
            scratch_shapes=[
                pltpu.VMEM((block_b, H2 + 2, WOFF + W2 + 1, C1), jnp.float32),
                pltpu.VMEM((block_b * H4 * W2, C2), jnp.float32),
            ],
        ),
        compiler_params=pltpu.CompilerParams(
            dimension_semantics=("parallel",),
            vmem_limit_bytes=48 * 1024 * 1024,
        ),
    )(x_pad, kp["w1"], kp["b1"], kp["w2"], kp["b2"],
      kp["wf1"], kp["bf1"], kp["wf2"], kp["bf2"], kp["wf3"], kp["bf3"])
    return out.reshape(steps * block_b, n_out)


def custom_cnn_forward(x_nchw, kp):
    x = x_nchw.astype(jnp.float32)
    N, _, H, W = x.shape
    # Per-step image block: large enough to fill MXU M / amortise grid
    # overhead, small enough for v7x's 64 MiB VMEM; keep >=2 grid steps so
    # both v7x TensorCores get work.
    block_b = max(1, min(16, (N + 1) // 2))
    steps = -(-N // block_b)
    npad = steps * block_b
    x = x.reshape(N, H, W, 1)                      # Cin == 1: NCHW -> NHWC
    x = jnp.pad(x, ((0, npad - N), (1, 1), (1, 1), (0, 0)))
    return fused_forward(x, kp, block_b)[:N]


# ---------------------------------------------------------------------------
# Parameters (deterministic synthetic init, matching module shapes)
# ---------------------------------------------------------------------------
def init_params(key, img_size):
    f = img_size // 4
    ks = jax.random.split(key, 10)
    return {
        # conv1: PyTorch OIHW (32,1,3,3) expressed here in HWIO (3,3,1,32)
        "w1c": jax.random.normal(ks[0], (3, 3, 1, 32), jnp.float32) * 0.1,
        "b1c": jax.random.normal(ks[1], (32,), jnp.float32) * 0.1,
        # conv2: HWIO (3,3,32,64)
        "w2c": jax.random.normal(ks[2], (3, 3, 32, 64), jnp.float32) * 0.05,
        "b2c": jax.random.normal(ks[3], (64,), jnp.float32) * 0.05,
        # fc1: (64*f*f -> 64), stored (in, out)
        "wf1": jax.random.normal(ks[4], (64 * f * f, 64), jnp.float32) * 0.02,
        "bf1": jax.random.normal(ks[5], (64,), jnp.float32) * 0.02,
        "wf2": jax.random.normal(ks[6], (64, 32), jnp.float32) * 0.05,
        "bf2": jax.random.normal(ks[7], (32,), jnp.float32) * 0.05,
        "wf3": jax.random.normal(ks[8], (32, 2), jnp.float32) * 0.05,
        "bf3": jax.random.normal(ks[9], (2,), jnp.float32) * 0.05,
        # BatchNorm1d(64) / BatchNorm1d(32): PyTorch default init
        "g1": jnp.ones((64,), jnp.float32), "be1": jnp.zeros((64,), jnp.float32),
        "m1": jnp.zeros((64,), jnp.float32), "v1": jnp.ones((64,), jnp.float32),
        "g2": jnp.ones((32,), jnp.float32), "be2": jnp.zeros((32,), jnp.float32),
        "m2": jnp.zeros((32,), jnp.float32), "v2": jnp.ones((32,), jnp.float32),
    }


def prepare_params(p, img_size):
    """Fold eval-mode BN into fc1/fc2, pre-permute fc1 rows for the kernel's
    (spatial, channel) layout (PyTorch flattens (C,H,W)), pre-cast MXU
    weights to bf16 (accumulation stays f32 in the kernel)."""
    f = img_size // 4
    ff = f * f
    c2 = p["w2c"].shape[3]
    n1 = p["wf1"].shape[1]

    s1 = p["g1"] * jax.lax.rsqrt(p["v1"] + EPS)
    wf1 = p["wf1"] * s1[None, :]
    bf1 = (p["bf1"] - p["m1"]) * s1 + p["be1"]
    s2 = p["g2"] * jax.lax.rsqrt(p["v2"] + EPS)
    wf2 = p["wf2"] * s2[None, :]
    bf2 = (p["bf2"] - p["m2"]) * s2 + p["be2"]

    # PyTorch flat index k = c*ff + t (t = spatial).  The kernel iterates over
    # t with channels in lanes, so reorder rows to [t, c, :].
    wf1_3d = wf1.reshape(c2, ff, n1).transpose(1, 0, 2)      # (ff, c2, n1)

    return {
        "w1": p["w1c"], "b1": p["b1c"].reshape(1, -1),
        "w2": p["w2c"].astype(jnp.bfloat16), "b2": p["b2c"].reshape(1, -1),
        "wf1": wf1_3d.astype(jnp.bfloat16), "bf1": bf1.reshape(1, -1),
        "wf2": wf2.astype(jnp.bfloat16), "bf2": bf2.reshape(1, -1),
        "wf3": p["wf3"].astype(jnp.bfloat16), "bf3": p["bf3"].reshape(1, -1),
    }


# ---------------------------------------------------------------------------
# Pure-JAX reference (eval-mode PyTorch semantics) for validation
# ---------------------------------------------------------------------------
def reference_forward(x_nchw, p):
    hi = jax.lax.Precision.HIGHEST
    x = jnp.transpose(x_nchw, (0, 2, 3, 1)).astype(jnp.float32)

    def conv(x, w, b):
        y = jax.lax.conv_general_dilated(
            x, w, window_strides=(1, 1), padding="SAME",
            dimension_numbers=("NHWC", "HWIO", "NHWC"), precision=hi)
        return jax.nn.relu(y + b)

    def pool(x):
        return jax.lax.reduce_window(
            x, -jnp.inf, jax.lax.max,
            window_dimensions=(1, 2, 2, 1), window_strides=(1, 2, 2, 1),
            padding="VALID")

    def bn(z, g, be, m, v):
        return (z - m) * jax.lax.rsqrt(v + EPS) * g + be

    x = pool(conv(x, p["w1c"], p["b1c"]))
    x = pool(conv(x, p["w2c"], p["b2c"]))
    x = jnp.transpose(x, (0, 3, 1, 2)).reshape(x.shape[0], -1)   # (C,H,W) flatten
    h = jax.nn.relu(bn(jnp.dot(x, p["wf1"], precision=hi) + p["bf1"],
                       p["g1"], p["be1"], p["m1"], p["v1"]))
    h = jax.nn.relu(bn(jnp.dot(h, p["wf2"], precision=hi) + p["bf2"],
                       p["g2"], p["be2"], p["m2"], p["v2"]))
    return jnp.dot(h, p["wf3"], precision=hi) + p["bf3"]


if __name__ == "__main__":
    img_size = 16
    batch = 2
    assert img_size % 4 == 0

    key = jax.random.PRNGKey(0)
    k_x, k_p = jax.random.split(key)
    x = jax.random.normal(k_x, (batch, 1, img_size, img_size), jnp.float32)
    params = init_params(k_p, img_size)
    kparams = prepare_params(params, img_size)

    out = jax.jit(custom_cnn_forward)(x, kparams)
    out = jax.block_until_ready(out)
    assert out.shape == (batch, 2), out.shape
    assert bool(jnp.all(jnp.isfinite(out)))

    ref = reference_forward(x, params)
    err = float(jnp.max(jnp.abs(out - ref)))
    # bf16 MXU operands (f32 accumulation) vs. the all-f32 reference: expected
    # deviation is O(1e-3) at these scales; 1e-2 keeps margin while still
    # catching any real indexing / folding bug (those produce O(0.1+) errors).
    assert err < 1e-2, f"mismatch vs reference: {err}"
    print("KERNEL_OK")
</pallas_src>

<mosaic_0001>
module attributes {stable_mosaic.version = 11 : i64} {
  func.func @_fused_cnn_kernel(%arg0: i32, %arg1: memref<1x18x18x1xf32, #tpu.memory_space<vmem>>, %arg2: memref<3x3x1x32xf32, #tpu.memory_space<vmem>>, %arg3: memref<1x32xf32, #tpu.memory_space<vmem>>, %arg4: memref<3x3x32x64xbf16, #tpu.memory_space<vmem>>, %arg5: memref<1x64xf32, #tpu.memory_space<vmem>>, %arg6: memref<16x64x64xbf16, #tpu.memory_space<vmem>>, %arg7: memref<1x64xf32, #tpu.memory_space<vmem>>, %arg8: memref<64x32xbf16, #tpu.memory_space<vmem>>, %arg9: memref<1x32xf32, #tpu.memory_space<vmem>>, %arg10: memref<32x2xbf16, #tpu.memory_space<vmem>>, %arg11: memref<1x2xf32, #tpu.memory_space<vmem>>, %arg12: memref<1x1x2xf32, #tpu.memory_space<vmem>>, %arg13: memref<1x10x17x32xf32, #tpu.memory_space<vmem>>, %arg14: memref<32x64xf32, #tpu.memory_space<vmem>>) attributes {dimension_semantics = [#tpu.dimension_semantics<parallel>], iteration_bounds = array<i64: 2>, scalar_prefetch = 0 : i64, scratch_operands = 2 : i64, tpu.core_type = #tpu.core_type<tc>, window_params = [{transform_indices = @transform_0, window_bounds = array<i64: 1, 18, 18, 1>}, {pipeline_mode = #tpu.pipeline_mode<synchronous>, transform_indices = @transform_1, window_bounds = array<i64: 3, 3, 1, 32>}, {pipeline_mode = #tpu.pipeline_mode<synchronous>, transform_indices = @transform_2, window_bounds = array<i64: 1, 32>}, {pipeline_mode = #tpu.pipeline_mode<synchronous>, transform_indices = @transform_3, window_bounds = array<i64: 3, 3, 32, 64>}, {pipeline_mode = #tpu.pipeline_mode<synchronous>, transform_indices = @transform_4, window_bounds = array<i64: 1, 64>}, {pipeline_mode = #tpu.pipeline_mode<synchronous>, transform_indices = @transform_5, window_bounds = array<i64: 16, 64, 64>}, {pipeline_mode = #tpu.pipeline_mode<synchronous>, transform_indices = @transform_6, window_bounds = array<i64: 1, 64>}, {pipeline_mode = #tpu.pipeline_mode<synchronous>, transform_indices = @transform_7, window_bounds = array<i64: 64, 32>}, {pipeline_mode = #tpu.pipeline_mode<synchronous>, transform_indices = @transform_8, window_bounds = array<i64: 1, 32>}, {pipeline_mode = #tpu.pipeline_mode<synchronous>, transform_indices = @transform_9, window_bounds = array<i64: 32, 2>}, {pipeline_mode = #tpu.pipeline_mode<synchronous>, transform_indices = @transform_10, window_bounds = array<i64: 1, 2>}, {transform_indices = @transform_11, window_bounds = array<i64: 1, 1, 2>}]} {
    %cst = arith.constant 0.000000e+00 : f32
    %0 = vector.broadcast %cst : f32 to vector<1x16x8x32xf32>
    %cst_0 = arith.constant 0.000000e+00 : f32
    %1 = vector.broadcast %cst_0 : f32 to vector<1x16x8x32xf32>
    %c0 = arith.constant 0 : index
    %c0_1 = arith.constant 0 : index
    %c0_2 = arith.constant 0 : index
    %c0_3 = arith.constant 0 : index
    %2 = vector.load %arg2[%c0, %c0_1, %c0_2, %c0_3] : memref<3x3x1x32xf32, #tpu.memory_space<vmem>>, vector<1x1x1x32xf32>
    %3 = vector.shape_cast %2 : vector<1x1x1x32xf32> to vector<1x32xf32>
    %c0_4 = arith.constant 0 : index
    %c0_5 = arith.constant 0 : index
    %c0_6 = arith.constant 0 : index
    %c0_7 = arith.constant 0 : index
    %4 = tpu.strided_load %arg1[%c0_4, %c0_5, %c0_6, %c0_7] {strides = array<i32: 1, 1, 2, 1>} : memref<1x18x18x1xf32, #tpu.memory_space<vmem>>, vector<1x16x8x1xf32>
    %c0_8 = arith.constant 0 : index
    %c0_9 = arith.constant 0 : index
    %c1 = arith.constant 1 : index
    %c0_10 = arith.constant 0 : index
    %5 = tpu.strided_load %arg1[%c0_8, %c0_9, %c1, %c0_10] {strides = array<i32: 1, 1, 2, 1>} : memref<1x18x18x1xf32, #tpu.memory_space<vmem>>, vector<1x16x8x1xf32>
    %6 = vector.shape_cast %3 : vector<1x32xf32> to vector<1x1x1x32xf32>
    %7 = vector.broadcast %4 : vector<1x16x8x1xf32> to vector<1x16x8x32xf32>
    %8 = vector.broadcast %6 : vector<1x1x1x32xf32> to vector<1x16x8x32xf32>
    %9 = arith.mulf %7, %8 : vector<1x16x8x32xf32>
    %10 = arith.addf %0, %9 : vector<1x16x8x32xf32>
    %11 = vector.shape_cast %3 : vector<1x32xf32> to vector<1x1x1x32xf32>
    %12 = vector.broadcast %5 : vector<1x16x8x1xf32> to vector<1x16x8x32xf32>
    %13 = vector.broadcast %11 : vector<1x1x1x32xf32> to vector<1x16x8x32xf32>
    %14 = arith.mulf %12, %13 : vector<1x16x8x32xf32>
    %15 = arith.addf %1, %14 : vector<1x16x8x32xf32>
    %c0_11 = arith.constant 0 : index
    %c1_12 = arith.constant 1 : index
    %c0_13 = arith.constant 0 : index
    %c0_14 = arith.constant 0 : index
    %16 = vector.load %arg2[%c0_11, %c1_12, %c0_13, %c0_14] : memref<3x3x1x32xf32, #tpu.memory_space<vmem>>, vector<1x1x1x32xf32>
    %17 = vector.shape_cast %16 : vector<1x1x1x32xf32> to vector<1x32xf32>
    %c0_15 = arith.constant 0 : index
    %c0_16 = arith.constant 0 : index
    %c1_17 = arith.constant 1 : index
    %c0_18 = arith.constant 0 : index
    %18 = tpu.strided_load %arg1[%c0_15, %c0_16, %c1_17, %c0_18] {strides = array<i32: 1, 1, 2, 1>} : memref<1x18x18x1xf32, #tpu.memory_space<vmem>>, vector<1x16x8x1xf32>
    %c0_19 = arith.constant 0 : index
    %c0_20 = arith.constant 0 : index
    %c2 = arith.constant 2 : index
    %c0_21 = arith.constant 0 : index
    %19 = tpu.strided_load %arg1[%c0_19, %c0_20, %c2, %c0_21] {strides = array<i32: 1, 1, 2, 1>} : memref<1x18x18x1xf32, #tpu.memory_space<vmem>>, vector<1x16x8x1xf32>
    %20 = vector.shape_cast %17 : vector<1x32xf32> to vector<1x1x1x32xf32>
    %21 = vector.broadcast %18 : vector<1x16x8x1xf32> to vector<1x16x8x32xf32>
    %22 = vector.broadcast %20 : vector<1x1x1x32xf32> to vector<1x16x8x32xf32>
    %23 = arith.mulf %21, %22 : vector<1x16x8x32xf32>
    %24 = arith.addf %10, %23 : vector<1x16x8x32xf32>
    %25 = vector.shape_cast %17 : vector<1x32xf32> to vector<1x1x1x32xf32>
    %26 = vector.broadcast %19 : vector<1x16x8x1xf32> to vector<1x16x8x32xf32>
    %27 = vector.broadcast %25 : vector<1x1x1x32xf32> to vector<1x16x8x32xf32>
    %28 = arith.mulf %26, %27 : vector<1x16x8x32xf32>
    %29 = arith.addf %15, %28 : vector<1x16x8x32xf32>
    %c0_22 = arith.constant 0 : index
    %c2_23 = arith.constant 2 : index
    %c0_24 = arith.constant 0 : index
    %c0_25 = arith.constant 0 : index
    %30 = vector.load %arg2[%c0_22, %c2_23, %c0_24, %c0_25] : memref<3x3x1x32xf32, #tpu.memory_space<vmem>>, vector<1x1x1x32xf32>
    %31 = vector.shape_cast %30 : vector<1x1x1x32xf32> to vector<1x32xf32>
    %c0_26 = arith.constant 0 : index
    %c0_27 = arith.constant 0 : index
    %c2_28 = arith.constant 2 : index
    %c0_29 = arith.constant 0 : index
    %32 = tpu.strided_load %arg1[%c0_26, %c0_27, %c2_28, %c0_29] {strides = array<i32: 1, 1, 2, 1>} : memref<1x18x18x1xf32, #tpu.memory_space<vmem>>, vector<1x16x8x1xf32>
    %c0_30 = arith.constant 0 : index
    %c0_31 = arith.constant 0 : index
    %c3 = arith.constant 3 : index
    %c0_32 = arith.constant 0 : index
    %33 = tpu.strided_load %arg1[%c0_30, %c0_31, %c3, %c0_32] {strides = array<i32: 1, 1, 2, 1>} : memref<1x18x18x1xf32, #tpu.memory_space<vmem>>, vector<1x16x8x1xf32>
    %34 = vector.shape_cast %31 : vector<1x32xf32> to vector<1x1x1x32xf32>
    %35 = vector.broadcast %32 : vector<1x16x8x1xf32> to vector<1x16x8x32xf32>
    %36 = vector.broadcast %34 : vector<1x1x1x32xf32> to vector<1x16x8x32xf32>
    %37 = arith.mulf %35, %36 : vector<1x16x8x32xf32>
    %38 = arith.addf %24, %37 : vector<1x16x8x32xf32>
    %39 = vector.shape_cast %31 : vector<1x32xf32> to vector<1x1x1x32xf32>
    %40 = vector.broadcast %33 : vector<1x16x8x1xf32> to vector<1x16x8x32xf32>
    %41 = vector.broadcast %39 : vector<1x1x1x32xf32> to vector<1x16x8x32xf32>
    %42 = arith.mulf %40, %41 : vector<1x16x8x32xf32>
    %43 = arith.addf %29, %42 : vector<1x16x8x32xf32>
    %c1_33 = arith.constant 1 : index
    %c0_34 = arith.constant 0 : index
    %c0_35 = arith.constant 0 : index
    %c0_36 = arith.constant 0 : index
    %44 = vector.load %arg2[%c1_33, %c0_34, %c0_35, %c0_36] : memref<3x3x1x32xf32, #tpu.memory_space<vmem>>, vector<1x1x1x32xf32>
    %45 = vector.shape_cast %44 : vector<1x1x1x32xf32> to vector<1x32xf32>
    %c0_37 = arith.constant 0 : index
    %c1_38 = arith.constant 1 : index
    %c0_39 = arith.constant 0 : index
    %c0_40 = arith.constant 0 : index
    %46 = tpu.strided_load %arg1[%c0_37, %c1_38, %c0_39, %c0_40] {strides = array<i32: 1, 1, 2, 1>} : memref<1x18x18x1xf32, #tpu.memory_space<vmem>>, vector<1x16x8x1xf32>
    %c0_41 = arith.constant 0 : index
    %c1_42 = arith.constant 1 : index
    %c1_43 = arith.constant 1 : index
    %c0_44 = arith.constant 0 : index
    %47 = tpu.strided_load %arg1[%c0_41, %c1_42, %c1_43, %c0_44] {strides = array<i32: 1, 1, 2, 1>} : memref<1x18x18x1xf32, #tpu.memory_space<vmem>>, vector<1x16x8x1xf32>
    %48 = vector.shape_cast %45 : vector<1x32xf32> to vector<1x1x1x32xf32>
    %49 = vector.broadcast %46 : vector<1x16x8x1xf32> to vector<1x16x8x32xf32>
    %50 = vector.broadcast %48 : vector<1x1x1x32xf32> to vector<1x16x8x32xf32>
    %51 = arith.mulf %49, %50 : vector<1x16x8x32xf32>
    %52 = arith.addf %38, %51 : vector<1x16x8x32xf32>
    %53 = vector.shape_cast %45 : vector<1x32xf32> to vector<1x1x1x32xf32>
    %54 = vector.broadcast %47 : vector<1x16x8x1xf32> to vector<1x16x8x32xf32>
    %55 = vector.broadcast %53 : vector<1x1x1x32xf32> to vector<1x16x8x32xf32>
    %56 = arith.mulf %54, %55 : vector<1x16x8x32xf32>
    %57 = arith.addf %43, %56 : vector<1x16x8x32xf32>
    %c1_45 = arith.constant 1 : index
    %c1_46 = arith.constant 1 : index
    %c0_47 = arith.constant 0 : index
    %c0_48 = arith.constant 0 : index
    %58 = vector.load %arg2[%c1_45, %c1_46, %c0_47, %c0_48] : memref<3x3x1x32xf32, #tpu.memory_space<vmem>>, vector<1x1x1x32xf32>
    %59 = vector.shape_cast %58 : vector<1x1x1x32xf32> to vector<1x32xf32>
    %c0_49 = arith.constant 0 : index
    %c1_50 = arith.constant 1 : index
    %c1_51 = arith.constant 1 : index
    %c0_52 = arith.constant 0 : index
    %60 = tpu.strided_load %arg1[%c0_49, %c1_50, %c1_51, %c0_52] {strides = array<i32: 1, 1, 2, 1>} : memref<1x18x18x1xf32, #tpu.memory_space<vmem>>, vector<1x16x8x1xf32>
    %c0_53 = arith.constant 0 : index
    %c1_54 = arith.constant 1 : index
    %c2_55 = arith.constant 2 : index
    %c0_56 = arith.constant 0 : index
    %61 = tpu.strided_load %arg1[%c0_53, %c1_54, %c2_55, %c0_56] {strides = array<i32: 1, 1, 2, 1>} : memref<1x18x18x1xf32, #tpu.memory_space<vmem>>, vector<1x16x8x1xf32>
    %62 = vector.shape_cast %59 : vector<1x32xf32> to vector<1x1x1x32xf32>
    %63 = vector.broadcast %60 : vector<1x16x8x1xf32> to vector<1x16x8x32xf32>
    %64 = vector.broadcast %62 : vector<1x1x1x32xf32> to vector<1x16x8x32xf32>
    %65 = arith.mulf %63, %64 : vector<1x16x8x32xf32>
    %66 = arith.addf %52, %65 : vector<1x16x8x32xf32>
    %67 = vector.shape_cast %59 : vector<1x32xf32> to vector<1x1x1x32xf32>
    %68 = vector.broadcast %61 : vector<1x16x8x1xf32> to vector<1x16x8x32xf32>
    %69 = vector.broadcast %67 : vector<1x1x1x32xf32> to vector<1x16x8x32xf32>
    %70 = arith.mulf %68, %69 : vector<1x16x8x32xf32>
    %71 = arith.addf %57, %70 : vector<1x16x8x32xf32>
    %c1_57 = arith.constant 1 : index
    %c2_58 = arith.constant 2 : index
    %c0_59 = arith.constant 0 : index
    %c0_60 = arith.constant 0 : index
    %72 = vector.load %arg2[%c1_57, %c2_58, %c0_59, %c0_60] : memref<3x3x1x32xf32, #tpu.memory_space<vmem>>, vector<1x1x1x32xf32>
    %73 = vector.shape_cast %72 : vector<1x1x1x32xf32> to vector<1x32xf32>
    %c0_61 = arith.constant 0 : index
    %c1_62 = arith.constant 1 : index
    %c2_63 = arith.constant 2 : index
    %c0_64 = arith.constant 0 : index
    %74 = tpu.strided_load %arg1[%c0_61, %c1_62, %c2_63, %c0_64] {strides = array<i32: 1, 1, 2, 1>} : memref<1x18x18x1xf32, #tpu.memory_space<vmem>>, vector<1x16x8x1xf32>
    %c0_65 = arith.constant 0 : index
    %c1_66 = arith.constant 1 : index
    %c3_67 = arith.constant 3 : index
    %c0_68 = arith.constant 0 : index
    %75 = tpu.strided_load %arg1[%c0_65, %c1_66, %c3_67, %c0_68] {strides = array<i32: 1, 1, 2, 1>} : memref<1x18x18x1xf32, #tpu.memory_space<vmem>>, vector<1x16x8x1xf32>
    %76 = vector.shape_cast %73 : vector<1x32xf32> to vector<1x1x1x32xf32>
    %77 = vector.broadcast %74 : vector<1x16x8x1xf32> to vector<1x16x8x32xf32>
    %78 = vector.broadcast %76 : vector<1x1x1x32xf32> to vector<1x16x8x32xf32>
    %79 = arith.mulf %77, %78 : vector<1x16x8x32xf32>
    %80 = arith.addf %66, %79 : vector<1x16x8x32xf32>
    %81 = vector.shape_cast %73 : vector<1x32xf32> to vector<1x1x1x32xf32>
    %82 = vector.broadcast %75 : vector<1x16x8x1xf32> to vector<1x16x8x32xf32>
    %83 = vector.broadcast %81 : vector<1x1x1x32xf32> to vector<1x16x8x32xf32>
    %84 = arith.mulf %82, %83 : vector<1x16x8x32xf32>
    %85 = arith.addf %71, %84 : vector<1x16x8x32xf32>
    %c2_69 = arith.constant 2 : index
    %c0_70 = arith.constant 0 : index
    %c0_71 = arith.constant 0 : index
    %c0_72 = arith.constant 0 : index
    %86 = vector.load %arg2[%c2_69, %c0_70, %c0_71, %c0_72] : memref<3x3x1x32xf32, #tpu.memory_space<vmem>>, vector<1x1x1x32xf32>
    %87 = vector.shape_cast %86 : vector<1x1x1x32xf32> to vector<1x32xf32>
    %c0_73 = arith.constant 0 : index
    %c2_74 = arith.constant 2 : index
    %c0_75 = arith.constant 0 : index
    %c0_76 = arith.constant 0 : index
    %88 = tpu.strided_load %arg1[%c0_73, %c2_74, %c0_75, %c0_76] {strides = array<i32: 1, 1, 2, 1>} : memref<1x18x18x1xf32, #tpu.memory_space<vmem>>, vector<1x16x8x1xf32>
    %c0_77 = arith.constant 0 : index
    %c2_78 = arith.constant 2 : index
    %c1_79 = arith.constant 1 : index
    %c0_80 = arith.constant 0 : index
    %89 = tpu.strided_load %arg1[%c0_77, %c2_78, %c1_79, %c0_80] {strides = array<i32: 1, 1, 2, 1>} : memref<1x18x18x1xf32, #tpu.memory_space<vmem>>, vector<1x16x8x1xf32>
    %90 = vector.shape_cast %87 : vector<1x32xf32> to vector<1x1x1x32xf32>
    %91 = vector.broadcast %88 : vector<1x16x8x1xf32> to vector<1x16x8x32xf32>
    %92 = vector.broadcast %90 : vector<1x1x1x32xf32> to vector<1x16x8x32xf32>
    %93 = arith.mulf %91, %92 : vector<1x16x8x32xf32>
    %94 = arith.addf %80, %93 : vector<1x16x8x32xf32>
    %95 = vector.shape_cast %87 : vector<1x32xf32> to vector<1x1x1x32xf32>
    %96 = vector.broadcast %89 : vector<1x16x8x1xf32> to vector<1x16x8x32xf32>
    %97 = vector.broadcast %95 : vector<1x1x1x32xf32> to vector<1x16x8x32xf32>
    %98 = arith.mulf %96, %97 : vector<1x16x8x32xf32>
    %99 = arith.addf %85, %98 : vector<1x16x8x32xf32>
    %c2_81 = arith.constant 2 : index
    %c1_82 = arith.constant 1 : index
    %c0_83 = arith.constant 0 : index
    %c0_84 = arith.constant 0 : index
    %100 = vector.load %arg2[%c2_81, %c1_82, %c0_83, %c0_84] : memref<3x3x1x32xf32, #tpu.memory_space<vmem>>, vector<1x1x1x32xf32>
    %101 = vector.shape_cast %100 : vector<1x1x1x32xf32> to vector<1x32xf32>
    %c0_85 = arith.constant 0 : index
    %c2_86 = arith.constant 2 : index
    %c1_87 = arith.constant 1 : index
    %c0_88 = arith.constant 0 : index
    %102 = tpu.strided_load %arg1[%c0_85, %c2_86, %c1_87, %c0_88] {strides = array<i32: 1, 1, 2, 1>} : memref<1x18x18x1xf32, #tpu.memory_space<vmem>>, vector<1x16x8x1xf32>
    %c0_89 = arith.constant 0 : index
    %c2_90 = arith.constant 2 : index
    %c2_91 = arith.constant 2 : index
    %c0_92 = arith.constant 0 : index
    %103 = tpu.strided_load %arg1[%c0_89, %c2_90, %c2_91, %c0_92] {strides = array<i32: 1, 1, 2, 1>} : memref<1x18x18x1xf32, #tpu.memory_space<vmem>>, vector<1x16x8x1xf32>
    %104 = vector.shape_cast %101 : vector<1x32xf32> to vector<1x1x1x32xf32>
    %105 = vector.broadcast %102 : vector<1x16x8x1xf32> to vector<1x16x8x32xf32>
    %106 = vector.broadcast %104 : vector<1x1x1x32xf32> to vector<1x16x8x32xf32>
    %107 = arith.mulf %105, %106 : vector<1x16x8x32xf32>
    %108 = arith.addf %94, %107 : vector<1x16x8x32xf32>
    %109 = vector.shape_cast %101 : vector<1x32xf32> to vector<1x1x1x32xf32>
    %110 = vector.broadcast %103 : vector<1x16x8x1xf32> to vector<1x16x8x32xf32>
    %111 = vector.broadcast %109 : vector<1x1x1x32xf32> to vector<1x16x8x32xf32>
    %112 = arith.mulf %110, %111 : vector<1x16x8x32xf32>
    %113 = arith.addf %99, %112 : vector<1x16x8x32xf32>
    %c2_93 = arith.constant 2 : index
    %c2_94 = arith.constant 2 : index
    %c0_95 = arith.constant 0 : index
    %c0_96 = arith.constant 0 : index
    %114 = vector.load %arg2[%c2_93, %c2_94, %c0_95, %c0_96] : memref<3x3x1x32xf32, #tpu.memory_space<vmem>>, vector<1x1x1x32xf32>
    %115 = vector.shape_cast %114 : vector<1x1x1x32xf32> to vector<1x32xf32>
    %c0_97 = arith.constant 0 : index
    %c2_98 = arith.constant 2 : index
    %c2_99 = arith.constant 2 : index
    %c0_100 = arith.constant 0 : index
    %116 = tpu.strided_load %arg1[%c0_97, %c2_98, %c2_99, %c0_100] {strides = array<i32: 1, 1, 2, 1>} : memref<1x18x18x1xf32, #tpu.memory_space<vmem>>, vector<1x16x8x1xf32>
    %c0_101 = arith.constant 0 : index
    %c2_102 = arith.constant 2 : index
    %c3_103 = arith.constant 3 : index
    %c0_104 = arith.constant 0 : index
    %117 = tpu.strided_load %arg1[%c0_101, %c2_102, %c3_103, %c0_104] {strides = array<i32: 1, 1, 2, 1>} : memref<1x18x18x1xf32, #tpu.memory_space<vmem>>, vector<1x16x8x1xf32>
    %118 = vector.shape_cast %115 : vector<1x32xf32> to vector<1x1x1x32xf32>
    %119 = vector.broadcast %116 : vector<1x16x8x1xf32> to vector<1x16x8x32xf32>
    %120 = vector.broadcast %118 : vector<1x1x1x32xf32> to vector<1x16x8x32xf32>
    %121 = arith.mulf %119, %120 : vector<1x16x8x32xf32>
    %122 = arith.addf %108, %121 : vector<1x16x8x32xf32>
    %123 = vector.shape_cast %115 : vector<1x32xf32> to vector<1x1x1x32xf32>
    %124 = vector.broadcast %117 : vector<1x16x8x1xf32> to vector<1x16x8x32xf32>
    %125 = vector.broadcast %123 : vector<1x1x1x32xf32> to vector<1x16x8x32xf32>
    %126 = arith.mulf %124, %125 : vector<1x16x8x32xf32>
    %127 = arith.addf %113, %126 : vector<1x16x8x32xf32>
    %128 = arith.maximumf %122, %127 : vector<1x16x8x32xf32>
    %129 = vector.shape_cast %128 : vector<1x16x8x32xf32> to vector<1x8x2x8x32xf32>
    %130 = vector.extract_strided_slice %129 {offsets = [0, 0, 0, 0, 0], sizes = [1, 8, 1, 8, 32], strides = [1, 1, 1, 1, 1]} : vector<1x8x2x8x32xf32> to vector<1x8x1x8x32xf32>
    %131 = vector.shape_cast %130 : vector<1x8x1x8x32xf32> to vector<1x8x8x32xf32>
    %132 = vector.extract_strided_slice %129 {offsets = [0, 0, 1, 0, 0], sizes = [1, 8, 1, 8, 32], strides = [1, 1, 1, 1, 1]} : vector<1x8x2x8x32xf32> to vector<1x8x1x8x32xf32>
    %133 = vector.shape_cast %132 : vector<1x8x1x8x32xf32> to vector<1x8x8x32xf32>
    %134 = arith.maximumf %131, %133 : vector<1x8x8x32xf32>
    %c0_105 = arith.constant 0 : index
    %c0_106 = arith.constant 0 : index
    %135 = vector.load %arg3[%c0_105, %c0_106] : memref<1x32xf32, #tpu.memory_space<vmem>>, vector<1x32xf32>
    %136 = vector.shape_cast %135 : vector<1x32xf32> to vector<1x1x1x32xf32>
    %137 = vector.broadcast %136 : vector<1x1x1x32xf32> to vector<1x8x8x32xf32>
    %138 = arith.addf %134, %137 : vector<1x8x8x32xf32>
    %cst_107 = arith.constant 0.000000e+00 : f32
    %139 = vector.broadcast %cst_107 : f32 to vector<1x8x8x32xf32>
    %140 = arith.maximumf %138, %139 : vector<1x8x8x32xf32>
    %cst_108 = arith.constant 0.000000e+00 : f32
    %141 = vector.broadcast %cst_108 : f32 to vector<1x10x17x32xf32>
    %c0_109 = arith.constant 0 : index
    %c0_110 = arith.constant 0 : index
    %c0_111 = arith.constant 0 : index
    %c0_112 = arith.constant 0 : index
    %142 = vector.load %arg13[%c0_109, %c0_110, %c0_111, %c0_112] : memref<1x10x17x32xf32, #tpu.memory_space<vmem>>, vector<1x10x17x32xf32>
    tpu.vector_store %arg13[%c0_109, %c0_110, %c0_111, %c0_112], %141 {strides = array<i32>} : memref<1x10x17x32xf32, #tpu.memory_space<vmem>>, vector<1x10x17x32xf32>,
    %c0_113 = arith.constant 0 : index
    %c1_114 = arith.constant 1 : index
    %c8 = arith.constant 8 : index
    %c0_115 = arith.constant 0 : index
    %143 = vector.load %arg13[%c0_113, %c1_114, %c8, %c0_115] : memref<1x10x17x32xf32, #tpu.memory_space<vmem>>, vector<1x8x8x32xf32>
    tpu.vector_store %arg13[%c0_113, %c1_114, %c8, %c0_115], %140 {strides = array<i32>} : memref<1x10x17x32xf32, #tpu.memory_space<vmem>>, vector<1x8x8x32xf32>,
    %cst_116 = arith.constant 0.000000e+00 : f32
    %144 = vector.broadcast %cst_116 : f32 to vector<32x64xf32>
    %cst_117 = arith.constant 0.000000e+00 : f32
    %145 = vector.broadcast %cst_117 : f32 to vector<32x64xf32>
    %c0_118 = arith.constant 0 : index
    %c0_119 = arith.constant 0 : index
    %c0_120 = arith.constant 0 : index
    %c0_121 = arith.constant 0 : index
    %146 = vector.load %arg4[%c0_118, %c0_119, %c0_120, %c0_121] : memref<3x3x32x64xbf16, #tpu.memory_space<vmem>>, vector<1x1x32x64xbf16>
    %147 = vector.shape_cast %146 : vector<1x1x32x64xbf16> to vector<32x64xbf16>
    %c0_122 = arith.constant 0 : index
    %c0_123 = arith.constant 0 : index
    %c7 = arith.constant 7 : index
    %c0_124 = arith.constant 0 : index
    %148 = tpu.strided_load %arg13[%c0_122, %c0_123, %c7, %c0_124] {strides = array<i32: 1, 2, 1, 1>} : memref<1x10x17x32xf32, #tpu.memory_space<vmem>>, vector<1x4x8x32xf32>
    %c0_125 = arith.constant 0 : index
    %c1_126 = arith.constant 1 : index
    %c7_127 = arith.constant 7 : index
    %c0_128 = arith.constant 0 : index
    %149 = tpu.strided_load %arg13[%c0_125, %c1_126, %c7_127, %c0_128] {strides = array<i32: 1, 2, 1, 1>} : memref<1x10x17x32xf32, #tpu.memory_space<vmem>>, vector<1x4x8x32xf32>
    %150 = vector.shape_cast %148 : vector<1x4x8x32xf32> to vector<32x32xf32>
    %151 = arith.truncf %150 : vector<32x32xf32> to vector<32x32xbf16>
    %cst_129 = arith.constant dense<0.000000e+00> : vector<32x64xf32>
    %152 = tpu.matmul %151, %147, %cst_129 {dimension_numbers = #tpu.dot_dimension_numbers<[1], [0], [0], [1], [0, 0, 1, 1], [], []>} : vector<32x32xbf16>, vector<32x64xbf16>, vector<32x64xf32> -> vector<32x64xf32>
    %153 = arith.addf %144, %152 : vector<32x64xf32>
    %154 = vector.shape_cast %149 : vector<1x4x8x32xf32> to vector<32x32xf32>
    %155 = arith.truncf %154 : vector<32x32xf32> to vector<32x32xbf16>
    %cst_130 = arith.constant dense<0.000000e+00> : vector<32x64xf32>
    %156 = tpu.matmul %155, %147, %cst_130 {dimension_numbers = #tpu.dot_dimension_numbers<[1], [0], [0], [1], [0, 0, 1, 1], [], []>} : vector<32x32xbf16>, vector<32x64xbf16>, vector<32x64xf32> -> vector<32x64xf32>
    %157 = arith.addf %145, %156 : vector<32x64xf32>
    %c0_131 = arith.constant 0 : index
    %c1_132 = arith.constant 1 : index
    %c0_133 = arith.constant 0 : index
    %c0_134 = arith.constant 0 : index
    %158 = vector.load %arg4[%c0_131, %c1_132, %c0_133, %c0_134] : memref<3x3x32x64xbf16, #tpu.memory_space<vmem>>, vector<1x1x32x64xbf16>
    %159 = vector.shape_cast %158 : vector<1x1x32x64xbf16> to vector<32x64xbf16>
    %c0_135 = arith.constant 0 : index
    %c0_136 = arith.constant 0 : index
    %c8_137 = arith.constant 8 : index
    %c0_138 = arith.constant 0 : index
    %160 = tpu.strided_load %arg13[%c0_135, %c0_136, %c8_137, %c0_138] {strides = array<i32: 1, 2, 1, 1>} : memref<1x10x17x32xf32, #tpu.memory_space<vmem>>, vector<1x4x8x32xf32>
    %c0_139 = arith.constant 0 : index
    %c1_140 = arith.constant 1 : index
    %c8_141 = arith.constant 8 : index
    %c0_142 = arith.constant 0 : index
    %161 = tpu.strided_load %arg13[%c0_139, %c1_140, %c8_141, %c0_142] {strides = array<i32: 1, 2, 1, 1>} : memref<1x10x17x32xf32, #tpu.memory_space<vmem>>, vector<1x4x8x32xf32>
    %162 = vector.shape_cast %160 : vector<1x4x8x32xf32> to vector<32x32xf32>
    %163 = arith.truncf %162 : vector<32x32xf32> to vector<32x32xbf16>
    %cst_143 = arith.constant dense<0.000000e+00> : vector<32x64xf32>
    %164 = tpu.matmul %163, %159, %cst_143 {dimension_numbers = #tpu.dot_dimension_numbers<[1], [0], [0], [1], [0, 0, 1, 1], [], []>} : vector<32x32xbf16>, vector<32x64xbf16>, vector<32x64xf32> -> vector<32x64xf32>
    %165 = arith.addf %153, %164 : vector<32x64xf32>
    %166 = vector.shape_cast %161 : vector<1x4x8x32xf32> to vector<32x32xf32>
    %167 = arith.truncf %166 : vector<32x32xf32> to vector<32x32xbf16>
    %cst_144 = arith.constant dense<0.000000e+00> : vector<32x64xf32>
    %168 = tpu.matmul %167, %159, %cst_144 {dimension_numbers = #tpu.dot_dimension_numbers<[1], [0], [0], [1], [0, 0, 1, 1], [], []>} : vector<32x32xbf16>, vector<32x64xbf16>, vector<32x64xf32> -> vector<32x64xf32>
    %169 = arith.addf %157, %168 : vector<32x64xf32>
    %c0_145 = arith.constant 0 : index
    %c2_146 = arith.constant 2 : index
    %c0_147 = arith.constant 0 : index
    %c0_148 = arith.constant 0 : index
    %170 = vector.load %arg4[%c0_145, %c2_146, %c0_147, %c0_148] : memref<3x3x32x64xbf16, #tpu.memory_space<vmem>>, vector<1x1x32x64xbf16>
    %171 = vector.shape_cast %170 : vector<1x1x32x64xbf16> to vector<32x64xbf16>
    %c0_149 = arith.constant 0 : index
    %c0_150 = arith.constant 0 : index
    %c9 = arith.constant 9 : index
    %c0_151 = arith.constant 0 : index
    %172 = tpu.strided_load %arg13[%c0_149, %c0_150, %c9, %c0_151] {strides = array<i32: 1, 2, 1, 1>} : memref<1x10x17x32xf32, #tpu.memory_space<vmem>>, vector<1x4x8x32xf32>
    %c0_152 = arith.constant 0 : index
    %c1_153 = arith.constant 1 : index
    %c9_154 = arith.constant 9 : index
    %c0_155 = arith.constant 0 : index
    %173 = tpu.strided_load %arg13[%c0_152, %c1_153, %c9_154, %c0_155] {strides = array<i32: 1, 2, 1, 1>} : memref<1x10x17x32xf32, #tpu.memory_space<vmem>>, vector<1x4x8x32xf32>
    %174 = vector.shape_cast %172 : vector<1x4x8x32xf32> to vector<32x32xf32>
    %175 = arith.truncf %174 : vector<32x32xf32> to vector<32x32xbf16>
    %cst_156 = arith.constant dense<0.000000e+00> : vector<32x64xf32>
    %176 = tpu.matmul %175, %171, %cst_156 {dimension_numbers = #tpu.dot_dimension_numbers<[1], [0], [0], [1], [0, 0, 1, 1], [], []>} : vector<32x32xbf16>, vector<32x64xbf16>, vector<32x64xf32> -> vector<32x64xf32>
    %177 = arith.addf %165, %176 : vector<32x64xf32>
    %178 = vector.shape_cast %173 : vector<1x4x8x32xf32> to vector<32x32xf32>
    %179 = arith.truncf %178 : vector<32x32xf32> to vector<32x32xbf16>
    %cst_157 = arith.constant dense<0.000000e+00> : vector<32x64xf32>
    %180 = tpu.matmul %179, %171, %cst_157 {dimension_numbers = #tpu.dot_dimension_numbers<[1], [0], [0], [1], [0, 0, 1, 1], [], []>} : vector<32x32xbf16>, vector<32x64xbf16>, vector<32x64xf32> -> vector<32x64xf32>
    %181 = arith.addf %169, %180 : vector<32x64xf32>
    %c1_158 = arith.constant 1 : index
    %c0_159 = arith.constant 0 : index
    %c0_160 = arith.constant 0 : index
    %c0_161 = arith.constant 0 : index
    %182 = vector.load %arg4[%c1_158, %c0_159, %c0_160, %c0_161] : memref<3x3x32x64xbf16, #tpu.memory_space<vmem>>, vector<1x1x32x64xbf16>
    %183 = vector.shape_cast %182 : vector<1x1x32x64xbf16> to vector<32x64xbf16>
    %c0_162 = arith.constant 0 : index
    %c1_163 = arith.constant 1 : index
    %c7_164 = arith.constant 7 : index
    %c0_165 = arith.constant 0 : index
    %184 = tpu.strided_load %arg13[%c0_162, %c1_163, %c7_164, %c0_165] {strides = array<i32: 1, 2, 1, 1>} : memref<1x10x17x32xf32, #tpu.memory_space<vmem>>, vector<1x4x8x32xf32>
    %c0_166 = arith.constant 0 : index
    %c2_167 = arith.constant 2 : index
    %c7_168 = arith.constant 7 : index
    %c0_169 = arith.constant 0 : index
    %185 = tpu.strided_load %arg13[%c0_166, %c2_167, %c7_168, %c0_169] {strides = array<i32: 1, 2, 1, 1>} : memref<1x10x17x32xf32, #tpu.memory_space<vmem>>, vector<1x4x8x32xf32>
    %186 = vector.shape_cast %184 : vector<1x4x8x32xf32> to vector<32x32xf32>
    %187 = arith.truncf %186 : vector<32x32xf32> to vector<32x32xbf16>
    %cst_170 = arith.constant dense<0.000000e+00> : vector<32x64xf32>
    %188 = tpu.matmul %187, %183, %cst_170 {dimension_numbers = #tpu.dot_dimension_numbers<[1], [0], [0], [1], [0, 0, 1, 1], [], []>} : vector<32x32xbf16>, vector<32x64xbf16>, vector<32x64xf32> -> vector<32x64xf32>
    %189 = arith.addf %177, %188 : vector<32x64xf32>
    %190 = vector.shape_cast %185 : vector<1x4x8x32xf32> to vector<32x32xf32>
    %191 = arith.truncf %190 : vector<32x32xf32> to vector<32x32xbf16>
    %cst_171 = arith.constant dense<0.000000e+00> : vector<32x64xf32>
    %192 = tpu.matmul %191, %183, %cst_171 {dimension_numbers = #tpu.dot_dimension_numbers<[1], [0], [0], [1], [0, 0, 1, 1], [], []>} : vector<32x32xbf16>, vector<32x64xbf16>, vector<32x64xf32> -> vector<32x64xf32>
    %193 = arith.addf %181, %192 : vector<32x64xf32>
    %c1_172 = arith.constant 1 : index
    %c1_173 = arith.constant 1 : index
    %c0_174 = arith.constant 0 : index
    %c0_175 = arith.constant 0 : index
    %194 = vector.load %arg4[%c1_172, %c1_173, %c0_174, %c0_175] : memref<3x3x32x64xbf16, #tpu.memory_space<vmem>>, vector<1x1x32x64xbf16>
    %195 = vector.shape_cast %194 : vector<1x1x32x64xbf16> to vector<32x64xbf16>
    %c0_176 = arith.constant 0 : index
    %c1_177 = arith.constant 1 : index
    %c8_178 = arith.constant 8 : index
    %c0_179 = arith.constant 0 : index
    %196 = tpu.strided_load %arg13[%c0_176, %c1_177, %c8_178, %c0_179] {strides = array<i32: 1, 2, 1, 1>} : memref<1x10x17x32xf32, #tpu.memory_space<vmem>>, vector<1x4x8x32xf32>
    %c0_180 = arith.constant 0 : index
    %c2_181 = arith.constant 2 : index
    %c8_182 = arith.constant 8 : index
    %c0_183 = arith.constant 0 : index
    %197 = tpu.strided_load %arg13[%c0_180, %c2_181, %c8_182, %c0_183] {strides = array<i32: 1, 2, 1, 1>} : memref<1x10x17x32xf32, #tpu.memory_space<vmem>>, vector<1x4x8x32xf32>
    %198 = vector.shape_cast %196 : vector<1x4x8x32xf32> to vector<32x32xf32>
    %199 = arith.truncf %198 : vector<32x32xf32> to vector<32x32xbf16>
    %cst_184 = arith.constant dense<0.000000e+00> : vector<32x64xf32>
    %200 = tpu.matmul %199, %195, %cst_184 {dimension_numbers = #tpu.dot_dimension_numbers<[1], [0], [0], [1], [0, 0, 1, 1], [], []>} : vector<32x32xbf16>, vector<32x64xbf16>, vector<32x64xf32> -> vector<32x64xf32>
    %201 = arith.addf %189, %200 : vector<32x64xf32>
    %202 = vector.shape_cast %197 : vector<1x4x8x32xf32> to vector<32x32xf32>
    %203 = arith.truncf %202 : vector<32x32xf32> to vector<32x32xbf16>
    %cst_185 = arith.constant dense<0.000000e+00> : vector<32x64xf32>
    %204 = tpu.matmul %203, %195, %cst_185 {dimension_numbers = #tpu.dot_dimension_numbers<[1], [0], [0], [1], [0, 0, 1, 1], [], []>} : vector<32x32xbf16>, vector<32x64xbf16>, vector<32x64xf32> -> vector<32x64xf32>
    %205 = arith.addf %193, %204 : vector<32x64xf32>
    %c1_186 = arith.constant 1 : index
    %c2_187 = arith.constant 2 : index
    %c0_188 = arith.constant 0 : index
    %c0_189 = arith.constant 0 : index
    %206 = vector.load %arg4[%c1_186, %c2_187, %c0_188, %c0_189] : memref<3x3x32x64xbf16, #tpu.memory_space<vmem>>, vector<1x1x32x64xbf16>
    %207 = vector.shape_cast %206 : vector<1x1x32x64xbf16> to vector<32x64xbf16>
    %c0_190 = arith.constant 0 : index
    %c1_191 = arith.constant 1 : index
    %c9_192 = arith.constant 9 : index
    %c0_193 = arith.constant 0 : index
    %208 = tpu.strided_load %arg13[%c0_190, %c1_191, %c9_192, %c0_193] {strides = array<i32: 1, 2, 1, 1>} : memref<1x10x17x32xf32, #tpu.memory_space<vmem>>, vector<1x4x8x32xf32>
    %c0_194 = arith.constant 0 : index
    %c2_195 = arith.constant 2 : index
    %c9_196 = arith.constant 9 : index
    %c0_197 = arith.constant 0 : index
    %209 = tpu.strided_load %arg13[%c0_194, %c2_195, %c9_196, %c0_197] {strides = array<i32: 1, 2, 1, 1>} : memref<1x10x17x32xf32, #tpu.memory_space<vmem>>, vector<1x4x8x32xf32>
    %210 = vector.shape_cast %208 : vector<1x4x8x32xf32> to vector<32x32xf32>
    %211 = arith.truncf %210 : vector<32x32xf32> to vector<32x32xbf16>
    %cst_198 = arith.constant dense<0.000000e+00> : vector<32x64xf32>
    %212 = tpu.matmul %211, %207, %cst_198 {dimension_numbers = #tpu.dot_dimension_numbers<[1], [0], [0], [1], [0, 0, 1, 1], [], []>} : vector<32x32xbf16>, vector<32x64xbf16>, vector<32x64xf32> -> vector<32x64xf32>
    %213 = arith.addf %201, %212 : vector<32x64xf32>
    %214 = vector.shape_cast %209 : vector<1x4x8x32xf32> to vector<32x32xf32>
    %215 = arith.truncf %214 : vector<32x32xf32> to vector<32x32xbf16>
    %cst_199 = arith.constant dense<0.000000e+00> : vector<32x64xf32>
    %216 = tpu.matmul %215, %207, %cst_199 {dimension_numbers = #tpu.dot_dimension_numbers<[1], [0], [0], [1], [0, 0, 1, 1], [], []>} : vector<32x32xbf16>, vector<32x64xbf16>, vector<32x64xf32> -> vector<32x64xf32>
    %217 = arith.addf %205, %216 : vector<32x64xf32>
    %c2_200 = arith.constant 2 : index
    %c0_201 = arith.constant 0 : index
    %c0_202 = arith.constant 0 : index
    %c0_203 = arith.constant 0 : index
    %218 = vector.load %arg4[%c2_200, %c0_201, %c0_202, %c0_203] : memref<3x3x32x64xbf16, #tpu.memory_space<vmem>>, vector<1x1x32x64xbf16>
    %219 = vector.shape_cast %218 : vector<1x1x32x64xbf16> to vector<32x64xbf16>
    %c0_204 = arith.constant 0 : index
    %c2_205 = arith.constant 2 : index
    %c7_206 = arith.constant 7 : index
    %c0_207 = arith.constant 0 : index
    %220 = tpu.strided_load %arg13[%c0_204, %c2_205, %c7_206, %c0_207] {strides = array<i32: 1, 2, 1, 1>} : memref<1x10x17x32xf32, #tpu.memory_space<vmem>>, vector<1x4x8x32xf32>
    %c0_208 = arith.constant 0 : index
    %c3_209 = arith.constant 3 : index
    %c7_210 = arith.constant 7 : index
    %c0_211 = arith.constant 0 : index
    %221 = tpu.strided_load %arg13[%c0_208, %c3_209, %c7_210, %c0_211] {strides = array<i32: 1, 2, 1, 1>} : memref<1x10x17x32xf32, #tpu.memory_space<vmem>>, vector<1x4x8x32xf32>
    %222 = vector.shape_cast %220 : vector<1x4x8x32xf32> to vector<32x32xf32>
    %223 = arith.truncf %222 : vector<32x32xf32> to vector<32x32xbf16>
    %cst_212 = arith.constant dense<0.000000e+00> : vector<32x64xf32>
    %224 = tpu.matmul %223, %219, %cst_212 {dimension_numbers = #tpu.dot_dimension_numbers<[1], [0], [0], [1], [0, 0, 1, 1], [], []>} : vector<32x32xbf16>, vector<32x64xbf16>, vector<32x64xf32> -> vector<32x64xf32>
    %225 = arith.addf %213, %224 : vector<32x64xf32>
    %226 = vector.shape_cast %221 : vector<1x4x8x32xf32> to vector<32x32xf32>
    %227 = arith.truncf %226 : vector<32x32xf32> to vector<32x32xbf16>
    %cst_213 = arith.constant dense<0.000000e+00> : vector<32x64xf32>
    %228 = tpu.matmul %227, %219, %cst_213 {dimension_numbers = #tpu.dot_dimension_numbers<[1], [0], [0], [1], [0, 0, 1, 1], [], []>} : vector<32x32xbf16>, vector<32x64xbf16>, vector<32x64xf32> -> vector<32x64xf32>
    %229 = arith.addf %217, %228 : vector<32x64xf32>
    %c2_214 = arith.constant 2 : index
    %c1_215 = arith.constant 1 : index
    %c0_216 = arith.constant 0 : index
    %c0_217 = arith.constant 0 : index
    %230 = vector.load %arg4[%c2_214, %c1_215, %c0_216, %c0_217] : memref<3x3x32x64xbf16, #tpu.memory_space<vmem>>, vector<1x1x32x64xbf16>
    %231 = vector.shape_cast %230 : vector<1x1x32x64xbf16> to vector<32x64xbf16>
    %c0_218 = arith.constant 0 : index
    %c2_219 = arith.constant 2 : index
    %c8_220 = arith.constant 8 : index
    %c0_221 = arith.constant 0 : index
    %232 = tpu.strided_load %arg13[%c0_218, %c2_219, %c8_220, %c0_221] {strides = array<i32: 1, 2, 1, 1>} : memref<1x10x17x32xf32, #tpu.memory_space<vmem>>, vector<1x4x8x32xf32>
    %c0_222 = arith.constant 0 : index
    %c3_223 = arith.constant 3 : index
    %c8_224 = arith.constant 8 : index
    %c0_225 = arith.constant 0 : index
    %233 = tpu.strided_load %arg13[%c0_222, %c3_223, %c8_224, %c0_225] {strides = array<i32: 1, 2, 1, 1>} : memref<1x10x17x32xf32, #tpu.memory_space<vmem>>, vector<1x4x8x32xf32>
    %234 = vector.shape_cast %232 : vector<1x4x8x32xf32> to vector<32x32xf32>
    %235 = arith.truncf %234 : vector<32x32xf32> to vector<32x32xbf16>
    %cst_226 = arith.constant dense<0.000000e+00> : vector<32x64xf32>
    %236 = tpu.matmul %235, %231, %cst_226 {dimension_numbers = #tpu.dot_dimension_numbers<[1], [0], [0], [1], [0, 0, 1, 1], [], []>} : vector<32x32xbf16>, vector<32x64xbf16>, vector<32x64xf32> -> vector<32x64xf32>
    %237 = arith.addf %225, %236 : vector<32x64xf32>
    %238 = vector.shape_cast %233 : vector<1x4x8x32xf32> to vector<32x32xf32>
    %239 = arith.truncf %238 : vector<32x32xf32> to vector<32x32xbf16>
    %cst_227 = arith.constant dense<0.000000e+00> : vector<32x64xf32>
    %240 = tpu.matmul %239, %231, %cst_227 {dimension_numbers = #tpu.dot_dimension_numbers<[1], [0], [0], [1], [0, 0, 1, 1], [], []>} : vector<32x32xbf16>, vector<32x64xbf16>, vector<32x64xf32> -> vector<32x64xf32>
    %241 = arith.addf %229, %240 : vector<32x64xf32>
    %c2_228 = arith.constant 2 : index
    %c2_229 = arith.constant 2 : index
    %c0_230 = arith.constant 0 : index
    %c0_231 = arith.constant 0 : index
    %242 = vector.load %arg4[%c2_228, %c2_229, %c0_230, %c0_231] : memref<3x3x32x64xbf16, #tpu.memory_space<vmem>>, vector<1x1x32x64xbf16>
    %243 = vector.shape_cast %242 : vector<1x1x32x64xbf16> to vector<32x64xbf16>
    %c0_232 = arith.constant 0 : index
    %c2_233 = arith.constant 2 : index
    %c9_234 = arith.constant 9 : index
    %c0_235 = arith.constant 0 : index
    %244 = tpu.strided_load %arg13[%c0_232, %c2_233, %c9_234, %c0_235] {strides = array<i32: 1, 2, 1, 1>} : memref<1x10x17x32xf32, #tpu.memory_space<vmem>>, vector<1x4x8x32xf32>
    %c0_236 = arith.constant 0 : index
    %c3_237 = arith.constant 3 : index
    %c9_238 = arith.constant 9 : index
    %c0_239 = arith.constant 0 : index
    %245 = tpu.strided_load %arg13[%c0_236, %c3_237, %c9_238, %c0_239] {strides = array<i32: 1, 2, 1, 1>} : memref<1x10x17x32xf32, #tpu.memory_space<vmem>>, vector<1x4x8x32xf32>
    %246 = vector.shape_cast %244 : vector<1x4x8x32xf32> to vector<32x32xf32>
    %247 = arith.truncf %246 : vector<32x32xf32> to vector<32x32xbf16>
    %cst_240 = arith.constant dense<0.000000e+00> : vector<32x64xf32>
    %248 = tpu.matmul %247, %243, %cst_240 {dimension_numbers = #tpu.dot_dimension_numbers<[1], [0], [0], [1], [0, 0, 1, 1], [], []>} : vector<32x32xbf16>, vector<32x64xbf16>, vector<32x64xf32> -> vector<32x64xf32>
    %249 = arith.addf %237, %248 : vector<32x64xf32>
    %250 = vector.shape_cast %245 : vector<1x4x8x32xf32> to vector<32x32xf32>
    %251 = arith.truncf %250 : vector<32x32xf32> to vector<32x32xbf16>
    %cst_241 = arith.constant dense<0.000000e+00> : vector<32x64xf32>
    %252 = tpu.matmul %251, %243, %cst_241 {dimension_numbers = #tpu.dot_dimension_numbers<[1], [0], [0], [1], [0, 0, 1, 1], [], []>} : vector<32x32xbf16>, vector<32x64xbf16>, vector<32x64xf32> -> vector<32x64xf32>
    %253 = arith.addf %241, %252 : vector<32x64xf32>
    %254 = arith.maximumf %249, %253 : vector<32x64xf32>
    %c0_242 = arith.constant 0 : index
    %c0_243 = arith.constant 0 : index
    %255 = vector.load %arg5[%c0_242, %c0_243] : memref<1x64xf32, #tpu.memory_space<vmem>>, vector<1x64xf32>
    %256 = vector.broadcast %255 : vector<1x64xf32> to vector<32x64xf32>
    %257 = arith.addf %254, %256 : vector<32x64xf32>
    %cst_244 = arith.constant 0.000000e+00 : f32
    %258 = vector.broadcast %cst_244 : f32 to vector<32x64xf32>
    %259 = arith.maximumf %257, %258 : vector<32x64xf32>
    %c0_245 = arith.constant 0 : index
    %c0_246 = arith.constant 0 : index
    %260 = vector.load %arg14[%c0_245, %c0_246] : memref<32x64xf32, #tpu.memory_space<vmem>>, vector<32x64xf32>
    tpu.vector_store %arg14[%c0_245, %c0_246], %259 {strides = array<i32>} : memref<32x64xf32, #tpu.memory_space<vmem>>, vector<32x64xf32>,
    %cst_247 = arith.constant 0.000000e+00 : f32
    %261 = vector.broadcast %cst_247 : f32 to vector<1x64xf32>
    %c0_248 = arith.constant 0 : index
    %c0_249 = arith.constant 0 : index
    %262 = tpu.strided_load %arg14[%c0_248, %c0_249] {strides = array<i32: 32, 1>} : memref<32x64xf32, #tpu.memory_space<vmem>>, vector<1x64xf32>
    %c1_250 = arith.constant 1 : index
    %c0_251 = arith.constant 0 : index
    %263 = tpu.strided_load %arg14[%c1_250, %c0_251] {strides = array<i32: 32, 1>} : memref<32x64xf32, #tpu.memory_space<vmem>>, vector<1x64xf32>
    %264 = arith.maximumf %262, %263 : vector<1x64xf32>
    %265 = arith.truncf %264 : vector<1x64xf32> to vector<1x64xbf16>
    %c0_252 = arith.constant 0 : index
    %c0_253 = arith.constant 0 : index
    %c0_254 = arith.constant 0 : index
    %266 = vector.load %arg6[%c0_252, %c0_253, %c0_254] : memref<16x64x64xbf16, #tpu.memory_space<vmem>>, vector<1x64x64xbf16>
    %267 = vector.shape_cast %266 : vector<1x64x64xbf16> to vector<64x64xbf16>
    %cst_255 = arith.constant dense<0.000000e+00> : vector<1x64xf32>
    %268 = tpu.matmul %265, %267, %cst_255 {dimension_numbers = #tpu.dot_dimension_numbers<[1], [0], [0], [1], [0, 0, 1, 1], [], []>} : vector<1x64xbf16>, vector<64x64xbf16>, vector<1x64xf32> -> vector<1x64xf32>
    %269 = arith.addf %261, %268 : vector<1x64xf32>
    %c2_256 = arith.constant 2 : index
    %c0_257 = arith.constant 0 : index
    %270 = tpu.strided_load %arg14[%c2_256, %c0_257] {strides = array<i32: 32, 1>} : memref<32x64xf32, #tpu.memory_space<vmem>>, vector<1x64xf32>
    %c3_258 = arith.constant 3 : index
    %c0_259 = arith.constant 0 : index
    %271 = tpu.strided_load %arg14[%c3_258, %c0_259] {strides = array<i32: 32, 1>} : memref<32x64xf32, #tpu.memory_space<vmem>>, vector<1x64xf32>
    %272 = arith.maximumf %270, %271 : vector<1x64xf32>
    %273 = arith.truncf %272 : vector<1x64xf32> to vector<1x64xbf16>
    %c1_260 = arith.constant 1 : index
    %c0_261 = arith.constant 0 : index
    %c0_262 = arith.constant 0 : index
    %274 = vector.load %arg6[%c1_260, %c0_261, %c0_262] : memref<16x64x64xbf16, #tpu.memory_space<vmem>>, vector<1x64x64xbf16>
    %275 = vector.shape_cast %274 : vector<1x64x64xbf16> to vector<64x64xbf16>
    %cst_263 = arith.constant dense<0.000000e+00> : vector<1x64xf32>
    %276 = tpu.matmul %273, %275, %cst_263 {dimension_numbers = #tpu.dot_dimension_numbers<[1], [0], [0], [1], [0, 0, 1, 1], [], []>} : vector<1x64xbf16>, vector<64x64xbf16>, vector<1x64xf32> -> vector<1x64xf32>
    %277 = arith.addf %269, %276 : vector<1x64xf32>
    %c4 = arith.constant 4 : index
    %c0_264 = arith.constant 0 : index
    %278 = tpu.strided_load %arg14[%c4, %c0_264] {strides = array<i32: 32, 1>} : memref<32x64xf32, #tpu.memory_space<vmem>>, vector<1x64xf32>
    %c5 = arith.constant 5 : index
    %c0_265 = arith.constant 0 : index
    %279 = tpu.strided_load %arg14[%c5, %c0_265] {strides = array<i32: 32, 1>} : memref<32x64xf32, #tpu.memory_space<vmem>>, vector<1x64xf32>
    %280 = arith.maximumf %278, %279 : vector<1x64xf32>
    %281 = arith.truncf %280 : vector<1x64xf32> to vector<1x64xbf16>
    %c2_266 = arith.constant 2 : index
    %c0_267 = arith.constant 0 : index
    %c0_268 = arith.constant 0 : index
    %282 = vector.load %arg6[%c2_266, %c0_267, %c0_268] : memref<16x64x64xbf16, #tpu.memory_space<vmem>>, vector<1x64x64xbf16>
    %283 = vector.shape_cast %282 : vector<1x64x64xbf16> to vector<64x64xbf16>
    %cst_269 = arith.constant dense<0.000000e+00> : vector<1x64xf32>
    %284 = tpu.matmul %281, %283, %cst_269 {dimension_numbers = #tpu.dot_dimension_numbers<[1], [0], [0], [1], [0, 0, 1, 1], [], []>} : vector<1x64xbf16>, vector<64x64xbf16>, vector<1x64xf32> -> vector<1x64xf32>
    %285 = arith.addf %277, %284 : vector<1x64xf32>
    %c6 = arith.constant 6 : index
    %c0_270 = arith.constant 0 : index
    %286 = tpu.strided_load %arg14[%c6, %c0_270] {strides = array<i32: 32, 1>} : memref<32x64xf32, #tpu.memory_space<vmem>>, vector<1x64xf32>
    %c7_271 = arith.constant 7 : index
    %c0_272 = arith.constant 0 : index
    %287 = tpu.strided_load %arg14[%c7_271, %c0_272] {strides = array<i32: 32, 1>} : memref<32x64xf32, #tpu.memory_space<vmem>>, vector<1x64xf32>
    %288 = arith.maximumf %286, %287 : vector<1x64xf32>
    %289 = arith.truncf %288 : vector<1x64xf32> to vector<1x64xbf16>
    %c3_273 = arith.constant 3 : index
    %c0_274 = arith.constant 0 : index
    %c0_275 = arith.constant 0 : index
    %290 = vector.load %arg6[%c3_273, %c0_274, %c0_275] : memref<16x64x64xbf16, #tpu.memory_space<vmem>>, vector<1x64x64xbf16>
    %291 = vector.shape_cast %290 : vector<1x64x64xbf16> to vector<64x64xbf16>
    %cst_276 = arith.constant dense<0.000000e+00> : vector<1x64xf32>
    %292 = tpu.matmul %289, %291, %cst_276 {dimension_numbers = #tpu.dot_dimension_numbers<[1], [0], [0], [1], [0, 0, 1, 1], [], []>} : vector<1x64xbf16>, vector<64x64xbf16>, vector<1x64xf32> -> vector<1x64xf32>
    %293 = arith.addf %285, %292 : vector<1x64xf32>
    %c8_277 = arith.constant 8 : index
    %c0_278 = arith.constant 0 : index
    %294 = tpu.strided_load %arg14[%c8_277, %c0_278] {strides = array<i32: 32, 1>} : memref<32x64xf32, #tpu.memory_space<vmem>>, vector<1x64xf32>
    %c9_279 = arith.constant 9 : index
    %c0_280 = arith.constant 0 : index
    %295 = tpu.strided_load %arg14[%c9_279, %c0_280] {strides = array<i32: 32, 1>} : memref<32x64xf32, #tpu.memory_space<vmem>>, vector<1x64xf32>
    %296 = arith.maximumf %294, %295 : vector<1x64xf32>
    %297 = arith.truncf %296 : vector<1x64xf32> to vector<1x64xbf16>
    %c4_281 = arith.constant 4 : index
    %c0_282 = arith.constant 0 : index
    %c0_283 = arith.constant 0 : index
    %298 = vector.load %arg6[%c4_281, %c0_282, %c0_283] : memref<16x64x64xbf16, #tpu.memory_space<vmem>>, vector<1x64x64xbf16>
    %299 = vector.shape_cast %298 : vector<1x64x64xbf16> to vector<64x64xbf16>
    %cst_284 = arith.constant dense<0.000000e+00> : vector<1x64xf32>
    %300 = tpu.matmul %297, %299, %cst_284 {dimension_numbers = #tpu.dot_dimension_numbers<[1], [0], [0], [1], [0, 0, 1, 1], [], []>} : vector<1x64xbf16>, vector<64x64xbf16>, vector<1x64xf32> -> vector<1x64xf32>
    %301 = arith.addf %293, %300 : vector<1x64xf32>
    %c10 = arith.constant 10 : index
    %c0_285 = arith.constant 0 : index
    %302 = tpu.strided_load %arg14[%c10, %c0_285] {strides = array<i32: 32, 1>} : memref<32x64xf32, #tpu.memory_space<vmem>>, vector<1x64xf32>
    %c11 = arith.constant 11 : index
    %c0_286 = arith.constant 0 : index
    %303 = tpu.strided_load %arg14[%c11, %c0_286] {strides = array<i32: 32, 1>} : memref<32x64xf32, #tpu.memory_space<vmem>>, vector<1x64xf32>
    %304 = arith.maximumf %302, %303 : vector<1x64xf32>
    %305 = arith.truncf %304 : vector<1x64xf32> to vector<1x64xbf16>
    %c5_287 = arith.constant 5 : index
    %c0_288 = arith.constant 0 : index
    %c0_289 = arith.constant 0 : index
    %306 = vector.load %arg6[%c5_287, %c0_288, %c0_289] : memref<16x64x64xbf16, #tpu.memory_space<vmem>>, vector<1x64x64xbf16>
    %307 = vector.shape_cast %306 : vector<1x64x64xbf16> to vector<64x64xbf16>
    %cst_290 = arith.constant dense<0.000000e+00> : vector<1x64xf32>
    %308 = tpu.matmul %305, %307, %cst_290 {dimension_numbers = #tpu.dot_dimension_numbers<[1], [0], [0], [1], [0, 0, 1, 1], [], []>} : vector<1x64xbf16>, vector<64x64xbf16>, vector<1x64xf32> -> vector<1x64xf32>
    %309 = arith.addf %301, %308 : vector<1x64xf32>
    %c12 = arith.constant 12 : index
    %c0_291 = arith.constant 0 : index
    %310 = tpu.strided_load %arg14[%c12, %c0_291] {strides = array<i32: 32, 1>} : memref<32x64xf32, #tpu.memory_space<vmem>>, vector<1x64xf32>
    %c13 = arith.constant 13 : index
    %c0_292 = arith.constant 0 : index
    %311 = tpu.strided_load %arg14[%c13, %c0_292] {strides = array<i32: 32, 1>} : memref<32x64xf32, #tpu.memory_space<vmem>>, vector<1x64xf32>
    %312 = arith.maximumf %310, %311 : vector<1x64xf32>
    %313 = arith.truncf %312 : vector<1x64xf32> to vector<1x64xbf16>
    %c6_293 = arith.constant 6 : index
    %c0_294 = arith.constant 0 : index
    %c0_295 = arith.constant 0 : index
    %314 = vector.load %arg6[%c6_293, %c0_294, %c0_295] : memref<16x64x64xbf16, #tpu.memory_space<vmem>>, vector<1x64x64xbf16>
    %315 = vector.shape_cast %314 : vector<1x64x64xbf16> to vector<64x64xbf16>
    %cst_296 = arith.constant dense<0.000000e+00> : vector<1x64xf32>
    %316 = tpu.matmul %313, %315, %cst_296 {dimension_numbers = #tpu.dot_dimension_numbers<[1], [0], [0], [1], [0, 0, 1, 1], [], []>} : vector<1x64xbf16>, vector<64x64xbf16>, vector<1x64xf32> -> vector<1x64xf32>
    %317 = arith.addf %309, %316 : vector<1x64xf32>
    %c14 = arith.constant 14 : index
    %c0_297 = arith.constant 0 : index
    %318 = tpu.strided_load %arg14[%c14, %c0_297] {strides = array<i32: 32, 1>} : memref<32x64xf32, #tpu.memory_space<vmem>>, vector<1x64xf32>
    %c15 = arith.constant 15 : index
    %c0_298 = arith.constant 0 : index
    %319 = tpu.strided_load %arg14[%c15, %c0_298] {strides = array<i32: 32, 1>} : memref<32x64xf32, #tpu.memory_space<vmem>>, vector<1x64xf32>
    %320 = arith.maximumf %318, %319 : vector<1x64xf32>
    %321 = arith.truncf %320 : vector<1x64xf32> to vector<1x64xbf16>
    %c7_299 = arith.constant 7 : index
    %c0_300 = arith.constant 0 : index
    %c0_301 = arith.constant 0 : index
    %322 = vector.load %arg6[%c7_299, %c0_300, %c0_301] : memref<16x64x64xbf16, #tpu.memory_space<vmem>>, vector<1x64x64xbf16>
    %323 = vector.shape_cast %322 : vector<1x64x64xbf16> to vector<64x64xbf16>
    %cst_302 = arith.constant dense<0.000000e+00> : vector<1x64xf32>
    %324 = tpu.matmul %321, %323, %cst_302 {dimension_numbers = #tpu.dot_dimension_numbers<[1], [0], [0], [1], [0, 0, 1, 1], [], []>} : vector<1x64xbf16>, vector<64x64xbf16>, vector<1x64xf32> -> vector<1x64xf32>
    %325 = arith.addf %317, %324 : vector<1x64xf32>
    %c16 = arith.constant 16 : index
    %c0_303 = arith.constant 0 : index
    %326 = tpu.strided_load %arg14[%c16, %c0_303] {strides = array<i32: 32, 1>} : memref<32x64xf32, #tpu.memory_space<vmem>>, vector<1x64xf32>
    %c17 = arith.constant 17 : index
    %c0_304 = arith.constant 0 : index
    %327 = tpu.strided_load %arg14[%c17, %c0_304] {strides = array<i32: 32, 1>} : memref<32x64xf32, #tpu.memory_space<vmem>>, vector<1x64xf32>
    %328 = arith.maximumf %326, %327 : vector<1x64xf32>
    %329 = arith.truncf %328 : vector<1x64xf32> to vector<1x64xbf16>
    %c8_305 = arith.constant 8 : index
    %c0_306 = arith.constant 0 : index
    %c0_307 = arith.constant 0 : index
    %330 = vector.load %arg6[%c8_305, %c0_306, %c0_307] : memref<16x64x64xbf16, #tpu.memory_space<vmem>>, vector<1x64x64xbf16>
    %331 = vector.shape_cast %330 : vector<1x64x64xbf16> to vector<64x64xbf16>
    %cst_308 = arith.constant dense<0.000000e+00> : vector<1x64xf32>
    %332 = tpu.matmul %329, %331, %cst_308 {dimension_numbers = #tpu.dot_dimension_numbers<[1], [0], [0], [1], [0, 0, 1, 1], [], []>} : vector<1x64xbf16>, vector<64x64xbf16>, vector<1x64xf32> -> vector<1x64xf32>
    %333 = arith.addf %325, %332 : vector<1x64xf32>
    %c18 = arith.constant 18 : index
    %c0_309 = arith.constant 0 : index
    %334 = tpu.strided_load %arg14[%c18, %c0_309] {strides = array<i32: 32, 1>} : memref<32x64xf32, #tpu.memory_space<vmem>>, vector<1x64xf32>
    %c19 = arith.constant 19 : index
    %c0_310 = arith.constant 0 : index
    %335 = tpu.strided_load %arg14[%c19, %c0_310] {strides = array<i32: 32, 1>} : memref<32x64xf32, #tpu.memory_space<vmem>>, vector<1x64xf32>
    %336 = arith.maximumf %334, %335 : vector<1x64xf32>
    %337 = arith.truncf %336 : vector<1x64xf32> to vector<1x64xbf16>
    %c9_311 = arith.constant 9 : index
    %c0_312 = arith.constant 0 : index
    %c0_313 = arith.constant 0 : index
    %338 = vector.load %arg6[%c9_311, %c0_312, %c0_313] : memref<16x64x64xbf16, #tpu.memory_space<vmem>>, vector<1x64x64xbf16>
    %339 = vector.shape_cast %338 : vector<1x64x64xbf16> to vector<64x64xbf16>
    %cst_314 = arith.constant dense<0.000000e+00> : vector<1x64xf32>
    %340 = tpu.matmul %337, %339, %cst_314 {dimension_numbers = #tpu.dot_dimension_numbers<[1], [0], [0], [1], [0, 0, 1, 1], [], []>} : vector<1x64xbf16>, vector<64x64xbf16>, vector<1x64xf32> -> vector<1x64xf32>
    %341 = arith.addf %333, %340 : vector<1x64xf32>
    %c20 = arith.constant 20 : index
    %c0_315 = arith.constant 0 : index
    %342 = tpu.strided_load %arg14[%c20, %c0_315] {strides = array<i32: 32, 1>} : memref<32x64xf32, #tpu.memory_space<vmem>>, vector<1x64xf32>
    %c21 = arith.constant 21 : index
    %c0_316 = arith.constant 0 : index
    %343 = tpu.strided_load %arg14[%c21, %c0_316] {strides = array<i32: 32, 1>} : memref<32x64xf32, #tpu.memory_space<vmem>>, vector<1x64xf32>
    %344 = arith.maximumf %342, %343 : vector<1x64xf32>
    %345 = arith.truncf %344 : vector<1x64xf32> to vector<1x64xbf16>
    %c10_317 = arith.constant 10 : index
    %c0_318 = arith.constant 0 : index
    %c0_319 = arith.constant 0 : index
    %346 = vector.load %arg6[%c10_317, %c0_318, %c0_319] : memref<16x64x64xbf16, #tpu.memory_space<vmem>>, vector<1x64x64xbf16>
    %347 = vector.shape_cast %346 : vector<1x64x64xbf16> to vector<64x64xbf16>
    %cst_320 = arith.constant dense<0.000000e+00> : vector<1x64xf32>
    %348 = tpu.matmul %345, %347, %cst_320 {dimension_numbers = #tpu.dot_dimension_numbers<[1], [0], [0], [1], [0, 0, 1, 1], [], []>} : vector<1x64xbf16>, vector<64x64xbf16>, vector<1x64xf32> -> vector<1x64xf32>
    %349 = arith.addf %341, %348 : vector<1x64xf32>
    %c22 = arith.constant 22 : index
    %c0_321 = arith.constant 0 : index
    %350 = tpu.strided_load %arg14[%c22, %c0_321] {strides = array<i32: 32, 1>} : memref<32x64xf32, #tpu.memory_space<vmem>>, vector<1x64xf32>
    %c23 = arith.constant 23 : index
    %c0_322 = arith.constant 0 : index
    %351 = tpu.strided_load %arg14[%c23, %c0_322] {strides = array<i32: 32, 1>} : memref<32x64xf32, #tpu.memory_space<vmem>>, vector<1x64xf32>
    %352 = arith.maximumf %350, %351 : vector<1x64xf32>
    %353 = arith.truncf %352 : vector<1x64xf32> to vector<1x64xbf16>
    %c11_323 = arith.constant 11 : index
    %c0_324 = arith.constant 0 : index
    %c0_325 = arith.constant 0 : index
    %354 = vector.load %arg6[%c11_323, %c0_324, %c0_325] : memref<16x64x64xbf16, #tpu.memory_space<vmem>>, vector<1x64x64xbf16>
    %355 = vector.shape_cast %354 : vector<1x64x64xbf16> to vector<64x64xbf16>
    %cst_326 = arith.constant dense<0.000000e+00> : vector<1x64xf32>
    %356 = tpu.matmul %353, %355, %cst_326 {dimension_numbers = #tpu.dot_dimension_numbers<[1], [0], [0], [1], [0, 0, 1, 1], [], []>} : vector<1x64xbf16>, vector<64x64xbf16>, vector<1x64xf32> -> vector<1x64xf32>
    %357 = arith.addf %349, %356 : vector<1x64xf32>
    %c24 = arith.constant 24 : index
    %c0_327 = arith.constant 0 : index
    %358 = tpu.strided_load %arg14[%c24, %c0_327] {strides = array<i32: 32, 1>} : memref<32x64xf32, #tpu.memory_space<vmem>>, vector<1x64xf32>
    %c25 = arith.constant 25 : index
    %c0_328 = arith.constant 0 : index
    %359 = tpu.strided_load %arg14[%c25, %c0_328] {strides = array<i32: 32, 1>} : memref<32x64xf32, #tpu.memory_space<vmem>>, vector<1x64xf32>
    %360 = arith.maximumf %358, %359 : vector<1x64xf32>
    %361 = arith.truncf %360 : vector<1x64xf32> to vector<1x64xbf16>
    %c12_329 = arith.constant 12 : index
    %c0_330 = arith.constant 0 : index
    %c0_331 = arith.constant 0 : index
    %362 = vector.load %arg6[%c12_329, %c0_330, %c0_331] : memref<16x64x64xbf16, #tpu.memory_space<vmem>>, vector<1x64x64xbf16>
    %363 = vector.shape_cast %362 : vector<1x64x64xbf16> to vector<64x64xbf16>
    %cst_332 = arith.constant dense<0.000000e+00> : vector<1x64xf32>
    %364 = tpu.matmul %361, %363, %cst_332 {dimension_numbers = #tpu.dot_dimension_numbers<[1], [0], [0], [1], [0, 0, 1, 1], [], []>} : vector<1x64xbf16>, vector<64x64xbf16>, vector<1x64xf32> -> vector<1x64xf32>
    %365 = arith.addf %357, %364 : vector<1x64xf32>
    %c26 = arith.constant 26 : index
    %c0_333 = arith.constant 0 : index
    %366 = tpu.strided_load %arg14[%c26, %c0_333] {strides = array<i32: 32, 1>} : memref<32x64xf32, #tpu.memory_space<vmem>>, vector<1x64xf32>
    %c27 = arith.constant 27 : index
    %c0_334 = arith.constant 0 : index
    %367 = tpu.strided_load %arg14[%c27, %c0_334] {strides = array<i32: 32, 1>} : memref<32x64xf32, #tpu.memory_space<vmem>>, vector<1x64xf32>
    %368 = arith.maximumf %366, %367 : vector<1x64xf32>
    %369 = arith.truncf %368 : vector<1x64xf32> to vector<1x64xbf16>
    %c13_335 = arith.constant 13 : index
    %c0_336 = arith.constant 0 : index
    %c0_337 = arith.constant 0 : index
    %370 = vector.load %arg6[%c13_335, %c0_336, %c0_337] : memref<16x64x64xbf16, #tpu.memory_space<vmem>>, vector<1x64x64xbf16>
    %371 = vector.shape_cast %370 : vector<1x64x64xbf16> to vector<64x64xbf16>
    %cst_338 = arith.constant dense<0.000000e+00> : vector<1x64xf32>
    %372 = tpu.matmul %369, %371, %cst_338 {dimension_numbers = #tpu.dot_dimension_numbers<[1], [0], [0], [1], [0, 0, 1, 1], [], []>} : vector<1x64xbf16>, vector<64x64xbf16>, vector<1x64xf32> -> vector<1x64xf32>
    %373 = arith.addf %365, %372 : vector<1x64xf32>
    %c28 = arith.constant 28 : index
    %c0_339 = arith.constant 0 : index
    %374 = tpu.strided_load %arg14[%c28, %c0_339] {strides = array<i32: 32, 1>} : memref<32x64xf32, #tpu.memory_space<vmem>>, vector<1x64xf32>
    %c29 = arith.constant 29 : index
    %c0_340 = arith.constant 0 : index
    %375 = tpu.strided_load %arg14[%c29, %c0_340] {strides = array<i32: 32, 1>} : memref<32x64xf32, #tpu.memory_space<vmem>>, vector<1x64xf32>
    %376 = arith.maximumf %374, %375 : vector<1x64xf32>
    %377 = arith.truncf %376 : vector<1x64xf32> to vector<1x64xbf16>
    %c14_341 = arith.constant 14 : index
    %c0_342 = arith.constant 0 : index
    %c0_343 = arith.constant 0 : index
    %378 = vector.load %arg6[%c14_341, %c0_342, %c0_343] : memref<16x64x64xbf16, #tpu.memory_space<vmem>>, vector<1x64x64xbf16>
    %379 = vector.shape_cast %378 : vector<1x64x64xbf16> to vector<64x64xbf16>
    %cst_344 = arith.constant dense<0.000000e+00> : vector<1x64xf32>
    %380 = tpu.matmul %377, %379, %cst_344 {dimension_numbers = #tpu.dot_dimension_numbers<[1], [0], [0], [1], [0, 0, 1, 1], [], []>} : vector<1x64xbf16>, vector<64x64xbf16>, vector<1x64xf32> -> vector<1x64xf32>
    %381 = arith.addf %373, %380 : vector<1x64xf32>
    %c30 = arith.constant 30 : index
    %c0_345 = arith.constant 0 : index
    %382 = tpu.strided_load %arg14[%c30, %c0_345] {strides = array<i32: 32, 1>} : memref<32x64xf32, #tpu.memory_space<vmem>>, vector<1x64xf32>
    %c31 = arith.constant 31 : index
    %c0_346 = arith.constant 0 : index
    %383 = tpu.strided_load %arg14[%c31, %c0_346] {strides = array<i32: 32, 1>} : memref<32x64xf32, #tpu.memory_space<vmem>>, vector<1x64xf32>
    %384 = arith.maximumf %382, %383 : vector<1x64xf32>
    %385 = arith.truncf %384 : vector<1x64xf32> to vector<1x64xbf16>
    %c15_347 = arith.constant 15 : index
    %c0_348 = arith.constant 0 : index
    %c0_349 = arith.constant 0 : index
    %386 = vector.load %arg6[%c15_347, %c0_348, %c0_349] : memref<16x64x64xbf16, #tpu.memory_space<vmem>>, vector<1x64x64xbf16>
    %387 = vector.shape_cast %386 : vector<1x64x64xbf16> to vector<64x64xbf16>
    %cst_350 = arith.constant dense<0.000000e+00> : vector<1x64xf32>
    %388 = tpu.matmul %385, %387, %cst_350 {dimension_numbers = #tpu.dot_dimension_numbers<[1], [0], [0], [1], [0, 0, 1, 1], [], []>} : vector<1x64xbf16>, vector<64x64xbf16>, vector<1x64xf32> -> vector<1x64xf32>
    %389 = arith.addf %381, %388 : vector<1x64xf32>
    %c0_351 = arith.constant 0 : index
    %c0_352 = arith.constant 0 : index
    %390 = vector.load %arg7[%c0_351, %c0_352] : memref<1x64xf32, #tpu.memory_space<vmem>>, vector<1x64xf32>
    %391 = arith.addf %389, %390 : vector<1x64xf32>
    %cst_353 = arith.constant 0.000000e+00 : f32
    %392 = vector.broadcast %cst_353 : f32 to vector<1x64xf32>
    %393 = arith.maximumf %391, %392 : vector<1x64xf32>
    %394 = arith.truncf %393 : vector<1x64xf32> to vector<1x64xbf16>
    %c0_354 = arith.constant 0 : index
    %c0_355 = arith.constant 0 : index
    %395 = vector.load %arg8[%c0_354, %c0_355] : memref<64x32xbf16, #tpu.memory_space<vmem>>, vector<64x32xbf16>
    %cst_356 = arith.constant dense<0.000000e+00> : vector<1x32xf32>
    %396 = tpu.matmul %394, %395, %cst_356 {dimension_numbers = #tpu.dot_dimension_numbers<[1], [0], [0], [1], [0, 0, 1, 1], [], []>} : vector<1x64xbf16>, vector<64x32xbf16>, vector<1x32xf32> -> vector<1x32xf32>
    %c0_357 = arith.constant 0 : index
    %c0_358 = arith.constant 0 : index
    %397 = vector.load %arg9[%c0_357, %c0_358] : memref<1x32xf32, #tpu.memory_space<vmem>>, vector<1x32xf32>
    %398 = arith.addf %396, %397 : vector<1x32xf32>
    %cst_359 = arith.constant 0.000000e+00 : f32
    %399 = vector.broadcast %cst_359 : f32 to vector<1x32xf32>
    %400 = arith.maximumf %398, %399 : vector<1x32xf32>
    %401 = arith.truncf %400 : vector<1x32xf32> to vector<1x32xbf16>
    %c0_360 = arith.constant 0 : index
    %c0_361 = arith.constant 0 : index
    %402 = vector.load %arg10[%c0_360, %c0_361] : memref<32x2xbf16, #tpu.memory_space<vmem>>, vector<32x2xbf16>
    %cst_362 = arith.constant dense<0.000000e+00> : vector<1x2xf32>
    %403 = tpu.matmul %401, %402, %cst_362 {dimension_numbers = #tpu.dot_dimension_numbers<[1], [0], [0], [1], [0, 0, 1, 1], [], []>} : vector<1x32xbf16>, vector<32x2xbf16>, vector<1x2xf32> -> vector<1x2xf32>
    %c0_363 = arith.constant 0 : index
    %c0_364 = arith.constant 0 : index
    %404 = vector.load %arg11[%c0_363, %c0_364] : memref<1x2xf32, #tpu.memory_space<vmem>>, vector<1x2xf32>
    %405 = arith.addf %403, %404 : vector<1x2xf32>
    %c0_365 = arith.constant 0 : index
    %c0_366 = arith.constant 0 : index
    %c0_367 = arith.constant 0 : index
    %406 = vector.load %arg12[%c0_365, %c0_366, %c0_367] : memref<1x1x2xf32, #tpu.memory_space<vmem>>, vector<1x1x2xf32>
    %407 = vector.shape_cast %406 : vector<1x1x2xf32> to vector<1x2xf32>
    %408 = vector.shape_cast %405 : vector<1x2xf32> to vector<1x1x2xf32>
    tpu.vector_store %arg12[%c0_365, %c0_366, %c0_367], %408 {strides = array<i32>} : memref<1x1x2xf32, #tpu.memory_space<vmem>>, vector<1x1x2xf32>,
    return
  }
  func.func @transform_0(%arg0: i32) -> (i32, i32, i32, i32) {
    %c0_i32 = arith.constant 0 : i32
    %c0_i32_0 = arith.constant 0 : i32
    %c0_i32_1 = arith.constant 0 : i32
    %c0_i32_2 = arith.constant 0 : i32
    return %arg0, %c0_i32, %c0_i32_0, %c0_i32_1 : i32, i32, i32, i32
  }
  func.func @transform_1(%arg0: i32) -> (i32, i32, i32, i32) {
    %c0_i32 = arith.constant 0 : i32
    %c0_i32_0 = arith.constant 0 : i32
    %c0_i32_1 = arith.constant 0 : i32
    %c0_i32_2 = arith.constant 0 : i32
    %c0_i32_3 = arith.constant 0 : i32
    return %c0_i32, %c0_i32_0, %c0_i32_1, %c0_i32_2 : i32, i32, i32, i32
  }
  func.func @transform_2(%arg0: i32) -> (i32, i32) {
    %c0_i32 = arith.constant 0 : i32
    %c0_i32_0 = arith.constant 0 : i32
    %c0_i32_1 = arith.constant 0 : i32
    return %c0_i32, %c0_i32_0 : i32, i32
  }
  func.func @transform_3(%arg0: i32) -> (i32, i32, i32, i32) {
    %c0_i32 = arith.constant 0 : i32
    %c0_i32_0 = arith.constant 0 : i32
    %c0_i32_1 = arith.constant 0 : i32
    %c0_i32_2 = arith.constant 0 : i32
    %c0_i32_3 = arith.constant 0 : i32
    return %c0_i32, %c0_i32_0, %c0_i32_1, %c0_i32_2 : i32, i32, i32, i32
  }
  func.func @transform_4(%arg0: i32) -> (i32, i32) {
    %c0_i32 = arith.constant 0 : i32
    %c0_i32_0 = arith.constant 0 : i32
    %c0_i32_1 = arith.constant 0 : i32
    return %c0_i32, %c0_i32_0 : i32, i32
  }
  func.func @transform_5(%arg0: i32) -> (i32, i32, i32) {
    %c0_i32 = arith.constant 0 : i32
    %c0_i32_0 = arith.constant 0 : i32
    %c0_i32_1 = arith.constant 0 : i32
    %c0_i32_2 = arith.constant 0 : i32
    return %c0_i32, %c0_i32_0, %c0_i32_1 : i32, i32, i32
  }
  func.func @transform_6(%arg0: i32) -> (i32, i32) {
    %c0_i32 = arith.constant 0 : i32
    %c0_i32_0 = arith.constant 0 : i32
    %c0_i32_1 = arith.constant 0 : i32
    return %c0_i32, %c0_i32_0 : i32, i32
  }
  func.func @transform_7(%arg0: i32) -> (i32, i32) {
    %c0_i32 = arith.constant 0 : i32
    %c0_i32_0 = arith.constant 0 : i32
    %c0_i32_1 = arith.constant 0 : i32
    return %c0_i32, %c0_i32_0 : i32, i32
  }
  func.func @transform_8(%arg0: i32) -> (i32, i32) {
    %c0_i32 = arith.constant 0 : i32
    %c0_i32_0 = arith.constant 0 : i32
    %c0_i32_1 = arith.constant 0 : i32
    return %c0_i32, %c0_i32_0 : i32, i32
  }
  func.func @transform_9(%arg0: i32) -> (i32, i32) {
    %c0_i32 = arith.constant 0 : i32
    %c0_i32_0 = arith.constant 0 : i32
    %c0_i32_1 = arith.constant 0 : i32
    return %c0_i32, %c0_i32_0 : i32, i32
  }
  func.func @transform_10(%arg0: i32) -> (i32, i32) {
    %c0_i32 = arith.constant 0 : i32
    %c0_i32_0 = arith.constant 0 : i32
    %c0_i32_1 = arith.constant 0 : i32
    return %c0_i32, %c0_i32_0 : i32, i32
  }
  func.func @transform_11(%arg0: i32) -> (i32, i32, i32) {
    %c0_i32 = arith.constant 0 : i32
    %c0_i32_0 = arith.constant 0 : i32
    %c0_i32_1 = arith.constant 0 : i32
    return %arg0, %c0_i32, %c0_i32_0 : i32, i32, i32
  }
}

</mosaic_0001>

<llo_original>
// kernel: custom_cnn_forward.1
$region0: #{custom_cnn_forward.1}
  #allocation0 [shape = 'u32[]', space=smem, size = 0x4, offset = 0x4, fixed_abs, tag = 'smem constant byte address 0x4 - core index']
  #allocation1 [shape = 'u32[144,128]{1,0:T(1,128)}', space=vmem, size = 0x12000, scoped, tag = 'internal scratch']
  #allocation2 [shape = 'f32[1,10,17,32]{3,2,1,0:T(8,128)}', space=vmem, size = 0x1e000, scoped, tag = 'scratch operand']
  #allocation3 [shape = 'f32[32,64]{1,0:T(8,128)}', space=vmem, size = 0x4000, scoped, tag = 'scratch operand']
  %s0 = inlined_call_operand.vmem [shape: f32[2,18,18,1], index: 0, kind: input, shape index: {}]
  %s1 = inlined_call_operand.vmem [shape: f32[3,3,1,32], index: 1, kind: input, shape index: {}]
  %s2 = inlined_call_operand.vmem [shape: f32[1,32], index: 2, kind: input, shape index: {}]
  %s3 = inlined_call_operand.vmem [shape: bf16[3,3,32,64], index: 3, kind: input, shape index: {}]
  %s4 = inlined_call_operand.vmem [shape: f32[1,64], index: 4, kind: input, shape index: {}]
  %s5 = inlined_call_operand.vmem [shape: bf16[16,64,64], index: 5, kind: input, shape index: {}]
  %s6 = inlined_call_operand.vmem [shape: f32[1,64], index: 6, kind: input, shape index: {}]
  %s7 = inlined_call_operand.vmem [shape: bf16[64,32], index: 7, kind: input, shape index: {}]
  %s8 = inlined_call_operand.vmem [shape: f32[1,32], index: 8, kind: input, shape index: {}]
  %s9 = inlined_call_operand.vmem [shape: bf16[32,2], index: 9, kind: input, shape index: {}]
  %s10 = inlined_call_operand.vmem [shape: f32[1,2], index: 10, kind: input, shape index: {}]
  %s11 = inlined_call_operand.hbm [shape: f32[2,1,2], index: 11, kind: output, shape index: {}]
  %s12 = sld [smem:[#allocation0]]
  $region77: #{custom_cnn_forward.1} parent=0
    _
  %s14 = ssub.s32 1, %s12
  %s15 = scalar_select 0, %s14, %s12
  $region1: #{custom_cnn_forward.1} parent=0
    #allocation4 [shape = 'u8[1024]{0}', space=vmem, size = 0x400, scoped, tag = 'output window, operand 0']
    #allocation5 [shape = 's32[2]{0}', space=sflag, size = 0x8, scoped, tag = 'scoped memory for custom_cnn_forward.1']
    %16 = vsyncpa [#allocation5], 0
    %s17 = scalar_lea.sflag [#allocation5], 1
    %18 = vsyncpa %s17, 0
    loop: start=0, step=1, limit=4
    $region2: #{custom_cnn_forward.1} parent=1 // loop_pre_header
      _
    $region3: #{custom_cnn_forward.1} parent=1 // loop_header
      %s20 = sphi 0, %s24
      %p21 = scmp.ge.s32.totalorder %s20, 4
      %s30 = sphi 0, %s32
      %s33 = sphi 0, %s30
      %s34 = sphi 0, %s33
      %s50 = sphi 0, %s34
      %s54 = sphi 0, %s54
      %s56 = sphi 0, %s54
      %s57 = sphi 0, %s56
      %s71 = sphi 0, %s57
      %s75 = sphi 0, %s75
      %s77 = sphi 0, %s75
      %s78 = sphi 0, %s77
      %s92 = sphi 0, %s78
      %s96 = sphi 0, %s96
      %s98 = sphi 0, %s96
      %s99 = sphi 0, %s98
      %s113 = sphi 0, %s99
      %s117 = sphi 0, %s117
      %s119 = sphi 0, %s117
      %s120 = sphi 0, %s119
      %s134 = sphi 0, %s120
      %s138 = sphi 0, %s138
      %s140 = sphi 0, %s138
      %s141 = sphi 0, %s140
      %s155 = sphi 0, %s141
      %s159 = sphi 0, %s159
      %s161 = sphi 0, %s159
      %s162 = sphi 0, %s161
      %s176 = sphi 0, %s162
      %s180 = sphi 0, %s180
      %s182 = sphi 0, %s180
      %s183 = sphi 0, %s182
      %s197 = sphi 0, %s183
      %s201 = sphi 0, %s201
      %s203 = sphi 0, %s201
      %s204 = sphi 0, %s203
      %s218 = sphi 0, %s204
      %s222 = sphi 0, %s222
      %s224 = sphi 0, %s222
      %s225 = sphi 0, %s224
      %s239 = sphi 0, %s225
      %s243 = sphi 0, %s243
      %s245 = sphi 0, %s243
      %s246 = sphi 0, %s245
      %s260 = sphi 0, %s246
      %s266 = sphi 0, %s268
      %s269 = sphi 0, %s266
      %s270 = sphi 0, %s269
      %s286 = sphi 0, %s270
    $region4: #{custom_cnn_forward.1} parent=1 // loop_header_branch
      %23 = sbr.rel (%p21) target = $region8
    $region5: #{custom_cnn_forward.1} parent=1 // loop_body
      %s25 = ssub.s32 %s20, 1
      %s26 = ssub.s32 %s20, 2
      %s27 = sadd.s32 %s20, 1
      %s28 = ssub.s32 %s20, %s27
      %p29 = scmp.eq.s32.totalorder %s28, 0
      %s31 = sadd.s32 %s30, 1
      %s32 = scalar_select %p29, %s30, %s31
      %p35 = pneg %p29
      %p36 = scmp.eq.s32.totalorder %s20, 1
      %p37 = por %p35, %p36
      %p38 = scmp.ne.s32.totalorder %s30, %s33
      %p39 = scmp.eq.s32.totalorder %s20, 0
      %p40 = por %p38, %p39
      %p41 = scmp.ne.s32.totalorder %s30, %s33
      %p42 = scmp.eq.s32.totalorder %s25, 1
      %p43 = por %p41, %p42
      %p44 = scmp.ne.s32.totalorder %s33, %s34
      %p45 = scmp.eq.s32.totalorder %s25, 0
      %p46 = por %p44, %p45
      %p47 = scmp.ne.s32.totalorder %s33, %s34
      %p48 = scmp.eq.s32.totalorder %s26, 1
      %p49 = por %p47, %p48
      %p51 = scmp.ne.s32.totalorder %s34, %s50
      %p52 = scmp.eq.s32.totalorder %s26, 0
      %p53 = por %p51, %p52
      %s55 = sadd.s32 %s54, 1
      %p58 = scmp.eq.s32.totalorder %s20, 1
      %p59 = scmp.ne.s32.totalorder %s54, %s56
      %p60 = scmp.eq.s32.totalorder %s20, 0
      %p61 = por %p59, %p60
      %p62 = scmp.ne.s32.totalorder %s54, %s56
      %p63 = scmp.eq.s32.totalorder %s25, 1
      %p64 = por %p62, %p63
      %p65 = scmp.ne.s32.totalorder %s56, %s57
      %p66 = scmp.eq.s32.totalorder %s25, 0
      %p67 = por %p65, %p66
      %p68 = scmp.ne.s32.totalorder %s56, %s57
      %p69 = scmp.eq.s32.totalorder %s26, 1
      %p70 = por %p68, %p69
      %p72 = scmp.ne.s32.totalorder %s57, %s71
      %p73 = scmp.eq.s32.totalorder %s26, 0
      %p74 = por %p72, %p73
      %s76 = sadd.s32 %s75, 1
      %p79 = scmp.eq.s32.totalorder %s20, 1
      %p80 = scmp.ne.s32.totalorder %s75, %s77
      %p81 = scmp.eq.s32.totalorder %s20, 0
      %p82 = por %p80, %p81
      %p83 = scmp.ne.s32.totalorder %s75, %s77
      %p84 = scmp.eq.s32.totalorder %s25, 1
      %p85 = por %p83, %p84
      %p86 = scmp.ne.s32.totalorder %s77, %s78
      %p87 = scmp.eq.s32.totalorder %s25, 0
      %p88 = por %p86, %p87
      %p89 = scmp.ne.s32.totalorder %s77, %s78
      %p90 = scmp.eq.s32.totalorder %s26, 1
      %p91 = por %p89, %p90
      %p93 = scmp.ne.s32.totalorder %s78, %s92
      %p94 = scmp.eq.s32.totalorder %s26, 0
      %p95 = por %p93, %p94
      %s97 = sadd.s32 %s96, 1
      %p100 = scmp.eq.s32.totalorder %s20, 1
      %p101 = scmp.ne.s32.totalorder %s96, %s98
      %p102 = scmp.eq.s32.totalorder %s20, 0
      %p103 = por %p101, %p102
      %p104 = scmp.ne.s32.totalorder %s96, %s98
      %p105 = scmp.eq.s32.totalorder %s25, 1
      %p106 = por %p104, %p105
      %p107 = scmp.ne.s32.totalorder %s98, %s99
      %p108 = scmp.eq.s32.totalorder %s25, 0
      %p109 = por %p107, %p108
      %p110 = scmp.ne.s32.totalorder %s98, %s99
      %p111 = scmp.eq.s32.totalorder %s26, 1
      %p112 = por %p110, %p111
      %p114 = scmp.ne.s32.totalorder %s99, %s113
      %p115 = scmp.eq.s32.totalorder %s26, 0
      %p116 = por %p114, %p115
      %s118 = sadd.s32 %s117, 1
      %p121 = scmp.eq.s32.totalorder %s20, 1
      %p122 = scmp.ne.s32.totalorder %s117, %s119
      %p123 = scmp.eq.s32.totalorder %s20, 0
      %p124 = por %p122, %p123
      %p125 = scmp.ne.s32.totalorder %s117, %s119
      %p126 = scmp.eq.s32.totalorder %s25, 1
      %p127 = por %p125, %p126
      %p128 = scmp.ne.s32.totalorder %s119, %s120
      %p129 = scmp.eq.s32.totalorder %s25, 0
      %p130 = por %p128, %p129
      %p131 = scmp.ne.s32.totalorder %s119, %s120
      %p132 = scmp.eq.s32.totalorder %s26, 1
      %p133 = por %p131, %p132
      %p135 = scmp.ne.s32.totalorder %s120, %s134
      %p136 = scmp.eq.s32.totalorder %s26, 0
      %p137 = por %p135, %p136
      %s139 = sadd.s32 %s138, 1
      %p142 = scmp.eq.s32.totalorder %s20, 1
      %p143 = scmp.ne.s32.totalorder %s138, %s140
      %p144 = scmp.eq.s32.totalorder %s20, 0
      %p145 = por %p143, %p144
      %p146 = scmp.ne.s32.totalorder %s138, %s140
      %p147 = scmp.eq.s32.totalorder %s25, 1
      %p148 = por %p146, %p147
      %p149 = scmp.ne.s32.totalorder %s140, %s141
      %p150 = scmp.eq.s32.totalorder %s25, 0
      %p151 = por %p149, %p150
      %p152 = scmp.ne.s32.totalorder %s140, %s141
      %p153 = scmp.eq.s32.totalorder %s26, 1
      %p154 = por %p152, %p153
      %p156 = scmp.ne.s32.totalorder %s141, %s155
      %p157 = scmp.eq.s32.totalorder %s26, 0
      %p158 = por %p156, %p157
      %s160 = sadd.s32 %s159, 1
      %p163 = scmp.eq.s32.totalorder %s20, 1
      %p164 = scmp.ne.s32.totalorder %s159, %s161
      %p165 = scmp.eq.s32.totalorder %s20, 0
      %p166 = por %p164, %p165
      %p167 = scmp.ne.s32.totalorder %s159, %s161
      %p168 = scmp.eq.s32.totalorder %s25, 1
      %p169 = por %p167, %p168
      %p170 = scmp.ne.s32.totalorder %s161, %s162
      %p171 = scmp.eq.s32.totalorder %s25, 0
      %p172 = por %p170, %p171
      %p173 = scmp.ne.s32.totalorder %s161, %s162
      %p174 = scmp.eq.s32.totalorder %s26, 1
      %p175 = por %p173, %p174
      %p177 = scmp.ne.s32.totalorder %s162, %s176
      %p178 = scmp.eq.s32.totalorder %s26, 0
      %p179 = por %p177, %p178
      %s181 = sadd.s32 %s180, 1
      %p184 = scmp.eq.s32.totalorder %s20, 1
      %p185 = scmp.ne.s32.totalorder %s180, %s182
      %p186 = scmp.eq.s32.totalorder %s20, 0
      %p187 = por %p185, %p186
      %p188 = scmp.ne.s32.totalorder %s180, %s182
      %p189 = scmp.eq.s32.totalorder %s25, 1
      %p190 = por %p188, %p189
      %p191 = scmp.ne.s32.totalorder %s182, %s183
      %p192 = scmp.eq.s32.totalorder %s25, 0
      %p193 = por %p191, %p192
      %p194 = scmp.ne.s32.totalorder %s182, %s183
      %p195 = scmp.eq.s32.totalorder %s26, 1
      %p196 = por %p194, %p195
      %p198 = scmp.ne.s32.totalorder %s183, %s197
      %p199 = scmp.eq.s32.totalorder %s26, 0
      %p200 = por %p198, %p199
      %s202 = sadd.s32 %s201, 1
      %p205 = scmp.eq.s32.totalorder %s20, 1
      %p206 = scmp.ne.s32.totalorder %s201, %s203
      %p207 = scmp.eq.s32.totalorder %s20, 0
      %p208 = por %p206, %p207
      %p209 = scmp.ne.s32.totalorder %s201, %s203
      %p210 = scmp.eq.s32.totalorder %s25, 1
      %p211 = por %p209, %p210
      %p212 = scmp.ne.s32.totalorder %s203, %s204
      %p213 = scmp.eq.s32.totalorder %s25, 0
      %p214 = por %p212, %p213
      %p215 = scmp.ne.s32.totalorder %s203, %s204
      %p216 = scmp.eq.s32.totalorder %s26, 1
      %p217 = por %p215, %p216
      %p219 = scmp.ne.s32.totalorder %s204, %s218
      %p220 = scmp.eq.s32.totalorder %s26, 0
      %p221 = por %p219, %p220
      %s223 = sadd.s32 %s222, 1
      %p226 = scmp.eq.s32.totalorder %s20, 1
      %p227 = scmp.ne.s32.totalorder %s222, %s224
      %p228 = scmp.eq.s32.totalorder %s20, 0
      %p229 = por %p227, %p228
      %p230 = scmp.ne.s32.totalorder %s222, %s224
      %p231 = scmp.eq.s32.totalorder %s25, 1
      %p232 = por %p230, %p231
      %p233 = scmp.ne.s32.totalorder %s224, %s225
      %p234 = scmp.eq.s32.totalorder %s25, 0
      %p235 = por %p233, %p234
      %p236 = scmp.ne.s32.totalorder %s224, %s225
      %p237 = scmp.eq.s32.totalorder %s26, 1
      %p238 = por %p236, %p237
      %p240 = scmp.ne.s32.totalorder %s225, %s239
      %p241 = scmp.eq.s32.totalorder %s26, 0
      %p242 = por %p240, %p241
      %s244 = sadd.s32 %s243, 1
      %p247 = scmp.eq.s32.totalorder %s20, 1
      %p248 = scmp.ne.s32.totalorder %s243, %s245
      %p249 = scmp.eq.s32.totalorder %s20, 0
      %p250 = por %p248, %p249
      %p251 = scmp.ne.s32.totalorder %s243, %s245
      %p252 = scmp.eq.s32.totalorder %s25, 1
      %p253 = por %p251, %p252
      %p254 = scmp.ne.s32.totalorder %s245, %s246
      %p255 = scmp.eq.s32.totalorder %s25, 0
      %p256 = por %p254, %p255
      %p257 = scmp.ne.s32.totalorder %s245, %s246
      %p258 = scmp.eq.s32.totalorder %s26, 1
      %p259 = por %p257, %p258
      %p261 = scmp.ne.s32.totalorder %s246, %s260
      %p262 = scmp.eq.s32.totalorder %s26, 0
      %p263 = por %p261, %p262
      %s264 = ssub.s32 %s20, %s27
      %p265 = scmp.eq.s32.totalorder %s264, 0
      %s267 = sadd.s32 %s266, 1
      %s268 = scalar_select %p265, %s266, %s267
      %p271 = pneg %p265
      %p272 = scmp.eq.s32.totalorder %s20, 1
      %p273 = por %p271, %p272
      %p274 = scmp.ne.s32.totalorder %s266, %s269
      %p275 = scmp.eq.s32.totalorder %s20, 0
      %p276 = por %p274, %p275
      %p277 = scmp.ne.s32.totalorder %s266, %s269
      %p278 = scmp.eq.s32.totalorder %s25, 1
      %p279 = por %p277, %p278
      %p280 = scmp.ne.s32.totalorder %s269, %s270
      %p281 = scmp.eq.s32.totalorder %s25, 0
      %p282 = por %p280, %p281
      %p283 = scmp.ne.s32.totalorder %s269, %s270
      %p284 = scmp.eq.s32.totalorder %s26, 1
      %p285 = por %p283, %p284
      %p287 = scmp.ne.s32.totalorder %s270, %s286
      %p288 = scmp.eq.s32.totalorder %s26, 0
      %p289 = por %p287, %p288
      %p290 = scmp.le.s32.totalorder 1, %s20
      %p291 = scmp.lt.s32.totalorder %s20, 3
      %p292 = pnand %p290, %p291
      %p293 = pneg %p292
      // Predicated region
      $region9: #{custom_cnn_forward.1} parent=5 // pred_check
        _
      $region10: #{custom_cnn_forward.1} parent=5 // pred_check_branch
        %295 = sbr.rel (%p292) target = $region12
      $region11: #{custom_cnn_forward.1} parent=5 // pred_region
        %s296 = ssub.s32 %s20, 1
        // Predicated region
        $region13: #{custom_cnn_forward.1} parent=11 // pred_check
          %p297 = pneg %p67
        $region14: #{custom_cnn_forward.1} parent=11 // pred_check_branch
          %299 = sbr.rel (%p297) target = $region16
        $region15: #{custom_cnn_forward.1} parent=11 // pred_region
          _
        $region16: #{custom_cnn_forward.1} parent=11 // pred_fallthru
          _
        // Predicated region
        $region17: #{custom_cnn_forward.1} parent=11 // pred_check
          %p300 = pneg %p88
        $region18: #{custom_cnn_forward.1} parent=11 // pred_check_branch
          %302 = sbr.rel (%p300) target = $region20
        $region19: #{custom_cnn_forward.1} parent=11 // pred_region
          _
        $region20: #{custom_cnn_forward.1} parent=11 // pred_fallthru
          _
        // Predicated region
        $region21: #{custom_cnn_forward.1} parent=11 // pred_check
          %p303 = pneg %p109
        $region22: #{custom_cnn_forward.1} parent=11 // pred_check_branch
          %305 = sbr.rel (%p303) target = $region24
        $region23: #{custom_cnn_forward.1} parent=11 // pred_region
          _
        $region24: #{custom_cnn_forward.1} parent=11 // pred_fallthru
          _
        // Predicated region
        $region25: #{custom_cnn_forward.1} parent=11 // pred_check
          %p306 = pneg %p130
        $region26: #{custom_cnn_forward.1} parent=11 // pred_check_branch
          %308 = sbr.rel (%p306) target = $region28
        $region27: #{custom_cnn_forward.1} parent=11 // pred_region
          _
        $region28: #{custom_cnn_forward.1} parent=11 // pred_fallthru
          _
        // Predicated region
        $region29: #{custom_cnn_forward.1} parent=11 // pred_check
          %p309 = pneg %p151
        $region30: #{custom_cnn_forward.1} parent=11 // pred_check_branch
          %311 = sbr.rel (%p309) target = $region32
        $region31: #{custom_cnn_forward.1} parent=11 // pred_region
          _
        $region32: #{custom_cnn_forward.1} parent=11 // pred_fallthru
          _
        // Predicated region
        $region33: #{custom_cnn_forward.1} parent=11 // pred_check
          %p312 = pneg %p172
        $region34: #{custom_cnn_forward.1} parent=11 // pred_check_branch
          %314 = sbr.rel (%p312) target = $region36
        $region35: #{custom_cnn_forward.1} parent=11 // pred_region
          _
        $region36: #{custom_cnn_forward.1} parent=11 // pred_fallthru
          _
        // Predicated region
        $region37: #{custom_cnn_forward.1} parent=11 // pred_check
          %p315 = pneg %p193
        $region38: #{custom_cnn_forward.1} parent=11 // pred_check_branch
          %317 = sbr.rel (%p315) target = $region40
        $region39: #{custom_cnn_forward.1} parent=11 // pred_region
          _
        $region40: #{custom_cnn_forward.1} parent=11 // pred_fallthru
          _
        // Predicated region
        $region41: #{custom_cnn_forward.1} parent=11 // pred_check
          %p318 = pneg %p214
        $region42: #{custom_cnn_forward.1} parent=11 // pred_check_branch
          %320 = sbr.rel (%p318) target = $region44
        $region43: #{custom_cnn_forward.1} parent=11 // pred_region
          _
        $region44: #{custom_cnn_forward.1} parent=11 // pred_fallthru
          _
        // Predicated region
        $region45: #{custom_cnn_forward.1} parent=11 // pred_check
          %p321 = pneg %p235
        $region46: #{custom_cnn_forward.1} parent=11 // pred_check_branch
          %323 = sbr.rel (%p321) target = $region48
        $region47: #{custom_cnn_forward.1} parent=11 // pred_region
          _
        $region48: #{custom_cnn_forward.1} parent=11 // pred_fallthru
          _
        // Predicated region
        $region49: #{custom_cnn_forward.1} parent=11 // pred_check
          %p324 = pneg %p256
        $region50: #{custom_cnn_forward.1} parent=11 // pred_check_branch
          %326 = sbr.rel (%p324) target = $region52
        $region51: #{custom_cnn_forward.1} parent=11 // pred_region
          _
        $region52: #{custom_cnn_forward.1} parent=11 // pred_fallthru
          _
      $region12: #{custom_cnn_forward.1} parent=5 // pred_fallthru
        _
      %p327 = scmp.lt.s32.totalorder %s20, 2
      // Predicated region
      $region53: #{custom_cnn_forward.1} parent=5 // pred_check
        %p328 = pneg %p327
      $region54: #{custom_cnn_forward.1} parent=5 // pred_check_branch
        %330 = sbr.rel (%p328) target = $region56
      $region55: #{custom_cnn_forward.1} parent=5 // pred_region
        // Predicated region
        $region57: #{custom_cnn_forward.1} parent=55 // pred_check
          %p331 = pneg %p40
        $region58: #{custom_cnn_forward.1} parent=55 // pred_check_branch
          %333 = sbr.rel (%p331) target = $region60
        $region59: #{custom_cnn_forward.1} parent=55 // pred_region
          %p334 = scmp.lt.s32.totalorder %s20, 1
          %s335 = scalar_select %p334, %s20, 1
          %s336 = smul.addr %s335, 54
          %s337 = smul.addr %s336, 8
          %s338 = scalar_lea.vmem %s0, %s337
        $region60: #{custom_cnn_forward.1} parent=55 // pred_fallthru
          _
      $region56: #{custom_cnn_forward.1} parent=5 // pred_fallthru
        _
      %p339 = scmp.le.s32.totalorder 1, %s20
      %p340 = scmp.lt.s32.totalorder %s20, 3
      %p341 = pnand %p339, %p340
      %p342 = pneg %p341
      // Predicated region
      $region61: #{custom_cnn_forward.1} parent=5 // pred_check
        _
      $region62: #{custom_cnn_forward.1} parent=5 // pred_check_branch
        %344 = sbr.rel (%p341) target = $region64
      $region63: #{custom_cnn_forward.1} parent=5 // pred_region
        %s345 = ssub.s32 %s20, 1
        %p346 = scmp.lt.s32.totalorder %s25, 1
        %s347 = scalar_select %p346, %s25, 1
        %s348 = smul.addr %s347, 54
        %s349 = smul.addr %s348, 8
        %s350 = scalar_lea.vmem %s0, %s349
        %p351 = pneg %p46
        %p352 = pneg %p43
        %p353 = pneg %p67
        %p354 = pneg %p64
        %p355 = pneg %p88
        %p356 = pneg %p85
        %p357 = pneg %p109
        %p358 = pneg %p106
        %p359 = pneg %p130
        %p360 = pneg %p127
        %p361 = pneg %p151
        %p362 = pneg %p148
        %p363 = pneg %p172
        %p364 = pneg %p169
        %p365 = pneg %p193
        %p366 = pneg %p190
        %p367 = pneg %p214
        %p368 = pneg %p211
        %p369 = pneg %p235
        %p370 = pneg %p232
        %p371 = pneg %p256
        %p372 = pneg %p253
        %p373 = pneg %p282
        %p374 = pneg %p279
        %s375 = sand.u32 %s269, 1
        %s376 = scalar_lea.sflag [#allocation5], %s375
        %s377 = sand.u32 %s269, 1
        %s378 = scalar_lea.vmem [#allocation4], %s377
        %p379 = scmp.lt.s32.totalorder %s25, 1
        %s380 = scalar_select %p379, %s25, 1
        %s381 = smul.addr %s380, 54
        %s382 = smul.addr %s381, 8
        %s383 = scalar_lea.vmem %s0, %s382
        %v385 = vld [vmem:[%s1] sm:$0x1]
        %v386 = vld [vmem:[%s383] ss:$2 sm:$0xff]
        %s387 = scalar_lea.vmem %s383, 24
        %v388 = vld [vmem:[%s387] ss:$2 sm:$0xff]
        %s389 = scalar_lea.vmem %s383, 48
        %v390 = vld [vmem:[%s389] ss:$2 sm:$0xff]
        %s391 = scalar_lea.vmem %s383, 72
        %v392 = vld [vmem:[%s391] ss:$2 sm:$0xff]
        %s393 = scalar_lea.vmem %s383, 96
        %v394 = vld [vmem:[%s393] ss:$2 sm:$0xff]
        %s395 = scalar_lea.vmem %s383, 120
        %v396 = vld [vmem:[%s395] ss:$2 sm:$0xff]
        %s397 = scalar_lea.vmem %s383, 144
        %v398 = vld [vmem:[%s397] ss:$2 sm:$0xff]
        %s399 = scalar_lea.vmem %s383, 168
        %v400 = vld [vmem:[%s399] ss:$2 sm:$0xff]
        %s401 = scalar_lea.vmem %s383, 192
        %v402 = vld [vmem:[%s401] ss:$2 sm:$0xff]
        %s403 = scalar_lea.vmem %s383, 216
        %v404 = vld [vmem:[%s403] ss:$2 sm:$0xff]
        %s405 = scalar_lea.vmem %s383, 240
        %v406 = vld [vmem:[%s405] ss:$2 sm:$0xff]
        %s407 = scalar_lea.vmem %s383, 264
        %v408 = vld [vmem:[%s407] ss:$2 sm:$0xff]
        %s409 = scalar_lea.vmem %s383, 288
        %v410 = vld [vmem:[%s409] ss:$2 sm:$0xff]
        %s411 = scalar_lea.vmem %s383, 312
        %v412 = vld [vmem:[%s411] ss:$2 sm:$0xff]
        %s413 = scalar_lea.vmem %s383, 336
        %v414 = vld [vmem:[%s413] ss:$2 sm:$0xff]
        %s415 = scalar_lea.vmem %s383, 360
        %v416 = vld [vmem:[%s415] ss:$2 sm:$0xff]
        %s417 = scalar_lea.vmem %s383, 1
        %v418 = vld [vmem:[%s417] ss:$2 sm:$0xff]
        %s419 = scalar_lea.vmem %s383, 25
        %v420 = vld [vmem:[%s419] ss:$2 sm:$0xff]
        %s421 = scalar_lea.vmem %s383, 49
        %v422 = vld [vmem:[%s421] ss:$2 sm:$0xff]
        %s423 = scalar_lea.vmem %s383, 73
        %v424 = vld [vmem:[%s423] ss:$2 sm:$0xff]
        %s425 = scalar_lea.vmem %s383, 97
        %v426 = vld [vmem:[%s425] ss:$2 sm:$0xff]
        %s427 = scalar_lea.vmem %s383, 121
        %v428 = vld [vmem:[%s427] ss:$2 sm:$0xff]
        %s429 = scalar_lea.vmem %s383, 145
        %v430 = vld [vmem:[%s429] ss:$2 sm:$0xff]
        %s431 = scalar_lea.vmem %s383, 169
        %v432 = vld [vmem:[%s431] ss:$2 sm:$0xff]
        %s433 = scalar_lea.vmem %s383, 193
        %v434 = vld [vmem:[%s433] ss:$2 sm:$0xff]
        %s435 = scalar_lea.vmem %s383, 217
        %v436 = vld [vmem:[%s435] ss:$2 sm:$0xff]
        %s437 = scalar_lea.vmem %s383, 241
        %v438 = vld [vmem:[%s437] ss:$2 sm:$0xff]
        %s439 = scalar_lea.vmem %s383, 265
        %v440 = vld [vmem:[%s439] ss:$2 sm:$0xff]
        %s441 = scalar_lea.vmem %s383, 289
        %v442 = vld [vmem:[%s441] ss:$2 sm:$0xff]
        %s443 = scalar_lea.vmem %s383, 313
        %v444 = vld [vmem:[%s443] ss:$2 sm:$0xff]
        %s445 = scalar_lea.vmem %s383, 337
        %v446 = vld [vmem:[%s445] ss:$2 sm:$0xff]
        %s447 = scalar_lea.vmem %s383, 361
        %v448 = vld [vmem:[%s447] ss:$2 sm:$0xff]
        %450 = vset.pattern.permute.xlu0 0
        %451 = vperm.xlu0 %450, %v386
        %v452 = vpop.permute.xlu0 %451
        %455 = vset.pattern.permute.xlu0 0
        %456 = vperm.xlu0 %455, %v388
        %v457 = vpop.permute.xlu0 %456
        %460 = vset.pattern.permute.xlu0 0
        %461 = vperm.xlu0 %460, %v390
        %v462 = vpop.permute.xlu0 %461
        %465 = vset.pattern.permute.xlu0 0
        %466 = vperm.xlu0 %465, %v392
        %v467 = vpop.permute.xlu0 %466
        %470 = vset.pattern.permute.xlu0 0
        %471 = vperm.xlu0 %470, %v394
        %v472 = vpop.permute.xlu0 %471
        %475 = vset.pattern.permute.xlu0 0
        %476 = vperm.xlu0 %475, %v396
        %v477 = vpop.permute.xlu0 %476
        %480 = vset.pattern.permute.xlu0 0
        %481 = vperm.xlu0 %480, %v398
        %v482 = vpop.permute.xlu0 %481
        %485 = vset.pattern.permute.xlu0 0
        %486 = vperm.xlu0 %485, %v400
        %v487 = vpop.permute.xlu0 %486
        %490 = vset.pattern.permute.xlu0 0
        %491 = vperm.xlu0 %490, %v402
        %v492 = vpop.permute.xlu0 %491
        %495 = vset.pattern.permute.xlu0 0
        %496 = vperm.xlu0 %495, %v404
        %v497 = vpop.permute.xlu0 %496
        %500 = vset.pattern.permute.xlu0 0
        %501 = vperm.xlu0 %500, %v406
        %v502 = vpop.permute.xlu0 %501
        %505 = vset.pattern.permute.xlu0 0
        %506 = vperm.xlu0 %505, %v408
        %v507 = vpop.permute.xlu0 %506
        %510 = vset.pattern.permute.xlu0 0
        %511 = vperm.xlu0 %510, %v410
        %v512 = vpop.permute.xlu0 %511
        %515 = vset.pattern.permute.xlu0 0
        %516 = vperm.xlu0 %515, %v412
        %v517 = vpop.permute.xlu0 %516
        %520 = vset.pattern.permute.xlu0 0
        %521 = vperm.xlu0 %520, %v414
        %v522 = vpop.permute.xlu0 %521
        %525 = vset.pattern.permute.xlu0 0
        %526 = vperm.xlu0 %525, %v416
        %v527 = vpop.permute.xlu0 %526
        %v530 = vlaneseq
        %v531 = vshrl.u32 %v530, 7
        %v532 = vsub.s32 0, %v531
        %v533 = vrot.slane %v385, %v532
        %v535 = vmul.f32 %v452, %v533
        %v536 = vmul.f32 %v457, %v533
        %v537 = vmul.f32 %v462, %v533
        %v538 = vmul.f32 %v467, %v533
        %v539 = vmul.f32 %v472, %v533
        %v540 = vmul.f32 %v477, %v533
        %v541 = vmul.f32 %v482, %v533
        %v542 = vmul.f32 %v487, %v533
        %v543 = vmul.f32 %v492, %v533
        %v544 = vmul.f32 %v497, %v533
        %v545 = vmul.f32 %v502, %v533
        %v546 = vmul.f32 %v507, %v533
        %v547 = vmul.f32 %v512, %v533
        %v548 = vmul.f32 %v517, %v533
        %v549 = vmul.f32 %v522, %v533
        %v550 = vmul.f32 %v527, %v533
        %v551 = vadd.f32 %v535, 0.0
        %v552 = vadd.f32 %v536, 0.0
        %v553 = vadd.f32 %v537, 0.0
        %v554 = vadd.f32 %v538, 0.0
        %v555 = vadd.f32 %v539, 0.0
        %v556 = vadd.f32 %v540, 0.0
        %v557 = vadd.f32 %v541, 0.0
        %v558 = vadd.f32 %v542, 0.0
        %v559 = vadd.f32 %v543, 0.0
        %v560 = vadd.f32 %v544, 0.0
        %v561 = vadd.f32 %v545, 0.0
        %v562 = vadd.f32 %v546, 0.0
        %v563 = vadd.f32 %v547, 0.0
        %v564 = vadd.f32 %v548, 0.0
        %v565 = vadd.f32 %v549, 0.0
        %v566 = vadd.f32 %v550, 0.0
        %568 = vset.pattern.permute.xlu0 0
        %569 = vperm.xlu0 %568, %v418
        %v570 = vpop.permute.xlu0 %569
        %573 = vset.pattern.permute.xlu0 0
        %574 = vperm.xlu0 %573, %v420
        %v575 = vpop.permute.xlu0 %574
        %578 = vset.pattern.permute.xlu0 0
        %579 = vperm.xlu0 %578, %v422
        %v580 = vpop.permute.xlu0 %579
        %583 = vset.pattern.permute.xlu0 0
        %584 = vperm.xlu0 %583, %v424
        %v585 = vpop.permute.xlu0 %584
        %588 = vset.pattern.permute.xlu0 0
        %589 = vperm.xlu0 %588, %v426
        %v590 = vpop.permute.xlu0 %589
        %593 = vset.pattern.permute.xlu0 0
        %594 = vperm.xlu0 %593, %v428
        %v595 = vpop.permute.xlu0 %594
        %598 = vset.pattern.permute.xlu0 0
        %599 = vperm.xlu0 %598, %v430
        %v600 = vpop.permute.xlu0 %599
        %603 = vset.pattern.permute.xlu0 0
        %604 = vperm.xlu0 %603, %v432
        %v605 = vpop.permute.xlu0 %604
        %608 = vset.pattern.permute.xlu0 0
        %609 = vperm.xlu0 %608, %v434
        %v610 = vpop.permute.xlu0 %609
        %613 = vset.pattern.permute.xlu0 0
        %614 = vperm.xlu0 %613, %v436
        %v615 = vpop.permute.xlu0 %614
        %618 = vset.pattern.permute.xlu0 0
        %619 = vperm.xlu0 %618, %v438
        %v620 = vpop.permute.xlu0 %619
        %623 = vset.pattern.permute.xlu0 0
        %624 = vperm.xlu0 %623, %v440
        %v625 = vpop.permute.xlu0 %624
        %628 = vset.pattern.permute.xlu0 0
        %629 = vperm.xlu0 %628, %v442
        %v630 = vpop.permute.xlu0 %629
        %633 = vset.pattern.permute.xlu0 0
        %634 = vperm.xlu0 %633, %v444
        %v635 = vpop.permute.xlu0 %634
        %638 = vset.pattern.permute.xlu0 0
        %639 = vperm.xlu0 %638, %v446
        %v640 = vpop.permute.xlu0 %639
        %643 = vset.pattern.permute.xlu0 0
        %644 = vperm.xlu0 %643, %v448
        %v645 = vpop.permute.xlu0 %644
        %v647 = vmul.f32 %v570, %v533
        %v648 = vmul.f32 %v575, %v533
        %v649 = vmul.f32 %v580, %v533
        %v650 = vmul.f32 %v585, %v533
        %v651 = vmul.f32 %v590, %v533
        %v652 = vmul.f32 %v595, %v533
        %v653 = vmul.f32 %v600, %v533
        %v654 = vmul.f32 %v605, %v533
        %v655 = vmul.f32 %v610, %v533
        %v656 = vmul.f32 %v615, %v533
        %v657 = vmul.f32 %v620, %v533
        %v658 = vmul.f32 %v625, %v533
        %v659 = vmul.f32 %v630, %v533
        %v660 = vmul.f32 %v635, %v533
        %v661 = vmul.f32 %v640, %v533
        %v662 = vmul.f32 %v645, %v533
        %v663 = vadd.f32 %v647, 0.0
        %v664 = vadd.f32 %v648, 0.0
        %v665 = vadd.f32 %v649, 0.0
        %v666 = vadd.f32 %v650, 0.0
        %v667 = vadd.f32 %v651, 0.0
        %v668 = vadd.f32 %v652, 0.0
        %v669 = vadd.f32 %v653, 0.0
        %v670 = vadd.f32 %v654, 0.0
        %v671 = vadd.f32 %v655, 0.0
        %v672 = vadd.f32 %v656, 0.0
        %v673 = vadd.f32 %v657, 0.0
        %v674 = vadd.f32 %v658, 0.0
        %v675 = vadd.f32 %v659, 0.0
        %v676 = vadd.f32 %v660, 0.0
        %v677 = vadd.f32 %v661, 0.0
        %v678 = vadd.f32 %v662, 0.0
        %s679 = scalar_lea.vmem %s1, 1
        %v680 = vld [vmem:[%s679] sm:$0x1]
        %s681 = scalar_lea.vmem %s383, 2
        %v682 = vld [vmem:[%s681] ss:$2 sm:$0xff]
        %s683 = scalar_lea.vmem %s383, 26
        %v684 = vld [vmem:[%s683] ss:$2 sm:$0xff]
        %s685 = scalar_lea.vmem %s383, 50
        %v686 = vld [vmem:[%s685] ss:$2 sm:$0xff]
        %s687 = scalar_lea.vmem %s383, 74
        %v688 = vld [vmem:[%s687] ss:$2 sm:$0xff]
        %s689 = scalar_lea.vmem %s383, 98
        %v690 = vld [vmem:[%s689] ss:$2 sm:$0xff]
        %s691 = scalar_lea.vmem %s383, 122
        %v692 = vld [vmem:[%s691] ss:$2 sm:$0xff]
        %s693 = scalar_lea.vmem %s383, 146
        %v694 = vld [vmem:[%s693] ss:$2 sm:$0xff]
        %s695 = scalar_lea.vmem %s383, 170
        %v696 = vld [vmem:[%s695] ss:$2 sm:$0xff]
        %s697 = scalar_lea.vmem %s383, 194
        %v698 = vld [vmem:[%s697] ss:$2 sm:$0xff]
        %s699 = scalar_lea.vmem %s383, 218
        %v700 = vld [vmem:[%s699] ss:$2 sm:$0xff]
        %s701 = scalar_lea.vmem %s383, 242
        %v702 = vld [vmem:[%s701] ss:$2 sm:$0xff]
        %s703 = scalar_lea.vmem %s383, 266
        %v704 = vld [vmem:[%s703] ss:$2 sm:$0xff]
        %s705 = scalar_lea.vmem %s383, 290
        %v706 = vld [vmem:[%s705] ss:$2 sm:$0xff]
        %s707 = scalar_lea.vmem %s383, 314
        %v708 = vld [vmem:[%s707] ss:$2 sm:$0xff]
        %s709 = scalar_lea.vmem %s383, 338
        %v710 = vld [vmem:[%s709] ss:$2 sm:$0xff]
        %s711 = scalar_lea.vmem %s383, 362
        %v712 = vld [vmem:[%s711] ss:$2 sm:$0xff]
        %v714 = vlaneseq
        %v715 = vshrl.u32 %v714, 7
        %v716 = vsub.s32 0, %v715
        %v717 = vrot.slane %v680, %v716
        %v719 = vmul.f32 %v570, %v717
        %v720 = vmul.f32 %v575, %v717
        %v721 = vmul.f32 %v580, %v717
        %v722 = vmul.f32 %v585, %v717
        %v723 = vmul.f32 %v590, %v717
        %v724 = vmul.f32 %v595, %v717
        %v725 = vmul.f32 %v600, %v717
        %v726 = vmul.f32 %v605, %v717
        %v727 = vmul.f32 %v610, %v717
        %v728 = vmul.f32 %v615, %v717
        %v729 = vmul.f32 %v620, %v717
        %v730 = vmul.f32 %v625, %v717
        %v731 = vmul.f32 %v630, %v717
        %v732 = vmul.f32 %v635, %v717
        %v733 = vmul.f32 %v640, %v717
        %v734 = vmul.f32 %v645, %v717
        %v735 = vadd.f32 %v551, %v719
        %v736 = vadd.f32 %v552, %v720
        %v737 = vadd.f32 %v553, %v721
        %v738 = vadd.f32 %v554, %v722
        %v739 = vadd.f32 %v555, %v723
        %v740 = vadd.f32 %v556, %v724
        %v741 = vadd.f32 %v557, %v725
        %v742 = vadd.f32 %v558, %v726
        %v743 = vadd.f32 %v559, %v727
        %v744 = vadd.f32 %v560, %v728
        %v745 = vadd.f32 %v561, %v729
        %v746 = vadd.f32 %v562, %v730
        %v747 = vadd.f32 %v563, %v731
        %v748 = vadd.f32 %v564, %v732
        %v749 = vadd.f32 %v565, %v733
        %v750 = vadd.f32 %v566, %v734
        %752 = vset.pattern.permute.xlu0 0
        %753 = vperm.xlu0 %752, %v682
        %v754 = vpop.permute.xlu0 %753
        %757 = vset.pattern.permute.xlu0 0
        %758 = vperm.xlu0 %757, %v684
        %v759 = vpop.permute.xlu0 %758
        %762 = vset.pattern.permute.xlu0 0
        %763 = vperm.xlu0 %762, %v686
        %v764 = vpop.permute.xlu0 %763
        %767 = vset.pattern.permute.xlu0 0
        %768 = vperm.xlu0 %767, %v688
        %v769 = vpop.permute.xlu0 %768
        %772 = vset.pattern.permute.xlu0 0
        %773 = vperm.xlu0 %772, %v690
        %v774 = vpop.permute.xlu0 %773
        %777 = vset.pattern.permute.xlu0 0
        %778 = vperm.xlu0 %777, %v692
        %v779 = vpop.permute.xlu0 %778
        %782 = vset.pattern.permute.xlu0 0
        %783 = vperm.xlu0 %782, %v694
        %v784 = vpop.permute.xlu0 %783
        %787 = vset.pattern.permute.xlu0 0
        %788 = vperm.xlu0 %787, %v696
        %v789 = vpop.permute.xlu0 %788
        %792 = vset.pattern.permute.xlu0 0
        %793 = vperm.xlu0 %792, %v698
        %v794 = vpop.permute.xlu0 %793
        %797 = vset.pattern.permute.xlu0 0
        %798 = vperm.xlu0 %797, %v700
        %v799 = vpop.permute.xlu0 %798
        %802 = vset.pattern.permute.xlu0 0
        %803 = vperm.xlu0 %802, %v702
        %v804 = vpop.permute.xlu0 %803
        %807 = vset.pattern.permute.xlu0 0
        %808 = vperm.xlu0 %807, %v704
        %v809 = vpop.permute.xlu0 %808
        %812 = vset.pattern.permute.xlu0 0
        %813 = vperm.xlu0 %812, %v706
        %v814 = vpop.permute.xlu0 %813
        %817 = vset.pattern.permute.xlu0 0
        %818 = vperm.xlu0 %817, %v708
        %v819 = vpop.permute.xlu0 %818
        %822 = vset.pattern.permute.xlu0 0
        %823 = vperm.xlu0 %822, %v710
        %v824 = vpop.permute.xlu0 %823
        %827 = vset.pattern.permute.xlu0 0
        %828 = vperm.xlu0 %827, %v712
        %v829 = vpop.permute.xlu0 %828
        %v831 = vmul.f32 %v754, %v717
        %v832 = vmul.f32 %v759, %v717
        %v833 = vmul.f32 %v764, %v717
        %v834 = vmul.f32 %v769, %v717
        %v835 = vmul.f32 %v774, %v717
        %v836 = vmul.f32 %v779, %v717
        %v837 = vmul.f32 %v784, %v717
        %v838 = vmul.f32 %v789, %v717
        %v839 = vmul.f32 %v794, %v717
        %v840 = vmul.f32 %v799, %v717
        %v841 = vmul.f32 %v804, %v717
        %v842 = vmul.f32 %v809, %v717
        %v843 = vmul.f32 %v814, %v717
        %v844 = vmul.f32 %v819, %v717
        %v845 = vmul.f32 %v824, %v717
        %v846 = vmul.f32 %v829, %v717
        %v847 = vadd.f32 %v663, %v831
        %v848 = vadd.f32 %v664, %v832
        %v849 = vadd.f32 %v665, %v833
        %v850 = vadd.f32 %v666, %v834
        %v851 = vadd.f32 %v667, %v835
        %v852 = vadd.f32 %v668, %v836
        %v853 = vadd.f32 %v669, %v837
        %v854 = vadd.f32 %v670, %v838
        %v855 = vadd.f32 %v671, %v839
        %v856 = vadd.f32 %v672, %v840
        %v857 = vadd.f32 %v673, %v841
        %v858 = vadd.f32 %v674, %v842
        %v859 = vadd.f32 %v675, %v843
        %v860 = vadd.f32 %v676, %v844
        %v861 = vadd.f32 %v677, %v845
        %v862 = vadd.f32 %v678, %v846
        %s863 = scalar_lea.vmem %s1, 2
        %v864 = vld [vmem:[%s863] sm:$0x1]
        %s865 = scalar_lea.vmem %s383, 3
        %v866 = vld [vmem:[%s865] ss:$2 sm:$0xff]
        %s867 = scalar_lea.vmem %s383, 27
        %v868 = vld [vmem:[%s867] ss:$2 sm:$0xff]
        %s869 = scalar_lea.vmem %s383, 51
        %v870 = vld [vmem:[%s869] ss:$2 sm:$0xff]
        %s871 = scalar_lea.vmem %s383, 75
        %v872 = vld [vmem:[%s871] ss:$2 sm:$0xff]
        %s873 = scalar_lea.vmem %s383, 99
        %v874 = vld [vmem:[%s873] ss:$2 sm:$0xff]
        %s875 = scalar_lea.vmem %s383, 123
        %v876 = vld [vmem:[%s875] ss:$2 sm:$0xff]
        %s877 = scalar_lea.vmem %s383, 147
        %v878 = vld [vmem:[%s877] ss:$2 sm:$0xff]
        %s879 = scalar_lea.vmem %s383, 171
        %v880 = vld [vmem:[%s879] ss:$2 sm:$0xff]
        %s881 = scalar_lea.vmem %s383, 195
        %v882 = vld [vmem:[%s881] ss:$2 sm:$0xff]
        %s883 = scalar_lea.vmem %s383, 219
        %v884 = vld [vmem:[%s883] ss:$2 sm:$0xff]
        %s885 = scalar_lea.vmem %s383, 243
        %v886 = vld [vmem:[%s885] ss:$2 sm:$0xff]
        %s887 = scalar_lea.vmem %s383, 267
        %v888 = vld [vmem:[%s887] ss:$2 sm:$0xff]
        %s889 = scalar_lea.vmem %s383, 291
        %v890 = vld [vmem:[%s889] ss:$2 sm:$0xff]
        %s891 = scalar_lea.vmem %s383, 315
        %v892 = vld [vmem:[%s891] ss:$2 sm:$0xff]
        %s893 = scalar_lea.vmem %s383, 339
        %v894 = vld [vmem:[%s893] ss:$2 sm:$0xff]
        %s895 = scalar_lea.vmem %s383, 363
        %v896 = vld [vmem:[%s895] ss:$2 sm:$0xff]
        %v898 = vlaneseq
        %v899 = vshrl.u32 %v898, 7
        %v900 = vsub.s32 0, %v899
        %v901 = vrot.slane %v864, %v900
        %v903 = vmul.f32 %v754, %v901
        %v904 = vmul.f32 %v759, %v901
        %v905 = vmul.f32 %v764, %v901
        %v906 = vmul.f32 %v769, %v901
        %v907 = vmul.f32 %v774, %v901
        %v908 = vmul.f32 %v779, %v901
        %v909 = vmul.f32 %v784, %v901
        %v910 = vmul.f32 %v789, %v901
        %v911 = vmul.f32 %v794, %v901
        %v912 = vmul.f32 %v799, %v901
        %v913 = vmul.f32 %v804, %v901
        %v914 = vmul.f32 %v809, %v901
        %v915 = vmul.f32 %v814, %v901
        %v916 = vmul.f32 %v819, %v901
        %v917 = vmul.f32 %v824, %v901
        %v918 = vmul.f32 %v829, %v901
        %v919 = vadd.f32 %v735, %v903
        %v920 = vadd.f32 %v736, %v904
        %v921 = vadd.f32 %v737, %v905
        %v922 = vadd.f32 %v738, %v906
        %v923 = vadd.f32 %v739, %v907
        %v924 = vadd.f32 %v740, %v908
        %v925 = vadd.f32 %v741, %v909
        %v926 = vadd.f32 %v742, %v910
        %v927 = vadd.f32 %v743, %v911
        %v928 = vadd.f32 %v744, %v912
        %v929 = vadd.f32 %v745, %v913
        %v930 = vadd.f32 %v746, %v914
        %v931 = vadd.f32 %v747, %v915
        %v932 = vadd.f32 %v748, %v916
        %v933 = vadd.f32 %v749, %v917
        %v934 = vadd.f32 %v750, %v918
        %936 = vset.pattern.permute.xlu0 0
        %937 = vperm.xlu0 %936, %v866
        %v938 = vpop.permute.xlu0 %937
        %941 = vset.pattern.permute.xlu0 0
        %942 = vperm.xlu0 %941, %v868
        %v943 = vpop.permute.xlu0 %942
        %946 = vset.pattern.permute.xlu0 0
        %947 = vperm.xlu0 %946, %v870
        %v948 = vpop.permute.xlu0 %947
        %951 = vset.pattern.permute.xlu0 0
        %952 = vperm.xlu0 %951, %v872
        %v953 = vpop.permute.xlu0 %952
        %956 = vset.pattern.permute.xlu0 0
        %957 = vperm.xlu0 %956, %v874
        %v958 = vpop.permute.xlu0 %957
        %961 = vset.pattern.permute.xlu0 0
        %962 = vperm.xlu0 %961, %v876
        %v963 = vpop.permute.xlu0 %962
        %966 = vset.pattern.permute.xlu0 0
        %967 = vperm.xlu0 %966, %v878
        %v968 = vpop.permute.xlu0 %967
        %971 = vset.pattern.permute.xlu0 0
        %972 = vperm.xlu0 %971, %v880
        %v973 = vpop.permute.xlu0 %972
        %976 = vset.pattern.permute.xlu0 0
        %977 = vperm.xlu0 %976, %v882
        %v978 = vpop.permute.xlu0 %977
        %981 = vset.pattern.permute.xlu0 0
        %982 = vperm.xlu0 %981, %v884
        %v983 = vpop.permute.xlu0 %982
        %986 = vset.pattern.permute.xlu0 0
        %987 = vperm.xlu0 %986, %v886
        %v988 = vpop.permute.xlu0 %987
        %991 = vset.pattern.permute.xlu0 0
        %992 = vperm.xlu0 %991, %v888
        %v993 = vpop.permute.xlu0 %992
        %996 = vset.pattern.permute.xlu0 0
        %997 = vperm.xlu0 %996, %v890
        %v998 = vpop.permute.xlu0 %997
        %1001 = vset.pattern.permute.xlu0 0
        %1002 = vperm.xlu0 %1001, %v892
        %v1003 = vpop.permute.xlu0 %1002
        %1006 = vset.pattern.permute.xlu0 0
        %1007 = vperm.xlu0 %1006, %v894
        %v1008 = vpop.permute.xlu0 %1007
        %1011 = vset.pattern.permute.xlu0 0
        %1012 = vperm.xlu0 %1011, %v896
        %v1013 = vpop.permute.xlu0 %1012
        %v1015 = vmul.f32 %v938, %v901
        %v1016 = vmul.f32 %v943, %v901
        %v1017 = vmul.f32 %v948, %v901
        %v1018 = vmul.f32 %v953, %v901
        %v1019 = vmul.f32 %v958, %v901
        %v1020 = vmul.f32 %v963, %v901
        %v1021 = vmul.f32 %v968, %v901
        %v1022 = vmul.f32 %v973, %v901
        %v1023 = vmul.f32 %v978, %v901
        %v1024 = vmul.f32 %v983, %v901
        %v1025 = vmul.f32 %v988, %v901
        %v1026 = vmul.f32 %v993, %v901
        %v1027 = vmul.f32 %v998, %v901
        %v1028 = vmul.f32 %v1003, %v901
        %v1029 = vmul.f32 %v1008, %v901
        %v1030 = vmul.f32 %v1013, %v901
        %v1031 = vadd.f32 %v847, %v1015
        %v1032 = vadd.f32 %v848, %v1016
        %v1033 = vadd.f32 %v849, %v1017
        %v1034 = vadd.f32 %v850, %v1018
        %v1035 = vadd.f32 %v851, %v1019
        %v1036 = vadd.f32 %v852, %v1020
        %v1037 = vadd.f32 %v853, %v1021
        %v1038 = vadd.f32 %v854, %v1022
        %v1039 = vadd.f32 %v855, %v1023
        %v1040 = vadd.f32 %v856, %v1024
        %v1041 = vadd.f32 %v857, %v1025
        %v1042 = vadd.f32 %v858, %v1026
        %v1043 = vadd.f32 %v859, %v1027
        %v1044 = vadd.f32 %v860, %v1028
        %v1045 = vadd.f32 %v861, %v1029
        %v1046 = vadd.f32 %v862, %v1030
        %s1047 = scalar_lea.vmem %s1, 3
        %v1048 = vld [vmem:[%s1047] sm:$0x1]
        %s1049 = scalar_lea.vmem %s383, 24
        %v1050 = vld [vmem:[%s1049] ss:$2 sm:$0xff]
        %s1051 = scalar_lea.vmem %s1049, 24
        %v1052 = vld [vmem:[%s1051] ss:$2 sm:$0xff]
        %s1053 = scalar_lea.vmem %s1049, 48
        %v1054 = vld [vmem:[%s1053] ss:$2 sm:$0xff]
        %s1055 = scalar_lea.vmem %s1049, 72
        %v1056 = vld [vmem:[%s1055] ss:$2 sm:$0xff]
        %s1057 = scalar_lea.vmem %s1049, 96
        %v1058 = vld [vmem:[%s1057] ss:$2 sm:$0xff]
        %s1059 = scalar_lea.vmem %s1049, 120
        %v1060 = vld [vmem:[%s1059] ss:$2 sm:$0xff]
        %s1061 = scalar_lea.vmem %s1049, 144
        %v1062 = vld [vmem:[%s1061] ss:$2 sm:$0xff]
        %s1063 = scalar_lea.vmem %s1049, 168
        %v1064 = vld [vmem:[%s1063] ss:$2 sm:$0xff]
        %s1065 = scalar_lea.vmem %s1049, 192
        %v1066 = vld [vmem:[%s1065] ss:$2 sm:$0xff]
        %s1067 = scalar_lea.vmem %s1049, 216
        %v1068 = vld [vmem:[%s1067] ss:$2 sm:$0xff]
        %s1069 = scalar_lea.vmem %s1049, 240
        %v1070 = vld [vmem:[%s1069] ss:$2 sm:$0xff]
        %s1071 = scalar_lea.vmem %s1049, 264
        %v1072 = vld [vmem:[%s1071] ss:$2 sm:$0xff]
        %s1073 = scalar_lea.vmem %s1049, 288
        %v1074 = vld [vmem:[%s1073] ss:$2 sm:$0xff]
        %s1075 = scalar_lea.vmem %s1049, 312
        %v1076 = vld [vmem:[%s1075] ss:$2 sm:$0xff]
        %s1077 = scalar_lea.vmem %s1049, 336
        %v1078 = vld [vmem:[%s1077] ss:$2 sm:$0xff]
        %s1079 = scalar_lea.vmem %s1049, 360
        %v1080 = vld [vmem:[%s1079] ss:$2 sm:$0xff]
        %s1081 = scalar_lea.vmem %s1049, 1
        %v1082 = vld [vmem:[%s1081] ss:$2 sm:$0xff]
        %s1083 = scalar_lea.vmem %s1049, 25
        %v1084 = vld [vmem:[%s1083] ss:$2 sm:$0xff]
        %s1085 = scalar_lea.vmem %s1049, 49
        %v1086 = vld [vmem:[%s1085] ss:$2 sm:$0xff]
        %s1087 = scalar_lea.vmem %s1049, 73
        %v1088 = vld [vmem:[%s1087] ss:$2 sm:$0xff]
        %s1089 = scalar_lea.vmem %s1049, 97
        %v1090 = vld [vmem:[%s1089] ss:$2 sm:$0xff]
        %s1091 = scalar_lea.vmem %s1049, 121
        %v1092 = vld [vmem:[%s1091] ss:$2 sm:$0xff]
        %s1093 = scalar_lea.vmem %s1049, 145
        %v1094 = vld [vmem:[%s1093] ss:$2 sm:$0xff]
        %s1095 = scalar_lea.vmem %s1049, 169
        %v1096 = vld [vmem:[%s1095] ss:$2 sm:$0xff]
        %s1097 = scalar_lea.vmem %s1049, 193
        %v1098 = vld [vmem:[%s1097] ss:$2 sm:$0xff]
        %s1099 = scalar_lea.vmem %s1049, 217
        %v1100 = vld [vmem:[%s1099] ss:$2 sm:$0xff]
        %s1101 = scalar_lea.vmem %s1049, 241
        %v1102 = vld [vmem:[%s1101] ss:$2 sm:$0xff]
        %s1103 = scalar_lea.vmem %s1049, 265
        %v1104 = vld [vmem:[%s1103] ss:$2 sm:$0xff]
        %s1105 = scalar_lea.vmem %s1049, 289
        %v1106 = vld [vmem:[%s1105] ss:$2 sm:$0xff]
        %s1107 = scalar_lea.vmem %s1049, 313
        %v1108 = vld [vmem:[%s1107] ss:$2 sm:$0xff]
        %s1109 = scalar_lea.vmem %s1049, 337
        %v1110 = vld [vmem:[%s1109] ss:$2 sm:$0xff]
        %s1111 = scalar_lea.vmem %s1049, 361
        %v1112 = vld [vmem:[%s1111] ss:$2 sm:$0xff]
        %1114 = vset.pattern.permute.xlu0 0
        %1115 = vperm.xlu0 %1114, %v1050
        %v1116 = vpop.permute.xlu0 %1115
        %1119 = vset.pattern.permute.xlu0 0
        %1120 = vperm.xlu0 %1119, %v1052
        %v1121 = vpop.permute.xlu0 %1120
        %1124 = vset.pattern.permute.xlu0 0
        %1125 = vperm.xlu0 %1124, %v1054
        %v1126 = vpop.permute.xlu0 %1125
        %1129 = vset.pattern.permute.xlu0 0
        %1130 = vperm.xlu0 %1129, %v1056
        %v1131 = vpop.permute.xlu0 %1130
        %1134 = vset.pattern.permute.xlu0 0
        %1135 = vperm.xlu0 %1134, %v1058
        %v1136 = vpop.permute.xlu0 %1135
        %1139 = vset.pattern.permute.xlu0 0
        %1140 = vperm.xlu0 %1139, %v1060
        %v1141 = vpop.permute.xlu0 %1140
        %1144 = vset.pattern.permute.xlu0 0
        %1145 = vperm.xlu0 %1144, %v1062
        %v1146 = vpop.permute.xlu0 %1145
        %1149 = vset.pattern.permute.xlu0 0
        %1150 = vperm.xlu0 %1149, %v1064
        %v1151 = vpop.permute.xlu0 %1150
        %1154 = vset.pattern.permute.xlu0 0
        %1155 = vperm.xlu0 %1154, %v1066
        %v1156 = vpop.permute.xlu0 %1155
        %1159 = vset.pattern.permute.xlu0 0
        %1160 = vperm.xlu0 %1159, %v1068
        %v1161 = vpop.permute.xlu0 %1160
        %1164 = vset.pattern.permute.xlu0 0
        %1165 = vperm.xlu0 %1164, %v1070
        %v1166 = vpop.permute.xlu0 %1165
        %1169 = vset.pattern.permute.xlu0 0
        %1170 = vperm.xlu0 %1169, %v1072
        %v1171 = vpop.permute.xlu0 %1170
        %1174 = vset.pattern.permute.xlu0 0
        %1175 = vperm.xlu0 %1174, %v1074
        %v1176 = vpop.permute.xlu0 %1175
        %1179 = vset.pattern.permute.xlu0 0
        %1180 = vperm.xlu0 %1179, %v1076
        %v1181 = vpop.permute.xlu0 %1180
        %1184 = vset.pattern.permute.xlu0 0
        %1185 = vperm.xlu0 %1184, %v1078
        %v1186 = vpop.permute.xlu0 %1185
        %1189 = vset.pattern.permute.xlu0 0
        %1190 = vperm.xlu0 %1189, %v1080
        %v1191 = vpop.permute.xlu0 %1190
        %v1194 = vlaneseq
        %v1195 = vshrl.u32 %v1194, 7
        %v1196 = vsub.s32 0, %v1195
        %v1197 = vrot.slane %v1048, %v1196
        %v1199 = vmul.f32 %v1116, %v1197
        %v1200 = vmul.f32 %v1121, %v1197
        %v1201 = vmul.f32 %v1126, %v1197
        %v1202 = vmul.f32 %v1131, %v1197
        %v1203 = vmul.f32 %v1136, %v1197
        %v1204 = vmul.f32 %v1141, %v1197
        %v1205 = vmul.f32 %v1146, %v1197
        %v1206 = vmul.f32 %v1151, %v1197
        %v1207 = vmul.f32 %v1156, %v1197
        %v1208 = vmul.f32 %v1161, %v1197
        %v1209 = vmul.f32 %v1166, %v1197
        %v1210 = vmul.f32 %v1171, %v1197
        %v1211 = vmul.f32 %v1176, %v1197
        %v1212 = vmul.f32 %v1181, %v1197
        %v1213 = vmul.f32 %v1186, %v1197
        %v1214 = vmul.f32 %v1191, %v1197
        %v1215 = vadd.f32 %v919, %v1199
        %v1216 = vadd.f32 %v920, %v1200
        %v1217 = vadd.f32 %v921, %v1201
        %v1218 = vadd.f32 %v922, %v1202
        %v1219 = vadd.f32 %v923, %v1203
        %v1220 = vadd.f32 %v924, %v1204
        %v1221 = vadd.f32 %v925, %v1205
        %v1222 = vadd.f32 %v926, %v1206
        %v1223 = vadd.f32 %v927, %v1207
        %v1224 = vadd.f32 %v928, %v1208
        %v1225 = vadd.f32 %v929, %v1209
        %v1226 = vadd.f32 %v930, %v1210
        %v1227 = vadd.f32 %v931, %v1211
        %v1228 = vadd.f32 %v932, %v1212
        %v1229 = vadd.f32 %v933, %v1213
        %v1230 = vadd.f32 %v934, %v1214
        %1232 = vset.pattern.permute.xlu0 0
        %1233 = vperm.xlu0 %1232, %v1082
        %v1234 = vpop.permute.xlu0 %1233
        %1237 = vset.pattern.permute.xlu0 0
        %1238 = vperm.xlu0 %1237, %v1084
        %v1239 = vpop.permute.xlu0 %1238
        %1242 = vset.pattern.permute.xlu0 0
        %1243 = vperm.xlu0 %1242, %v1086
        %v1244 = vpop.permute.xlu0 %1243
        %1247 = vset.pattern.permute.xlu0 0
        %1248 = vperm.xlu0 %1247, %v1088
        %v1249 = vpop.permute.xlu0 %1248
        %1252 = vset.pattern.permute.xlu0 0
        %1253 = vperm.xlu0 %1252, %v1090
        %v1254 = vpop.permute.xlu0 %1253
        %1257 = vset.pattern.permute.xlu0 0
        %1258 = vperm.xlu0 %1257, %v1092
        %v1259 = vpop.permute.xlu0 %1258
        %1262 = vset.pattern.permute.xlu0 0
        %1263 = vperm.xlu0 %1262, %v1094
        %v1264 = vpop.permute.xlu0 %1263
        %1267 = vset.pattern.permute.xlu0 0
        %1268 = vperm.xlu0 %1267, %v1096
        %v1269 = vpop.permute.xlu0 %1268
        %1272 = vset.pattern.permute.xlu0 0
        %1273 = vperm.xlu0 %1272, %v1098
        %v1274 = vpop.permute.xlu0 %1273
        %1277 = vset.pattern.permute.xlu0 0
        %1278 = vperm.xlu0 %1277, %v1100
        %v1279 = vpop.permute.xlu0 %1278
        %1282 = vset.pattern.permute.xlu0 0
        %1283 = vperm.xlu0 %1282, %v1102
        %v1284 = vpop.permute.xlu0 %1283
        %1287 = vset.pattern.permute.xlu0 0
        %1288 = vperm.xlu0 %1287, %v1104
        %v1289 = vpop.permute.xlu0 %1288
        %1292 = vset.pattern.permute.xlu0 0
        %1293 = vperm.xlu0 %1292, %v1106
        %v1294 = vpop.permute.xlu0 %1293
        %1297 = vset.pattern.permute.xlu0 0
        %1298 = vperm.xlu0 %1297, %v1108
        %v1299 = vpop.permute.xlu0 %1298
        %1302 = vset.pattern.permute.xlu0 0
        %1303 = vperm.xlu0 %1302, %v1110
        %v1304 = vpop.permute.xlu0 %1303
        %1307 = vset.pattern.permute.xlu0 0
        %1308 = vperm.xlu0 %1307, %v1112
        %v1309 = vpop.permute.xlu0 %1308
        %v1311 = vmul.f32 %v1234, %v1197
        %v1312 = vmul.f32 %v1239, %v1197
        %v1313 = vmul.f32 %v1244, %v1197
        %v1314 = vmul.f32 %v1249, %v1197
        %v1315 = vmul.f32 %v1254, %v1197
        %v1316 = vmul.f32 %v1259, %v1197
        %v1317 = vmul.f32 %v1264, %v1197
        %v1318 = vmul.f32 %v1269, %v1197
        %v1319 = vmul.f32 %v1274, %v1197
        %v1320 = vmul.f32 %v1279, %v1197
        %v1321 = vmul.f32 %v1284, %v1197
        %v1322 = vmul.f32 %v1289, %v1197
        %v1323 = vmul.f32 %v1294, %v1197
        %v1324 = vmul.f32 %v1299, %v1197
        %v1325 = vmul.f32 %v1304, %v1197
        %v1326 = vmul.f32 %v1309, %v1197
        %v1327 = vadd.f32 %v1031, %v1311
        %v1328 = vadd.f32 %v1032, %v1312
        %v1329 = vadd.f32 %v1033, %v1313
        %v1330 = vadd.f32 %v1034, %v1314
        %v1331 = vadd.f32 %v1035, %v1315
        %v1332 = vadd.f32 %v1036, %v1316
        %v1333 = vadd.f32 %v1037, %v1317
        %v1334 = vadd.f32 %v1038, %v1318
        %v1335 = vadd.f32 %v1039, %v1319
        %v1336 = vadd.f32 %v1040, %v1320
        %v1337 = vadd.f32 %v1041, %v1321
        %v1338 = vadd.f32 %v1042, %v1322
        %v1339 = vadd.f32 %v1043, %v1323
        %v1340 = vadd.f32 %v1044, %v1324
        %v1341 = vadd.f32 %v1045, %v1325
        %v1342 = vadd.f32 %v1046, %v1326
        %s1343 = scalar_lea.vmem %s1, 4
        %v1344 = vld [vmem:[%s1343] sm:$0x1]
        %s1345 = scalar_lea.vmem %s1049, 2
        %v1346 = vld [vmem:[%s1345] ss:$2 sm:$0xff]
        %s1347 = scalar_lea.vmem %s1049, 26
        %v1348 = vld [vmem:[%s1347] ss:$2 sm:$0xff]
        %s1349 = scalar_lea.vmem %s1049, 50
        %v1350 = vld [vmem:[%s1349] ss:$2 sm:$0xff]
        %s1351 = scalar_lea.vmem %s1049, 74
        %v1352 = vld [vmem:[%s1351] ss:$2 sm:$0xff]
        %s1353 = scalar_lea.vmem %s1049, 98
        %v1354 = vld [vmem:[%s1353] ss:$2 sm:$0xff]
        %s1355 = scalar_lea.vmem %s1049, 122
        %v1356 = vld [vmem:[%s1355] ss:$2 sm:$0xff]
        %s1357 = scalar_lea.vmem %s1049, 146
        %v1358 = vld [vmem:[%s1357] ss:$2 sm:$0xff]
        %s1359 = scalar_lea.vmem %s1049, 170
        %v1360 = vld [vmem:[%s1359] ss:$2 sm:$0xff]
        %s1361 = scalar_lea.vmem %s1049, 194
        %v1362 = vld [vmem:[%s1361] ss:$2 sm:$0xff]
        %s1363 = scalar_lea.vmem %s1049, 218
        %v1364 = vld [vmem:[%s1363] ss:$2 sm:$0xff]
        %s1365 = scalar_lea.vmem %s1049, 242
        %v1366 = vld [vmem:[%s1365] ss:$2 sm:$0xff]
        %s1367 = scalar_lea.vmem %s1049, 266
        %v1368 = vld [vmem:[%s1367] ss:$2 sm:$0xff]
        %s1369 = scalar_lea.vmem %s1049, 290
        %v1370 = vld [vmem:[%s1369] ss:$2 sm:$0xff]
        %s1371 = scalar_lea.vmem %s1049, 314
        %v1372 = vld [vmem:[%s1371] ss:$2 sm:$0xff]
        %s1373 = scalar_lea.vmem %s1049, 338
        %v1374 = vld [vmem:[%s1373] ss:$2 sm:$0xff]
        %s1375 = scalar_lea.vmem %s1049, 362
        %v1376 = vld [vmem:[%s1375] ss:$2 sm:$0xff]
        %v1378 = vlaneseq
        %v1379 = vshrl.u32 %v1378, 7
        %v1380 = vsub.s32 0, %v1379
        %v1381 = vrot.slane %v1344, %v1380
        %v1383 = vmul.f32 %v1234, %v1381
        %v1384 = vmul.f32 %v1239, %v1381
        %v1385 = vmul.f32 %v1244, %v1381
        %v1386 = vmul.f32 %v1249, %v1381
        %v1387 = vmul.f32 %v1254, %v1381
        %v1388 = vmul.f32 %v1259, %v1381
        %v1389 = vmul.f32 %v1264, %v1381
        %v1390 = vmul.f32 %v1269, %v1381
        %v1391 = vmul.f32 %v1274, %v1381
        %v1392 = vmul.f32 %v1279, %v1381
        %v1393 = vmul.f32 %v1284, %v1381
        %v1394 = vmul.f32 %v1289, %v1381
        %v1395 = vmul.f32 %v1294, %v1381
        %v1396 = vmul.f32 %v1299, %v1381
        %v1397 = vmul.f32 %v1304, %v1381
        %v1398 = vmul.f32 %v1309, %v1381
        %v1399 = vadd.f32 %v1215, %v1383
        %v1400 = vadd.f32 %v1216, %v1384
        %v1401 = vadd.f32 %v1217, %v1385
        %v1402 = vadd.f32 %v1218, %v1386
        %v1403 = vadd.f32 %v1219, %v1387
        %v1404 = vadd.f32 %v1220, %v1388
        %v1405 = vadd.f32 %v1221, %v1389
        %v1406 = vadd.f32 %v1222, %v1390
        %v1407 = vadd.f32 %v1223, %v1391
        %v1408 = vadd.f32 %v1224, %v1392
        %v1409 = vadd.f32 %v1225, %v1393
        %v1410 = vadd.f32 %v1226, %v1394
        %v1411 = vadd.f32 %v1227, %v1395
        %v1412 = vadd.f32 %v1228, %v1396
        %v1413 = vadd.f32 %v1229, %v1397
        %v1414 = vadd.f32 %v1230, %v1398
        %1416 = vset.pattern.permute.xlu0 0
        %1417 = vperm.xlu0 %1416, %v1346
        %v1418 = vpop.permute.xlu0 %1417
        %1421 = vset.pattern.permute.xlu0 0
        %1422 = vperm.xlu0 %1421, %v1348
        %v1423 = vpop.permute.xlu0 %1422
        %1426 = vset.pattern.permute.xlu0 0
        %1427 = vperm.xlu0 %1426, %v1350
        %v1428 = vpop.permute.xlu0 %1427
        %1431 = vset.pattern.permute.xlu0 0
        %1432 = vperm.xlu0 %1431, %v1352
        %v1433 = vpop.permute.xlu0 %1432
        %1436 = vset.pattern.permute.xlu0 0
        %1437 = vperm.xlu0 %1436, %v1354
        %v1438 = vpop.permute.xlu0 %1437
        %1441 = vset.pattern.permute.xlu0 0
        %1442 = vperm.xlu0 %1441, %v1356
        %v1443 = vpop.permute.xlu0 %1442
        %1446 = vset.pattern.permute.xlu0 0
        %1447 = vperm.xlu0 %1446, %v1358
        %v1448 = vpop.permute.xlu0 %1447
        %1451 = vset.pattern.permute.xlu0 0
        %1452 = vperm.xlu0 %1451, %v1360
        %v1453 = vpop.permute.xlu0 %1452
        %1456 = vset.pattern.permute.xlu0 0
        %1457 = vperm.xlu0 %1456, %v1362
        %v1458 = vpop.permute.xlu0 %1457
        %1461 = vset.pattern.permute.xlu0 0
        %1462 = vperm.xlu0 %1461, %v1364
        %v1463 = vpop.permute.xlu0 %1462
        %1466 = vset.pattern.permute.xlu0 0
        %1467 = vperm.xlu0 %1466, %v1366
        %v1468 = vpop.permute.xlu0 %1467
        %1471 = vset.pattern.permute.xlu0 0
        %1472 = vperm.xlu0 %1471, %v1368
        %v1473 = vpop.permute.xlu0 %1472
        %1476 = vset.pattern.permute.xlu0 0
        %1477 = vperm.xlu0 %1476, %v1370
        %v1478 = vpop.permute.xlu0 %1477
        %1481 = vset.pattern.permute.xlu0 0
        %1482 = vperm.xlu0 %1481, %v1372
        %v1483 = vpop.permute.xlu0 %1482
        %1486 = vset.pattern.permute.xlu0 0
        %1487 = vperm.xlu0 %1486, %v1374
        %v1488 = vpop.permute.xlu0 %1487
        %1491 = vset.pattern.permute.xlu0 0
        %1492 = vperm.xlu0 %1491, %v1376
        %v1493 = vpop.permute.xlu0 %1492
        %v1495 = vmul.f32 %v1418, %v1381
        %v1496 = vmul.f32 %v1423, %v1381
        %v1497 = vmul.f32 %v1428, %v1381
        %v1498 = vmul.f32 %v1433, %v1381
        %v1499 = vmul.f32 %v1438, %v1381
        %v1500 = vmul.f32 %v1443, %v1381
        %v1501 = vmul.f32 %v1448, %v1381
        %v1502 = vmul.f32 %v1453, %v1381
        %v1503 = vmul.f32 %v1458, %v1381
        %v1504 = vmul.f32 %v1463, %v1381
        %v1505 = vmul.f32 %v1468, %v1381
        %v1506 = vmul.f32 %v1473, %v1381
        %v1507 = vmul.f32 %v1478, %v1381
        %v1508 = vmul.f32 %v1483, %v1381
        %v1509 = vmul.f32 %v1488, %v1381
        %v1510 = vmul.f32 %v1493, %v1381
        %v1511 = vadd.f32 %v1327, %v1495
        %v1512 = vadd.f32 %v1328, %v1496
        %v1513 = vadd.f32 %v1329, %v1497
        %v1514 = vadd.f32 %v1330, %v1498
        %v1515 = vadd.f32 %v1331, %v1499
        %v1516 = vadd.f32 %v1332, %v1500
        %v1517 = vadd.f32 %v1333, %v1501
        %v1518 = vadd.f32 %v1334, %v1502
        %v1519 = vadd.f32 %v1335, %v1503
        %v1520 = vadd.f32 %v1336, %v1504
        %v1521 = vadd.f32 %v1337, %v1505
        %v1522 = vadd.f32 %v1338, %v1506
        %v1523 = vadd.f32 %v1339, %v1507
        %v1524 = vadd.f32 %v1340, %v1508
        %v1525 = vadd.f32 %v1341, %v1509
        %v1526 = vadd.f32 %v1342, %v1510
        %s1527 = scalar_lea.vmem %s1, 5
        %v1528 = vld [vmem:[%s1527] sm:$0x1]
        %s1529 = scalar_lea.vmem %s1049, 3
        %v1530 = vld [vmem:[%s1529] ss:$2 sm:$0xff]
        %s1531 = scalar_lea.vmem %s1049, 27
        %v1532 = vld [vmem:[%s1531] ss:$2 sm:$0xff]
        %s1533 = scalar_lea.vmem %s1049, 51
        %v1534 = vld [vmem:[%s1533] ss:$2 sm:$0xff]
        %s1535 = scalar_lea.vmem %s1049, 75
        %v1536 = vld [vmem:[%s1535] ss:$2 sm:$0xff]
        %s1537 = scalar_lea.vmem %s1049, 99
        %v1538 = vld [vmem:[%s1537] ss:$2 sm:$0xff]
        %s1539 = scalar_lea.vmem %s1049, 123
        %v1540 = vld [vmem:[%s1539] ss:$2 sm:$0xff]
        %s1541 = scalar_lea.vmem %s1049, 147
        %v1542 = vld [vmem:[%s1541] ss:$2 sm:$0xff]
        %s1543 = scalar_lea.vmem %s1049, 171
        %v1544 = vld [vmem:[%s1543] ss:$2 sm:$0xff]
        %s1545 = scalar_lea.vmem %s1049, 195
        %v1546 = vld [vmem:[%s1545] ss:$2 sm:$0xff]
        %s1547 = scalar_lea.vmem %s1049, 219
        %v1548 = vld [vmem:[%s1547] ss:$2 sm:$0xff]
        %s1549 = scalar_lea.vmem %s1049, 243
        %v1550 = vld [vmem:[%s1549] ss:$2 sm:$0xff]
        %s1551 = scalar_lea.vmem %s1049, 267
        %v1552 = vld [vmem:[%s1551] ss:$2 sm:$0xff]
        %s1553 = scalar_lea.vmem %s1049, 291
        %v1554 = vld [vmem:[%s1553] ss:$2 sm:$0xff]
        %s1555 = scalar_lea.vmem %s1049, 315
        %v1556 = vld [vmem:[%s1555] ss:$2 sm:$0xff]
        %s1557 = scalar_lea.vmem %s1049, 339
        %v1558 = vld [vmem:[%s1557] ss:$2 sm:$0xff]
        %s1559 = scalar_lea.vmem %s1049, 363
        %v1560 = vld [vmem:[%s1559] ss:$2 sm:$0xff]
        %v1562 = vlaneseq
        %v1563 = vshrl.u32 %v1562, 7
        %v1564 = vsub.s32 0, %v1563
        %v1565 = vrot.slane %v1528, %v1564
        %v1567 = vmul.f32 %v1418, %v1565
        %v1568 = vmul.f32 %v1423, %v1565
        %v1569 = vmul.f32 %v1428, %v1565
        %v1570 = vmul.f32 %v1433, %v1565
        %v1571 = vmul.f32 %v1438, %v1565
        %v1572 = vmul.f32 %v1443, %v1565
        %v1573 = vmul.f32 %v1448, %v1565
        %v1574 = vmul.f32 %v1453, %v1565
        %v1575 = vmul.f32 %v1458, %v1565
        %v1576 = vmul.f32 %v1463, %v1565
        %v1577 = vmul.f32 %v1468, %v1565
        %v1578 = vmul.f32 %v1473, %v1565
        %v1579 = vmul.f32 %v1478, %v1565
        %v1580 = vmul.f32 %v1483, %v1565
        %v1581 = vmul.f32 %v1488, %v1565
        %v1582 = vmul.f32 %v1493, %v1565
        %v1583 = vadd.f32 %v1399, %v1567
        %v1584 = vadd.f32 %v1400, %v1568
        %v1585 = vadd.f32 %v1401, %v1569
        %v1586 = vadd.f32 %v1402, %v1570
        %v1587 = vadd.f32 %v1403, %v1571
        %v1588 = vadd.f32 %v1404, %v1572
        %v1589 = vadd.f32 %v1405, %v1573
        %v1590 = vadd.f32 %v1406, %v1574
        %v1591 = vadd.f32 %v1407, %v1575
        %v1592 = vadd.f32 %v1408, %v1576
        %v1593 = vadd.f32 %v1409, %v1577
        %v1594 = vadd.f32 %v1410, %v1578
        %v1595 = vadd.f32 %v1411, %v1579
        %v1596 = vadd.f32 %v1412, %v1580
        %v1597 = vadd.f32 %v1413, %v1581
        %v1598 = vadd.f32 %v1414, %v1582
        %1600 = vset.pattern.permute.xlu0 0
        %1601 = vperm.xlu0 %1600, %v1530
        %v1602 = vpop.permute.xlu0 %1601
        %1605 = vset.pattern.permute.xlu0 0
        %1606 = vperm.xlu0 %1605, %v1532
        %v1607 = vpop.permute.xlu0 %1606
        %1610 = vset.pattern.permute.xlu0 0
        %1611 = vperm.xlu0 %1610, %v1534
        %v1612 = vpop.permute.xlu0 %1611
        %1615 = vset.pattern.permute.xlu0 0
        %1616 = vperm.xlu0 %1615, %v1536
        %v1617 = vpop.permute.xlu0 %1616
        %1620 = vset.pattern.permute.xlu0 0
        %1621 = vperm.xlu0 %1620, %v1538
        %v1622 = vpop.permute.xlu0 %1621
        %1625 = vset.pattern.permute.xlu0 0
        %1626 = vperm.xlu0 %1625, %v1540
        %v1627 = vpop.permute.xlu0 %1626
        %1630 = vset.pattern.permute.xlu0 0
        %1631 = vperm.xlu0 %1630, %v1542
        %v1632 = vpop.permute.xlu0 %1631
        %1635 = vset.pattern.permute.xlu0 0
        %1636 = vperm.xlu0 %1635, %v1544
        %v1637 = vpop.permute.xlu0 %1636
        %1640 = vset.pattern.permute.xlu0 0
        %1641 = vperm.xlu0 %1640, %v1546
        %v1642 = vpop.permute.xlu0 %1641
        %1645 = vset.pattern.permute.xlu0 0
        %1646 = vperm.xlu0 %1645, %v1548
        %v1647 = vpop.permute.xlu0 %1646
        %1650 = vset.pattern.permute.xlu0 0
        %1651 = vperm.xlu0 %1650, %v1550
        %v1652 = vpop.permute.xlu0 %1651
        %1655 = vset.pattern.permute.xlu0 0
        %1656 = vperm.xlu0 %1655, %v1552
        %v1657 = vpop.permute.xlu0 %1656
        %1660 = vset.pattern.permute.xlu0 0
        %1661 = vperm.xlu0 %1660, %v1554
        %v1662 = vpop.permute.xlu0 %1661
        %1665 = vset.pattern.permute.xlu0 0
        %1666 = vperm.xlu0 %1665, %v1556
        %v1667 = vpop.permute.xlu0 %1666
        %1670 = vset.pattern.permute.xlu0 0
        %1671 = vperm.xlu0 %1670, %v1558
        %v1672 = vpop.permute.xlu0 %1671
        %1675 = vset.pattern.permute.xlu0 0
        %1676 = vperm.xlu0 %1675, %v1560
        %v1677 = vpop.permute.xlu0 %1676
        %v1679 = vmul.f32 %v1602, %v1565
        %v1680 = vmul.f32 %v1607, %v1565
        %v1681 = vmul.f32 %v1612, %v1565
        %v1682 = vmul.f32 %v1617, %v1565
        %v1683 = vmul.f32 %v1622, %v1565
        %v1684 = vmul.f32 %v1627, %v1565
        %v1685 = vmul.f32 %v1632, %v1565
        %v1686 = vmul.f32 %v1637, %v1565
        %v1687 = vmul.f32 %v1642, %v1565
        %v1688 = vmul.f32 %v1647, %v1565
        %v1689 = vmul.f32 %v1652, %v1565
        %v1690 = vmul.f32 %v1657, %v1565
        %v1691 = vmul.f32 %v1662, %v1565
        %v1692 = vmul.f32 %v1667, %v1565
        %v1693 = vmul.f32 %v1672, %v1565
        %v1694 = vmul.f32 %v1677, %v1565
        %v1695 = vadd.f32 %v1511, %v1679
        %v1696 = vadd.f32 %v1512, %v1680
        %v1697 = vadd.f32 %v1513, %v1681
        %v1698 = vadd.f32 %v1514, %v1682
        %v1699 = vadd.f32 %v1515, %v1683
        %v1700 = vadd.f32 %v1516, %v1684
        %v1701 = vadd.f32 %v1517, %v1685
        %v1702 = vadd.f32 %v1518, %v1686
        %v1703 = vadd.f32 %v1519, %v1687
        %v1704 = vadd.f32 %v1520, %v1688
        %v1705 = vadd.f32 %v1521, %v1689
        %v1706 = vadd.f32 %v1522, %v1690
        %v1707 = vadd.f32 %v1523, %v1691
        %v1708 = vadd.f32 %v1524, %v1692
        %v1709 = vadd.f32 %v1525, %v1693
        %v1710 = vadd.f32 %v1526, %v1694
        %s1711 = scalar_lea.vmem %s1, 6
        %v1712 = vld [vmem:[%s1711] sm:$0x1]
        %s1713 = scalar_lea.vmem %s383, 48
        %v1714 = vld [vmem:[%s1713] ss:$2 sm:$0xff]
        %s1715 = scalar_lea.vmem %s1713, 24
        %v1716 = vld [vmem:[%s1715] ss:$2 sm:$0xff]
        %s1717 = scalar_lea.vmem %s1713, 48
        %v1718 = vld [vmem:[%s1717] ss:$2 sm:$0xff]
        %s1719 = scalar_lea.vmem %s1713, 72
        %v1720 = vld [vmem:[%s1719] ss:$2 sm:$0xff]
        %s1721 = scalar_lea.vmem %s1713, 96
        %v1722 = vld [vmem:[%s1721] ss:$2 sm:$0xff]
        %s1723 = scalar_lea.vmem %s1713, 120
        %v1724 = vld [vmem:[%s1723] ss:$2 sm:$0xff]
        %s1725 = scalar_lea.vmem %s1713, 144
        %v1726 = vld [vmem:[%s1725] ss:$2 sm:$0xff]
        %s1727 = scalar_lea.vmem %s1713, 168
        %v1728 = vld [vmem:[%s1727] ss:$2 sm:$0xff]
        %s1729 = scalar_lea.vmem %s1713, 192
        %v1730 = vld [vmem:[%s1729] ss:$2 sm:$0xff]
        %s1731 = scalar_lea.vmem %s1713, 216
        %v1732 = vld [vmem:[%s1731] ss:$2 sm:$0xff]
        %s1733 = scalar_lea.vmem %s1713, 240
        %v1734 = vld [vmem:[%s1733] ss:$2 sm:$0xff]
        %s1735 = scalar_lea.vmem %s1713, 264
        %v1736 = vld [vmem:[%s1735] ss:$2 sm:$0xff]
        %s1737 = scalar_lea.vmem %s1713, 288
        %v1738 = vld [vmem:[%s1737] ss:$2 sm:$0xff]
        %s1739 = scalar_lea.vmem %s1713, 312
        %v1740 = vld [vmem:[%s1739] ss:$2 sm:$0xff]
        %s1741 = scalar_lea.vmem %s1713, 336
        %v1742 = vld [vmem:[%s1741] ss:$2 sm:$0xff]
        %s1743 = scalar_lea.vmem %s1713, 360
        %v1744 = vld [vmem:[%s1743] ss:$2 sm:$0xff]
        %s1745 = scalar_lea.vmem %s1713, 1
        %v1746 = vld [vmem:[%s1745] ss:$2 sm:$0xff]
        %s1747 = scalar_lea.vmem %s1713, 25
        %v1748 = vld [vmem:[%s1747] ss:$2 sm:$0xff]
        %s1749 = scalar_lea.vmem %s1713, 49
        %v1750 = vld [vmem:[%s1749] ss:$2 sm:$0xff]
        %s1751 = scalar_lea.vmem %s1713, 73
        %v1752 = vld [vmem:[%s1751] ss:$2 sm:$0xff]
        %s1753 = scalar_lea.vmem %s1713, 97
        %v1754 = vld [vmem:[%s1753] ss:$2 sm:$0xff]
        %s1755 = scalar_lea.vmem %s1713, 121
        %v1756 = vld [vmem:[%s1755] ss:$2 sm:$0xff]
        %s1757 = scalar_lea.vmem %s1713, 145
        %v1758 = vld [vmem:[%s1757] ss:$2 sm:$0xff]
        %s1759 = scalar_lea.vmem %s1713, 169
        %v1760 = vld [vmem:[%s1759] ss:$2 sm:$0xff]
        %s1761 = scalar_lea.vmem %s1713, 193
        %v1762 = vld [vmem:[%s1761] ss:$2 sm:$0xff]
        %s1763 = scalar_lea.vmem %s1713, 217
        %v1764 = vld [vmem:[%s1763] ss:$2 sm:$0xff]
        %s1765 = scalar_lea.vmem %s1713, 241
        %v1766 = vld [vmem:[%s1765] ss:$2 sm:$0xff]
        %s1767 = scalar_lea.vmem %s1713, 265
        %v1768 = vld [vmem:[%s1767] ss:$2 sm:$0xff]
        %s1769 = scalar_lea.vmem %s1713, 289
        %v1770 = vld [vmem:[%s1769] ss:$2 sm:$0xff]
        %s1771 = scalar_lea.vmem %s1713, 313
        %v1772 = vld [vmem:[%s1771] ss:$2 sm:$0xff]
        %s1773 = scalar_lea.vmem %s1713, 337
        %v1774 = vld [vmem:[%s1773] ss:$2 sm:$0xff]
        %s1775 = scalar_lea.vmem %s1713, 361
        %v1776 = vld [vmem:[%s1775] ss:$2 sm:$0xff]
        %1778 = vset.pattern.permute.xlu0 0
        %1779 = vperm.xlu0 %1778, %v1714
        %v1780 = vpop.permute.xlu0 %1779
        %1783 = vset.pattern.permute.xlu0 0
        %1784 = vperm.xlu0 %1783, %v1716
        %v1785 = vpop.permute.xlu0 %1784
        %1788 = vset.pattern.permute.xlu0 0
        %1789 = vperm.xlu0 %1788, %v1718
        %v1790 = vpop.permute.xlu0 %1789
        %1793 = vset.pattern.permute.xlu0 0
        %1794 = vperm.xlu0 %1793, %v1720
        %v1795 = vpop.permute.xlu0 %1794
        %1798 = vset.pattern.permute.xlu0 0
        %1799 = vperm.xlu0 %1798, %v1722
        %v1800 = vpop.permute.xlu0 %1799
        %1803 = vset.pattern.permute.xlu0 0
        %1804 = vperm.xlu0 %1803, %v1724
        %v1805 = vpop.permute.xlu0 %1804
        %1808 = vset.pattern.permute.xlu0 0
        %1809 = vperm.xlu0 %1808, %v1726
        %v1810 = vpop.permute.xlu0 %1809
        %1813 = vset.pattern.permute.xlu0 0
        %1814 = vperm.xlu0 %1813, %v1728
        %v1815 = vpop.permute.xlu0 %1814
        %1818 = vset.pattern.permute.xlu0 0
        %1819 = vperm.xlu0 %1818, %v1730
        %v1820 = vpop.permute.xlu0 %1819
        %1823 = vset.pattern.permute.xlu0 0
        %1824 = vperm.xlu0 %1823, %v1732
        %v1825 = vpop.permute.xlu0 %1824
        %1828 = vset.pattern.permute.xlu0 0
        %1829 = vperm.xlu0 %1828, %v1734
        %v1830 = vpop.permute.xlu0 %1829
        %1833 = vset.pattern.permute.xlu0 0
        %1834 = vperm.xlu0 %1833, %v1736
        %v1835 = vpop.permute.xlu0 %1834
        %1838 = vset.pattern.permute.xlu0 0
        %1839 = vperm.xlu0 %1838, %v1738
        %v1840 = vpop.permute.xlu0 %1839
        %1843 = vset.pattern.permute.xlu0 0
        %1844 = vperm.xlu0 %1843, %v1740
        %v1845 = vpop.permute.xlu0 %1844
        %1848 = vset.pattern.permute.xlu0 0
        %1849 = vperm.xlu0 %1848, %v1742
        %v1850 = vpop.permute.xlu0 %1849
        %1853 = vset.pattern.permute.xlu0 0
        %1854 = vperm.xlu0 %1853, %v1744
        %v1855 = vpop.permute.xlu0 %1854
        %v1858 = vlaneseq
        %v1859 = vshrl.u32 %v1858, 7
        %v1860 = vsub.s32 0, %v1859
        %v1861 = vrot.slane %v1712, %v1860
        %v1863 = vmul.f32 %v1780, %v1861
        %v1864 = vmul.f32 %v1785, %v1861
        %v1865 = vmul.f32 %v1790, %v1861
        %v1866 = vmul.f32 %v1795, %v1861
        %v1867 = vmul.f32 %v1800, %v1861
        %v1868 = vmul.f32 %v1805, %v1861
        %v1869 = vmul.f32 %v1810, %v1861
        %v1870 = vmul.f32 %v1815, %v1861
        %v1871 = vmul.f32 %v1820, %v1861
        %v1872 = vmul.f32 %v1825, %v1861
        %v1873 = vmul.f32 %v1830, %v1861
        %v1874 = vmul.f32 %v1835, %v1861
        %v1875 = vmul.f32 %v1840, %v1861
        %v1876 = vmul.f32 %v1845, %v1861
        %v1877 = vmul.f32 %v1850, %v1861
        %v1878 = vmul.f32 %v1855, %v1861
        %v1879 = vadd.f32 %v1583, %v1863
        %v1880 = vadd.f32 %v1584, %v1864
        %v1881 = vadd.f32 %v1585, %v1865
        %v1882 = vadd.f32 %v1586, %v1866
        %v1883 = vadd.f32 %v1587, %v1867
        %v1884 = vadd.f32 %v1588, %v1868
        %v1885 = vadd.f32 %v1589, %v1869
        %v1886 = vadd.f32 %v1590, %v1870
        %v1887 = vadd.f32 %v1591, %v1871
        %v1888 = vadd.f32 %v1592, %v1872
        %v1889 = vadd.f32 %v1593, %v1873
        %v1890 = vadd.f32 %v1594, %v1874
        %v1891 = vadd.f32 %v1595, %v1875
        %v1892 = vadd.f32 %v1596, %v1876
        %v1893 = vadd.f32 %v1597, %v1877
        %v1894 = vadd.f32 %v1598, %v1878
        %1896 = vset.pattern.permute.xlu0 0
        %1897 = vperm.xlu0 %1896, %v1746
        %v1898 = vpop.permute.xlu0 %1897
        %1901 = vset.pattern.permute.xlu0 0
        %1902 = vperm.xlu0 %1901, %v1748
        %v1903 = vpop.permute.xlu0 %1902
        %1906 = vset.pattern.permute.xlu0 0
        %1907 = vperm.xlu0 %1906, %v1750
        %v1908 = vpop.permute.xlu0 %1907
        %1911 = vset.pattern.permute.xlu0 0
        %1912 = vperm.xlu0 %1911, %v1752
        %v1913 = vpop.permute.xlu0 %1912
        %1916 = vset.pattern.permute.xlu0 0
        %1917 = vperm.xlu0 %1916, %v1754
        %v1918 = vpop.permute.xlu0 %1917
        %1921 = vset.pattern.permute.xlu0 0
        %1922 = vperm.xlu0 %1921, %v1756
        %v1923 = vpop.permute.xlu0 %1922
        %1926 = vset.pattern.permute.xlu0 0
        %1927 = vperm.xlu0 %1926, %v1758
        %v1928 = vpop.permute.xlu0 %1927
        %1931 = vset.pattern.permute.xlu0 0
        %1932 = vperm.xlu0 %1931, %v1760
        %v1933 = vpop.permute.xlu0 %1932
        %1936 = vset.pattern.permute.xlu0 0
        %1937 = vperm.xlu0 %1936, %v1762
        %v1938 = vpop.permute.xlu0 %1937
        %1941 = vset.pattern.permute.xlu0 0
        %1942 = vperm.xlu0 %1941, %v1764
        %v1943 = vpop.permute.xlu0 %1942
        %1946 = vset.pattern.permute.xlu0 0
        %1947 = vperm.xlu0 %1946, %v1766
        %v1948 = vpop.permute.xlu0 %1947
        %1951 = vset.pattern.permute.xlu0 0
        %1952 = vperm.xlu0 %1951, %v1768
        %v1953 = vpop.permute.xlu0 %1952
        %1956 = vset.pattern.permute.xlu0 0
        %1957 = vperm.xlu0 %1956, %v1770
        %v1958 = vpop.permute.xlu0 %1957
        %1961 = vset.pattern.permute.xlu0 0
        %1962 = vperm.xlu0 %1961, %v1772
        %v1963 = vpop.permute.xlu0 %1962
        %1966 = vset.pattern.permute.xlu0 0
        %1967 = vperm.xlu0 %1966, %v1774
        %v1968 = vpop.permute.xlu0 %1967
        %1971 = vset.pattern.permute.xlu0 0
        %1972 = vperm.xlu0 %1971, %v1776
        %v1973 = vpop.permute.xlu0 %1972
        %v1975 = vmul.f32 %v1898, %v1861
        %v1976 = vmul.f32 %v1903, %v1861
        %v1977 = vmul.f32 %v1908, %v1861
        %v1978 = vmul.f32 %v1913, %v1861
        %v1979 = vmul.f32 %v1918, %v1861
        %v1980 = vmul.f32 %v1923, %v1861
        %v1981 = vmul.f32 %v1928, %v1861
        %v1982 = vmul.f32 %v1933, %v1861
        %v1983 = vmul.f32 %v1938, %v1861
        %v1984 = vmul.f32 %v1943, %v1861
        %v1985 = vmul.f32 %v1948, %v1861
        %v1986 = vmul.f32 %v1953, %v1861
        %v1987 = vmul.f32 %v1958, %v1861
        %v1988 = vmul.f32 %v1963, %v1861
        %v1989 = vmul.f32 %v1968, %v1861
        %v1990 = vmul.f32 %v1973, %v1861
        %v1991 = vadd.f32 %v1695, %v1975
        %v1992 = vadd.f32 %v1696, %v1976
        %v1993 = vadd.f32 %v1697, %v1977
        %v1994 = vadd.f32 %v1698, %v1978
        %v1995 = vadd.f32 %v1699, %v1979
        %v1996 = vadd.f32 %v1700, %v1980
        %v1997 = vadd.f32 %v1701, %v1981
        %v1998 = vadd.f32 %v1702, %v1982
        %v1999 = vadd.f32 %v1703, %v1983
        %v2000 = vadd.f32 %v1704, %v1984
        %v2001 = vadd.f32 %v1705, %v1985
        %v2002 = vadd.f32 %v1706, %v1986
        %v2003 = vadd.f32 %v1707, %v1987
        %v2004 = vadd.f32 %v1708, %v1988
        %v2005 = vadd.f32 %v1709, %v1989
        %v2006 = vadd.f32 %v1710, %v1990
        %s2007 = scalar_lea.vmem %s1, 7
        %v2008 = vld [vmem:[%s2007] sm:$0x1]
        %s2009 = scalar_lea.vmem %s1713, 2
        %v2010 = vld [vmem:[%s2009] ss:$2 sm:$0xff]
        %s2011 = scalar_lea.vmem %s1713, 26
        %v2012 = vld [vmem:[%s2011] ss:$2 sm:$0xff]
        %s2013 = scalar_lea.vmem %s1713, 50
        %v2014 = vld [vmem:[%s2013] ss:$2 sm:$0xff]
        %s2015 = scalar_lea.vmem %s1713, 74
        %v2016 = vld [vmem:[%s2015] ss:$2 sm:$0xff]
        %s2017 = scalar_lea.vmem %s1713, 98
        %v2018 = vld [vmem:[%s2017] ss:$2 sm:$0xff]
        %s2019 = scalar_lea.vmem %s1713, 122
        %v2020 = vld [vmem:[%s2019] ss:$2 sm:$0xff]
        %s2021 = scalar_lea.vmem %s1713, 146
        %v2022 = vld [vmem:[%s2021] ss:$2 sm:$0xff]
        %s2023 = scalar_lea.vmem %s1713, 170
        %v2024 = vld [vmem:[%s2023] ss:$2 sm:$0xff]
        %s2025 = scalar_lea.vmem %s1713, 194
        %v2026 = vld [vmem:[%s2025] ss:$2 sm:$0xff]
        %s2027 = scalar_lea.vmem %s1713, 218
        %v2028 = vld [vmem:[%s2027] ss:$2 sm:$0xff]
        %s2029 = scalar_lea.vmem %s1713, 242
        %v2030 = vld [vmem:[%s2029] ss:$2 sm:$0xff]
        %s2031 = scalar_lea.vmem %s1713, 266
        %v2032 = vld [vmem:[%s2031] ss:$2 sm:$0xff]
        %s2033 = scalar_lea.vmem %s1713, 290
        %v2034 = vld [vmem:[%s2033] ss:$2 sm:$0xff]
        %s2035 = scalar_lea.vmem %s1713, 314
        %v2036 = vld [vmem:[%s2035] ss:$2 sm:$0xff]
        %s2037 = scalar_lea.vmem %s1713, 338
        %v2038 = vld [vmem:[%s2037] ss:$2 sm:$0xff]
        %s2039 = scalar_lea.vmem %s1713, 362
        %v2040 = vld [vmem:[%s2039] ss:$2 sm:$0xff]
        %v2042 = vlaneseq
        %v2043 = vshrl.u32 %v2042, 7
        %v2044 = vsub.s32 0, %v2043
        %v2045 = vrot.slane %v2008, %v2044
        %v2047 = vmul.f32 %v1898, %v2045
        %v2048 = vmul.f32 %v1903, %v2045
        %v2049 = vmul.f32 %v1908, %v2045
        %v2050 = vmul.f32 %v1913, %v2045
        %v2051 = vmul.f32 %v1918, %v2045
        %v2052 = vmul.f32 %v1923, %v2045
        %v2053 = vmul.f32 %v1928, %v2045
        %v2054 = vmul.f32 %v1933, %v2045
        %v2055 = vmul.f32 %v1938, %v2045
        %v2056 = vmul.f32 %v1943, %v2045
        %v2057 = vmul.f32 %v1948, %v2045
        %v2058 = vmul.f32 %v1953, %v2045
        %v2059 = vmul.f32 %v1958, %v2045
        %v2060 = vmul.f32 %v1963, %v2045
        %v2061 = vmul.f32 %v1968, %v2045
        %v2062 = vmul.f32 %v1973, %v2045
        %v2063 = vadd.f32 %v1879, %v2047
        %v2064 = vadd.f32 %v1880, %v2048
        %v2065 = vadd.f32 %v1881, %v2049
        %v2066 = vadd.f32 %v1882, %v2050
        %v2067 = vadd.f32 %v1883, %v2051
        %v2068 = vadd.f32 %v1884, %v2052
        %v2069 = vadd.f32 %v1885, %v2053
        %v2070 = vadd.f32 %v1886, %v2054
        %v2071 = vadd.f32 %v1887, %v2055
        %v2072 = vadd.f32 %v1888, %v2056
        %v2073 = vadd.f32 %v1889, %v2057
        %v2074 = vadd.f32 %v1890, %v2058
        %v2075 = vadd.f32 %v1891, %v2059
        %v2076 = vadd.f32 %v1892, %v2060
        %v2077 = vadd.f32 %v1893, %v2061
        %v2078 = vadd.f32 %v1894, %v2062
        %2080 = vset.pattern.permute.xlu0 0
        %2081 = vperm.xlu0 %2080, %v2010
        %v2082 = vpop.permute.xlu0 %2081
        %2085 = vset.pattern.permute.xlu0 0
        %2086 = vperm.xlu0 %2085, %v2012
        %v2087 = vpop.permute.xlu0 %2086
        %2090 = vset.pattern.permute.xlu0 0
        %2091 = vperm.xlu0 %2090, %v2014
        %v2092 = vpop.permute.xlu0 %2091
        %2095 = vset.pattern.permute.xlu0 0
        %2096 = vperm.xlu0 %2095, %v2016
        %v2097 = vpop.permute.xlu0 %2096
        %2100 = vset.pattern.permute.xlu0 0
        %2101 = vperm.xlu0 %2100, %v2018
        %v2102 = vpop.permute.xlu0 %2101
        %2105 = vset.pattern.permute.xlu0 0
        %2106 = vperm.xlu0 %2105, %v2020
        %v2107 = vpop.permute.xlu0 %2106
        %2110 = vset.pattern.permute.xlu0 0
        %2111 = vperm.xlu0 %2110, %v2022
        %v2112 = vpop.permute.xlu0 %2111
        %2115 = vset.pattern.permute.xlu0 0
        %2116 = vperm.xlu0 %2115, %v2024
        %v2117 = vpop.permute.xlu0 %2116
        %2120 = vset.pattern.permute.xlu0 0
        %2121 = vperm.xlu0 %2120, %v2026
        %v2122 = vpop.permute.xlu0 %2121
        %2125 = vset.pattern.permute.xlu0 0
        %2126 = vperm.xlu0 %2125, %v2028
        %v2127 = vpop.permute.xlu0 %2126
        %2130 = vset.pattern.permute.xlu0 0
        %2131 = vperm.xlu0 %2130, %v2030
        %v2132 = vpop.permute.xlu0 %2131
        %2135 = vset.pattern.permute.xlu0 0
        %2136 = vperm.xlu0 %2135, %v2032
        %v2137 = vpop.permute.xlu0 %2136
        %2140 = vset.pattern.permute.xlu0 0
        %2141 = vperm.xlu0 %2140, %v2034
        %v2142 = vpop.permute.xlu0 %2141
        %2145 = vset.pattern.permute.xlu0 0
        %2146 = vperm.xlu0 %2145, %v2036
        %v2147 = vpop.permute.xlu0 %2146
        %2150 = vset.pattern.permute.xlu0 0
        %2151 = vperm.xlu0 %2150, %v2038
        %v2152 = vpop.permute.xlu0 %2151
        %2155 = vset.pattern.permute.xlu0 0
        %2156 = vperm.xlu0 %2155, %v2040
        %v2157 = vpop.permute.xlu0 %2156
        %v2159 = vmul.f32 %v2082, %v2045
        %v2160 = vmul.f32 %v2087, %v2045
        %v2161 = vmul.f32 %v2092, %v2045
        %v2162 = vmul.f32 %v2097, %v2045
        %v2163 = vmul.f32 %v2102, %v2045
        %v2164 = vmul.f32 %v2107, %v2045
        %v2165 = vmul.f32 %v2112, %v2045
        %v2166 = vmul.f32 %v2117, %v2045
        %v2167 = vmul.f32 %v2122, %v2045
        %v2168 = vmul.f32 %v2127, %v2045
        %v2169 = vmul.f32 %v2132, %v2045
        %v2170 = vmul.f32 %v2137, %v2045
        %v2171 = vmul.f32 %v2142, %v2045
        %v2172 = vmul.f32 %v2147, %v2045
        %v2173 = vmul.f32 %v2152, %v2045
        %v2174 = vmul.f32 %v2157, %v2045
        %v2175 = vadd.f32 %v1991, %v2159
        %v2176 = vadd.f32 %v1992, %v2160
        %v2177 = vadd.f32 %v1993, %v2161
        %v2178 = vadd.f32 %v1994, %v2162
        %v2179 = vadd.f32 %v1995, %v2163
        %v2180 = vadd.f32 %v1996, %v2164
        %v2181 = vadd.f32 %v1997, %v2165
        %v2182 = vadd.f32 %v1998, %v2166
        %v2183 = vadd.f32 %v1999, %v2167
        %v2184 = vadd.f32 %v2000, %v2168
        %v2185 = vadd.f32 %v2001, %v2169
        %v2186 = vadd.f32 %v2002, %v2170
        %v2187 = vadd.f32 %v2003, %v2171
        %v2188 = vadd.f32 %v2004, %v2172
        %v2189 = vadd.f32 %v2005, %v2173
        %v2190 = vadd.f32 %v2006, %v2174
        %s2191 = scalar_lea.vmem %s1, 8
        %v2192 = vld [vmem:[%s2191] sm:$0x1]
        %s2193 = scalar_lea.vmem %s1713, 3
        %v2194 = vld [vmem:[%s2193] ss:$2 sm:$0xff]
        %s2195 = scalar_lea.vmem %s1713, 27
        %v2196 = vld [vmem:[%s2195] ss:$2 sm:$0xff]
        %s2197 = scalar_lea.vmem %s1713, 51
        %v2198 = vld [vmem:[%s2197] ss:$2 sm:$0xff]
        %s2199 = scalar_lea.vmem %s1713, 75
        %v2200 = vld [vmem:[%s2199] ss:$2 sm:$0xff]
        %s2201 = scalar_lea.vmem %s1713, 99
        %v2202 = vld [vmem:[%s2201] ss:$2 sm:$0xff]
        %s2203 = scalar_lea.vmem %s1713, 123
        %v2204 = vld [vmem:[%s2203] ss:$2 sm:$0xff]
        %s2205 = scalar_lea.vmem %s1713, 147
        %v2206 = vld [vmem:[%s2205] ss:$2 sm:$0xff]
        %s2207 = scalar_lea.vmem %s1713, 171
        %v2208 = vld [vmem:[%s2207] ss:$2 sm:$0xff]
        %s2209 = scalar_lea.vmem %s1713, 195
        %v2210 = vld [vmem:[%s2209] ss:$2 sm:$0xff]
        %s2211 = scalar_lea.vmem %s1713, 219
        %v2212 = vld [vmem:[%s2211] ss:$2 sm:$0xff]
        %s2213 = scalar_lea.vmem %s1713, 243
        %v2214 = vld [vmem:[%s2213] ss:$2 sm:$0xff]
        %s2215 = scalar_lea.vmem %s1713, 267
        %v2216 = vld [vmem:[%s2215] ss:$2 sm:$0xff]
        %s2217 = scalar_lea.vmem %s1713, 291
        %v2218 = vld [vmem:[%s2217] ss:$2 sm:$0xff]
        %s2219 = scalar_lea.vmem %s1713, 315
        %v2220 = vld [vmem:[%s2219] ss:$2 sm:$0xff]
        %s2221 = scalar_lea.vmem %s1713, 339
        %v2222 = vld [vmem:[%s2221] ss:$2 sm:$0xff]
        %s2223 = scalar_lea.vmem %s1713, 363
        %v2224 = vld [vmem:[%s2223] ss:$2 sm:$0xff]
        %v2226 = vlaneseq
        %v2227 = vshrl.u32 %v2226, 7
        %v2228 = vsub.s32 0, %v2227
        %v2229 = vrot.slane %v2192, %v2228
        %v2231 = vmul.f32 %v2082, %v2229
        %v2232 = vmul.f32 %v2087, %v2229
        %v2233 = vmul.f32 %v2092, %v2229
        %v2234 = vmul.f32 %v2097, %v2229
        %v2235 = vmul.f32 %v2102, %v2229
        %v2236 = vmul.f32 %v2107, %v2229
        %v2237 = vmul.f32 %v2112, %v2229
        %v2238 = vmul.f32 %v2117, %v2229
        %v2239 = vmul.f32 %v2122, %v2229
        %v2240 = vmul.f32 %v2127, %v2229
        %v2241 = vmul.f32 %v2132, %v2229
        %v2242 = vmul.f32 %v2137, %v2229
        %v2243 = vmul.f32 %v2142, %v2229
        %v2244 = vmul.f32 %v2147, %v2229
        %v2245 = vmul.f32 %v2152, %v2229
        %v2246 = vmul.f32 %v2157, %v2229
        %v2247 = vadd.f32 %v2063, %v2231
        %v2248 = vadd.f32 %v2064, %v2232
        %v2249 = vadd.f32 %v2065, %v2233
        %v2250 = vadd.f32 %v2066, %v2234
        %v2251 = vadd.f32 %v2067, %v2235
        %v2252 = vadd.f32 %v2068, %v2236
        %v2253 = vadd.f32 %v2069, %v2237
        %v2254 = vadd.f32 %v2070, %v2238
        %v2255 = vadd.f32 %v2071, %v2239
        %v2256 = vadd.f32 %v2072, %v2240
        %v2257 = vadd.f32 %v2073, %v2241
        %v2258 = vadd.f32 %v2074, %v2242
        %v2259 = vadd.f32 %v2075, %v2243
        %v2260 = vadd.f32 %v2076, %v2244
        %v2261 = vadd.f32 %v2077, %v2245
        %v2262 = vadd.f32 %v2078, %v2246
        %2264 = vset.pattern.permute.xlu0 0
        %2265 = vperm.xlu0 %2264, %v2194
        %v2266 = vpop.permute.xlu0 %2265
        %2269 = vset.pattern.permute.xlu0 0
        %2270 = vperm.xlu0 %2269, %v2196
        %v2271 = vpop.permute.xlu0 %2270
        %2274 = vset.pattern.permute.xlu0 0
        %2275 = vperm.xlu0 %2274, %v2198
        %v2276 = vpop.permute.xlu0 %2275
        %2279 = vset.pattern.permute.xlu0 0
        %2280 = vperm.xlu0 %2279, %v2200
        %v2281 = vpop.permute.xlu0 %2280
        %2284 = vset.pattern.permute.xlu0 0
        %2285 = vperm.xlu0 %2284, %v2202
        %v2286 = vpop.permute.xlu0 %2285
        %2289 = vset.pattern.permute.xlu0 0
        %2290 = vperm.xlu0 %2289, %v2204
        %v2291 = vpop.permute.xlu0 %2290
        %2294 = vset.pattern.permute.xlu0 0
        %2295 = vperm.xlu0 %2294, %v2206
        %v2296 = vpop.permute.xlu0 %2295
        %2299 = vset.pattern.permute.xlu0 0
        %2300 = vperm.xlu0 %2299, %v2208
        %v2301 = vpop.permute.xlu0 %2300
        %2304 = vset.pattern.permute.xlu0 0
        %2305 = vperm.xlu0 %2304, %v2210
        %v2306 = vpop.permute.xlu0 %2305
        %2309 = vset.pattern.permute.xlu0 0
        %2310 = vperm.xlu0 %2309, %v2212
        %v2311 = vpop.permute.xlu0 %2310
        %2314 = vset.pattern.permute.xlu0 0
        %2315 = vperm.xlu0 %2314, %v2214
        %v2316 = vpop.permute.xlu0 %2315
        %2319 = vset.pattern.permute.xlu0 0
        %2320 = vperm.xlu0 %2319, %v2216
        %v2321 = vpop.permute.xlu0 %2320
        %2324 = vset.pattern.permute.xlu0 0
        %2325 = vperm.xlu0 %2324, %v2218
        %v2326 = vpop.permute.xlu0 %2325
        %2329 = vset.pattern.permute.xlu0 0
        %2330 = vperm.xlu0 %2329, %v2220
        %v2331 = vpop.permute.xlu0 %2330
        %2334 = vset.pattern.permute.xlu0 0
        %2335 = vperm.xlu0 %2334, %v2222
        %v2336 = vpop.permute.xlu0 %2335
        %2339 = vset.pattern.permute.xlu0 0
        %2340 = vperm.xlu0 %2339, %v2224
        %v2341 = vpop.permute.xlu0 %2340
        %v2343 = vmul.f32 %v2266, %v2229
        %v2344 = vmul.f32 %v2271, %v2229
        %v2345 = vmul.f32 %v2276, %v2229
        %v2346 = vmul.f32 %v2281, %v2229
        %v2347 = vmul.f32 %v2286, %v2229
        %v2348 = vmul.f32 %v2291, %v2229
        %v2349 = vmul.f32 %v2296, %v2229
        %v2350 = vmul.f32 %v2301, %v2229
        %v2351 = vmul.f32 %v2306, %v2229
        %v2352 = vmul.f32 %v2311, %v2229
        %v2353 = vmul.f32 %v2316, %v2229
        %v2354 = vmul.f32 %v2321, %v2229
        %v2355 = vmul.f32 %v2326, %v2229
        %v2356 = vmul.f32 %v2331, %v2229
        %v2357 = vmul.f32 %v2336, %v2229
        %v2358 = vmul.f32 %v2341, %v2229
        %v2359 = vadd.f32 %v2175, %v2343
        %v2360 = vadd.f32 %v2176, %v2344
        %v2361 = vadd.f32 %v2177, %v2345
        %v2362 = vadd.f32 %v2178, %v2346
        %v2363 = vadd.f32 %v2179, %v2347
        %v2364 = vadd.f32 %v2180, %v2348
        %v2365 = vadd.f32 %v2181, %v2349
        %v2366 = vadd.f32 %v2182, %v2350
        %v2367 = vadd.f32 %v2183, %v2351
        %v2368 = vadd.f32 %v2184, %v2352
        %v2369 = vadd.f32 %v2185, %v2353
        %v2370 = vadd.f32 %v2186, %v2354
        %v2371 = vadd.f32 %v2187, %v2355
        %v2372 = vadd.f32 %v2188, %v2356
        %v2373 = vadd.f32 %v2189, %v2357
        %v2374 = vadd.f32 %v2190, %v2358
        %v2375 = vmax.f32 %v2247, %v2359
        %v2376 = vmax.f32 %v2248, %v2360
        %v2377 = vmax.f32 %v2249, %v2361
        %v2378 = vmax.f32 %v2250, %v2362
        %v2379 = vmax.f32 %v2251, %v2363
        %v2380 = vmax.f32 %v2252, %v2364
        %v2381 = vmax.f32 %v2253, %v2365
        %v2382 = vmax.f32 %v2254, %v2366
        %v2383 = vmax.f32 %v2255, %v2367
        %v2384 = vmax.f32 %v2256, %v2368
        %v2385 = vmax.f32 %v2257, %v2369
        %v2386 = vmax.f32 %v2258, %v2370
        %v2387 = vmax.f32 %v2259, %v2371
        %v2388 = vmax.f32 %v2260, %v2372
        %v2389 = vmax.f32 %v2261, %v2373
        %v2390 = vmax.f32 %v2262, %v2374
        %v2391 = vmax.f32 %v2375, %v2376
        %v2392 = vmax.f32 %v2377, %v2378
        %v2393 = vmax.f32 %v2379, %v2380
        %v2394 = vmax.f32 %v2381, %v2382
        %v2395 = vmax.f32 %v2383, %v2384
        %v2396 = vmax.f32 %v2385, %v2386
        %v2397 = vmax.f32 %v2387, %v2388
        %v2398 = vmax.f32 %v2389, %v2390
        %v2399 = vld [vmem:[%s2] sm:$0x1]
        %v2401 = vlaneseq
        %v2402 = vshrl.u32 %v2401, 7
        %v2403 = vsub.s32 0, %v2402
        %v2404 = vrot.slane %v2399, %v2403
        %v2406 = vadd.f32 %v2391, %v2404
        %v2407 = vadd.f32 %v2392, %v2404
        %v2408 = vadd.f32 %v2393, %v2404
        %v2409 = vadd.f32 %v2394, %v2404
        %v2410 = vadd.f32 %v2395, %v2404
        %v2411 = vadd.f32 %v2396, %v2404
        %v2412 = vadd.f32 %v2397, %v2404
        %v2413 = vadd.f32 %v2398, %v2404
        %v2414 = vmax.f32 %v2406, 0.0
        %v2415 = vmax.f32 %v2407, 0.0
        %v2416 = vmax.f32 %v2408, 0.0
        %v2417 = vmax.f32 %v2409, 0.0
        %v2418 = vmax.f32 %v2410, 0.0
        %v2419 = vmax.f32 %v2411, 0.0
        %v2420 = vmax.f32 %v2412, 0.0
        %v2421 = vmax.f32 %v2413, 0.0
        %vm2422 = vcmask 261120
        %2423 = vst.msk [vmem:[#allocation2] sm:$0xff] %vm2422, 0.0
        %2424 = vst.msk [vmem:[#allocation2 + $0x8] sm:$0xff] %vm2422, 0.0
        %vm2425 = vcmask 253952
        %2426 = vst.msk [vmem:[#allocation2 + $0x10] sm:$0x1] %vm2425, 0.0
        %2427 = vst.msk [vmem:[#allocation2 + $0x18] sm:$0xff] %vm2422, 0.0
        %2428 = vst.msk [vmem:[#allocation2 + $0x20] sm:$0xff] %vm2422, 0.0
        %2429 = vst.msk [vmem:[#allocation2 + $0x28] sm:$0x1] %vm2425, 0.0
        %2430 = vst.msk [vmem:[#allocation2 + $0x30] sm:$0xff] %vm2422, 0.0
        %2431 = vst.msk [vmem:[#allocation2 + $0x38] sm:$0xff] %vm2422, 0.0
        %2432 = vst.msk [vmem:[#allocation2 + $0x40] sm:$0x1] %vm2425, 0.0
        %2433 = vst.msk [vmem:[#allocation2 + $0x48] sm:$0xff] %vm2422, 0.0
        %2434 = vst.msk [vmem:[#allocation2 + $0x50] sm:$0xff] %vm2422, 0.0
        %2435 = vst.msk [vmem:[#allocation2 + $0x58] sm:$0x1] %vm2425, 0.0
        %2436 = vst.msk [vmem:[#allocation2 + $0x60] sm:$0xff] %vm2422, 0.0
        %2437 = vst.msk [vmem:[#allocation2 + $0x68] sm:$0xff] %vm2422, 0.0
        %2438 = vst.msk [vmem:[#allocation2 + $0x70] sm:$0x1] %vm2425, 0.0
        %2439 = vst.msk [vmem:[#allocation2 + $0x78] sm:$0xff] %vm2422, 0.0
        %2440 = vst.msk [vmem:[#allocation2 + $0x80] sm:$0xff] %vm2422, 0.0
        %2441 = vst.msk [vmem:[#allocation2 + $0x88] sm:$0x1] %vm2425, 0.0
        %2442 = vst.msk [vmem:[#allocation2 + $0x90] sm:$0xff] %vm2422, 0.0
        %2443 = vst.msk [vmem:[#allocation2 + $0x98] sm:$0xff] %vm2422, 0.0
        %2444 = vst.msk [vmem:[#allocation2 + $0xa0] sm:$0x1] %vm2425, 0.0
        %2445 = vst.msk [vmem:[#allocation2 + $0xa8] sm:$0xff] %vm2422, 0.0
        %2446 = vst.msk [vmem:[#allocation2 + $0xb0] sm:$0xff] %vm2422, 0.0
        %2447 = vst.msk [vmem:[#allocation2 + $0xb8] sm:$0x1] %vm2425, 0.0
        %2448 = vst.msk [vmem:[#allocation2 + $0xc0] sm:$0xff] %vm2422, 0.0
        %2449 = vst.msk [vmem:[#allocation2 + $0xc8] sm:$0xff] %vm2422, 0.0
        %2450 = vst.msk [vmem:[#allocation2 + $0xd0] sm:$0x1] %vm2425, 0.0
        %2451 = vst.msk [vmem:[#allocation2 + $0xd8] sm:$0xff] %vm2422, 0.0
        %2452 = vst.msk [vmem:[#allocation2 + $0xe0] sm:$0xff] %vm2422, 0.0
        %2453 = vst.msk [vmem:[#allocation2 + $0xe8] sm:$0x1] %vm2425, 0.0
        %s2454 = scalar_lea.vmem [#allocation2], 24
        %2455 = vst.msk [vmem:[%s2454 + $0x8] sm:$0xff] %vm2422, %v2414
        %2456 = vst.msk [vmem:[%s2454 + $0x20] sm:$0xff] %vm2422, %v2415
        %2457 = vst.msk [vmem:[%s2454 + $0x38] sm:$0xff] %vm2422, %v2416
        %2458 = vst.msk [vmem:[%s2454 + $0x50] sm:$0xff] %vm2422, %v2417
        %2459 = vst.msk [vmem:[%s2454 + $0x68] sm:$0xff] %vm2422, %v2418
        %2460 = vst.msk [vmem:[%s2454 + $0x80] sm:$0xff] %vm2422, %v2419
        %2461 = vst.msk [vmem:[%s2454 + $0x98] sm:$0xff] %vm2422, %v2420
        %2462 = vst.msk [vmem:[%s2454 + $0xb0] sm:$0xff] %vm2422, %v2421
        %v2463 = vld [vmem:[%s3] sm:$0xf]
        %v2464 = vld [vmem:[%s3 + $0x4] sm:$0xf]
        %v2465 = vld [vmem:[%s3 + $0x8] sm:$0xf]
        %v2466 = vld [vmem:[%s3 + $0xc] sm:$0xf]
        %v2467 = vld [vmem:[#allocation2 + $0x7] sm:$0xff]
        %v2468 = vld [vmem:[#allocation2 + $0x37] sm:$0xff]
        %v2469 = vld [vmem:[#allocation2 + $0x67] sm:$0xff]
        %v2470 = vld [vmem:[#allocation2 + $0x97] sm:$0xff]
        %v2471 = vld [vmem:[%s2454 + $0x7] sm:$0xff]
        %v2472 = vld [vmem:[%s2454 + $0x37] sm:$0xff]
        %v2473 = vld [vmem:[%s2454 + $0x67] sm:$0xff]
        %v2474 = vld [vmem:[%s2454 + $0x97] sm:$0xff]
        %v2475 = vpack.c.bf16 %v2468, %v2467
        %v2476 = vpack.c.bf16 %v2470, %v2469
        %v2477 = vpack.c.bf16 %v2472, %v2471
        %v2478 = vpack.c.bf16 %v2474, %v2473
        %s2479 = scalar_lea.vmem %s3, 16
        %v2480 = vld [vmem:[%s2479] sm:$0xf]
        %v2481 = vld [vmem:[%s2479 + $0x4] sm:$0xf]
        %v2482 = vld [vmem:[%s2479 + $0x8] sm:$0xf]
        %v2483 = vld [vmem:[%s2479 + $0xc] sm:$0xf]
        %v2484 = vld [vmem:[#allocation2 + $0x8] sm:$0xff]
        %v2485 = vld [vmem:[#allocation2 + $0x38] sm:$0xff]
        %v2486 = vld [vmem:[#allocation2 + $0x68] sm:$0xff]
        %v2487 = vld [vmem:[#allocation2 + $0x98] sm:$0xff]
        %v2488 = vld [vmem:[%s2454 + $0x8] sm:$0xff]
        %v2489 = vld [vmem:[%s2454 + $0x38] sm:$0xff]
        %v2490 = vld [vmem:[%s2454 + $0x68] sm:$0xff]
        %v2491 = vld [vmem:[%s2454 + $0x98] sm:$0xff]
        %v2492 = vpack.c.bf16 %v2485, %v2484
        %v2493 = vpack.c.bf16 %v2487, %v2486
        %v2498 = vunpack.c.l.b16 %v2480
        %v2499 = vunpack.c.l.b16 %v2481
        %v2500 = vunpack.c.l.b16 %v2482
        %v2501 = vunpack.c.l.b16 %v2483
        %v2502 = vpack.c.b16 %v2499, %v2498
        %v2503 = vpack.c.b16 %v2501, %v2500
        %v2507 = vsel %vm2422, %v2492, 0
        %v2510 = vsel %vm2422, %v2493, 0
        %2512 = vmatprep.subr.bf16.mxu0 0
        %2513 = vmatpush1.bf16.msra.mxu0 %v2502
        %2514 = vmatprep.subr.bf16.mxu0 0
        %2515 = vmatpush1.bf16.msra.mxu0 %v2503
        %2516 = vmatprep.subr.bf16.mxu0 0
        %2517 = vmatpush1.bf16.msra.mxu0 0
        %2518 = vmatprep.subr.bf16.mxu0 0
        %2519 = vmatpush1.bf16.msra.mxu0 0
        %2520 = vmatprep.subr.bf16.mxu0 0
        %2521 = vmatpush1.bf16.msra.mxu0 0
        %2522 = vmatprep.subr.bf16.mxu0 0
        %2523 = vmatpush1.bf16.msra.mxu0 0
        %2524 = vmatprep.subr.bf16.mxu0 0
        %2525 = vmatpush1.bf16.msra.mxu0 0
        %2526 = vmatprep.subr.bf16.mxu0 0
        %2527 = vmatpush1.bf16.msra.mxu0 0
        %2528 = vmatprep.subr.bf16.mxu0 0
        %2529 = vmatpush1.bf16.msra.mxu0 0
        %2530 = vmatprep.subr.bf16.mxu0 0
        %2531 = vmatpush1.bf16.msra.mxu0 0
        %2532 = vmatprep.subr.bf16.mxu0 0
        %2533 = vmatpush1.bf16.msra.mxu0 0
        %2534 = vmatprep.subr.bf16.mxu0 0
        %2535 = vmatpush1.bf16.msra.mxu0 0
        %2536 = vmatprep.subr.bf16.mxu0 0
        %2537 = vmatpush1.bf16.msra.mxu0 0
        %2538 = vmatprep.subr.bf16.mxu0 0
        %2539 = vmatpush1.bf16.msra.mxu0 0
        %2540 = vmatprep.subr.bf16.mxu0 0
        %2541 = vmatpush1.bf16.msra.mxu0 0
        %2542 = vmatprep.subr.bf16.mxu0 0
        %2543 = vmatpush1.bf16.msra.mxu0 0
        %2544 = vmatprep.mubr.bf16.mxu0 0
        %2545 = vmatmul.mubr.bf16.gmra.mrb[0].mxu0 %v2507
        %v2546 = vpop.f32.mrb[0].mxu0
        %v2547 = vadd.f32 0.0, %v2546
        %v2548 = vpop.f32.mrb[0].mxu0
        %v2549 = vpop.f32.mrb[0].mxu0
        %v2550 = vadd.f32 0.0, %v2549
        %v2551 = vpop.f32.mrb[0].mxu0
        %2552 = vmatprep.mubr.bf16.mxu0 0
        %2553 = vmatmul.mubr.bf16.gmra.mrb[0].mxu0 %v2510
        %v2554 = vpop.f32.mrb[0].mxu0
        %v2555 = vadd.f32 0.0, %v2554
        %v2556 = vpop.f32.mrb[0].mxu0
        %v2557 = vpop.f32.mrb[0].mxu0
        %v2558 = vadd.f32 0.0, %v2557
        %v2559 = vpop.f32.mrb[0].mxu0
        %2560 = vdwg.mxu0
        %v2565 = vunpack.c.l.b16 %v2463
        %v2566 = vunpack.c.l.b16 %v2464
        %v2567 = vunpack.c.l.b16 %v2465
        %v2568 = vunpack.c.l.b16 %v2466
        %v2569 = vpack.c.b16 %v2566, %v2565
        %v2570 = vpack.c.b16 %v2568, %v2567
        %v2574 = vsel %vm2422, %v2475, 0
        %v2577 = vsel %vm2422, %v2476, 0
        %2579 = vmatprep.subr.bf16.mxu0 0
        %2580 = vmatpush1.bf16.msra.mxu0 %v2569
        %2581 = vmatprep.subr.bf16.mxu0 0
        %2582 = vmatpush1.bf16.msra.mxu0 %v2570
        %2583 = vmatprep.subr.bf16.mxu0 0
        %2584 = vmatpush1.bf16.msra.mxu0 0
        %2585 = vmatprep.subr.bf16.mxu0 0
        %2586 = vmatpush1.bf16.msra.mxu0 0
        %2587 = vmatprep.subr.bf16.mxu0 0
        %2588 = vmatpush1.bf16.msra.mxu0 0
        %2589 = vmatprep.subr.bf16.mxu0 0
        %2590 = vmatpush1.bf16.msra.mxu0 0
        %2591 = vmatprep.subr.bf16.mxu0 0
        %2592 = vmatpush1.bf16.msra.mxu0 0
        %2593 = vmatprep.subr.bf16.mxu0 0
        %2594 = vmatpush1.bf16.msra.mxu0 0
        %2595 = vmatprep.subr.bf16.mxu0 0
        %2596 = vmatpush1.bf16.msra.mxu0 0
        %2597 = vmatprep.subr.bf16.mxu0 0
        %2598 = vmatpush1.bf16.msra.mxu0 0
        %2599 = vmatprep.subr.bf16.mxu0 0
        %2600 = vmatpush1.bf16.msra.mxu0 0
        %2601 = vmatprep.subr.bf16.mxu0 0
        %2602 = vmatpush1.bf16.msra.mxu0 0
        %2603 = vmatprep.subr.bf16.mxu0 0
        %2604 = vmatpush1.bf16.msra.mxu0 0
        %2605 = vmatprep.subr.bf16.mxu0 0
        %2606 = vmatpush1.bf16.msra.mxu0 0
        %2607 = vmatprep.subr.bf16.mxu0 0
        %2608 = vmatpush1.bf16.msra.mxu0 0
        %2609 = vmatprep.subr.bf16.mxu0 0
        %2610 = vmatpush1.bf16.msra.mxu0 0
        %2611 = vmatprep.mubr.bf16.mxu0 0
        %2612 = vmatmul.mubr.bf16.gmra.mrb[0].mxu0 %v2574
        %v2613 = vpop.f32.mrb[0].mxu0
        %v2614 = vadd.f32 %v2547, %v2613
        %v2615 = vpop.f32.mrb[0].mxu0
        %v2616 = vpop.f32.mrb[0].mxu0
        %v2617 = vadd.f32 %v2550, %v2616
        %v2618 = vpop.f32.mrb[0].mxu0
        %2619 = vmatprep.mubr.bf16.mxu0 0
        %2620 = vmatmul.mubr.bf16.gmra.mrb[0].mxu0 %v2577
        %v2621 = vpop.f32.mrb[0].mxu0
        %v2622 = vadd.f32 %v2555, %v2621
        %v2623 = vpop.f32.mrb[0].mxu0
        %v2624 = vpop.f32.mrb[0].mxu0
        %v2625 = vadd.f32 %v2558, %v2624
        %v2626 = vpop.f32.mrb[0].mxu0
        %2627 = vdwg.mxu0
        %v2628 = vpack.c.bf16 %v2489, %v2488
        %v2629 = vpack.c.bf16 %v2491, %v2490
        %v2631 = vsel %vm2422, %v2628, 0
        %v2634 = vsel %vm2422, %v2629, 0
        %2636 = vmatprep.subr.bf16.mxu0 0
        %2637 = vmatpush1.bf16.msra.mxu0 %v2502
        %2638 = vmatprep.subr.bf16.mxu0 0
        %2639 = vmatpush1.bf16.msra.mxu0 %v2503
        %2640 = vmatprep.subr.bf16.mxu0 0
        %2641 = vmatpush1.bf16.msra.mxu0 0
        %2642 = vmatprep.subr.bf16.mxu0 0
        %2643 = vmatpush1.bf16.msra.mxu0 0
        %2644 = vmatprep.subr.bf16.mxu0 0
        %2645 = vmatpush1.bf16.msra.mxu0 0
        %2646 = vmatprep.subr.bf16.mxu0 0
        %2647 = vmatpush1.bf16.msra.mxu0 0
        %2648 = vmatprep.subr.bf16.mxu0 0
        %2649 = vmatpush1.bf16.msra.mxu0 0
        %2650 = vmatprep.subr.bf16.mxu0 0
        %2651 = vmatpush1.bf16.msra.mxu0 0
        %2652 = vmatprep.subr.bf16.mxu0 0
        %2653 = vmatpush1.bf16.msra.mxu0 0
        %2654 = vmatprep.subr.bf16.mxu0 0
        %2655 = vmatpush1.bf16.msra.mxu0 0
        %2656 = vmatprep.subr.bf16.mxu0 0
        %2657 = vmatpush1.bf16.msra.mxu0 0
        %2658 = vmatprep.subr.bf16.mxu0 0
        %2659 = vmatpush1.bf16.msra.mxu0 0
        %2660 = vmatprep.subr.bf16.mxu0 0
        %2661 = vmatpush1.bf16.msra.mxu0 0
        %2662 = vmatprep.subr.bf16.mxu0 0
        %2663 = vmatpush1.bf16.msra.mxu0 0
        %2664 = vmatprep.subr.bf16.mxu0 0
        %2665 = vmatpush1.bf16.msra.mxu0 0
        %2666 = vmatprep.subr.bf16.mxu0 0
        %2667 = vmatpush1.bf16.msra.mxu0 0
        %2668 = vmatprep.mubr.bf16.mxu0 0
        %2669 = vmatmul.mubr.bf16.gmra.mrb[0].mxu0 %v2631
        %v2670 = vpop.f32.mrb[0].mxu0
        %v2671 = vadd.f32 0.0, %v2670
        %v2672 = vpop.f32.mrb[0].mxu0
        %v2673 = vpop.f32.mrb[0].mxu0
        %v2674 = vadd.f32 0.0, %v2673
        %v2675 = vpop.f32.mrb[0].mxu0
        %2676 = vmatprep.mubr.bf16.mxu0 0
        %2677 = vmatmul.mubr.bf16.gmra.mrb[0].mxu0 %v2634
        %v2678 = vpop.f32.mrb[0].mxu0
        %v2679 = vadd.f32 0.0, %v2678
        %v2680 = vpop.f32.mrb[0].mxu0
        %v2681 = vpop.f32.mrb[0].mxu0
        %v2682 = vadd.f32 0.0, %v2681
        %v2683 = vpop.f32.mrb[0].mxu0
        %2684 = vdwg.mxu0
        %v2686 = vsel %vm2422, %v2477, 0
        %v2689 = vsel %vm2422, %v2478, 0
        %2691 = vmatprep.subr.bf16.mxu0 0
        %2692 = vmatpush1.bf16.msra.mxu0 %v2569
        %2693 = vmatprep.subr.bf16.mxu0 0
        %2694 = vmatpush1.bf16.msra.mxu0 %v2570
        %2695 = vmatprep.subr.bf16.mxu0 0
        %2696 = vmatpush1.bf16.msra.mxu0 0
        %2697 = vmatprep.subr.bf16.mxu0 0
        %2698 = vmatpush1.bf16.msra.mxu0 0
        %2699 = vmatprep.subr.bf16.mxu0 0
        %2700 = vmatpush1.bf16.msra.mxu0 0
        %2701 = vmatprep.subr.bf16.mxu0 0
        %2702 = vmatpush1.bf16.msra.mxu0 0
        %2703 = vmatprep.subr.bf16.mxu0 0
        %2704 = vmatpush1.bf16.msra.mxu0 0
        %2705 = vmatprep.subr.bf16.mxu0 0
        %2706 = vmatpush1.bf16.msra.mxu0 0
        %2707 = vmatprep.subr.bf16.mxu0 0
        %2708 = vmatpush1.bf16.msra.mxu0 0
        %2709 = vmatprep.subr.bf16.mxu0 0
        %2710 = vmatpush1.bf16.msra.mxu0 0
        %2711 = vmatprep.subr.bf16.mxu0 0
        %2712 = vmatpush1.bf16.msra.mxu0 0
        %2713 = vmatprep.subr.bf16.mxu0 0
        %2714 = vmatpush1.bf16.msra.mxu0 0
        %2715 = vmatprep.subr.bf16.mxu0 0
        %2716 = vmatpush1.bf16.msra.mxu0 0
        %2717 = vmatprep.subr.bf16.mxu0 0
        %2718 = vmatpush1.bf16.msra.mxu0 0
        %2719 = vmatprep.subr.bf16.mxu0 0
        %2720 = vmatpush1.bf16.msra.mxu0 0
        %2721 = vmatprep.subr.bf16.mxu0 0
        %2722 = vmatpush1.bf16.msra.mxu0 0
        %2723 = vmatprep.mubr.bf16.mxu0 0
        %2724 = vmatmul.mubr.bf16.gmra.mrb[0].mxu0 %v2686
        %v2725 = vpop.f32.mrb[0].mxu0
        %v2726 = vadd.f32 %v2671, %v2725
        %v2727 = vpop.f32.mrb[0].mxu0
        %v2728 = vpop.f32.mrb[0].mxu0
        %v2729 = vadd.f32 %v2674, %v2728
        %v2730 = vpop.f32.mrb[0].mxu0
        %2731 = vmatprep.mubr.bf16.mxu0 0
        %2732 = vmatmul.mubr.bf16.gmra.mrb[0].mxu0 %v2689
        %v2733 = vpop.f32.mrb[0].mxu0
        %v2734 = vadd.f32 %v2679, %v2733
        %v2735 = vpop.f32.mrb[0].mxu0
        %v2736 = vpop.f32.mrb[0].mxu0
        %v2737 = vadd.f32 %v2682, %v2736
        %v2738 = vpop.f32.mrb[0].mxu0
        %2739 = vdwg.mxu0
        %s2740 = scalar_lea.vmem %s3, 32
        %v2741 = vld [vmem:[%s2740] sm:$0xf]
        %v2742 = vld [vmem:[%s2740 + $0x4] sm:$0xf]
        %v2743 = vld [vmem:[%s2740 + $0x8] sm:$0xf]
        %v2744 = vld [vmem:[%s2740 + $0xc] sm:$0xf]
        %v2745 = vld [vmem:[#allocation2 + $0x9] sm:$0xff]
        %v2746 = vld [vmem:[#allocation2 + $0x39] sm:$0xff]
        %v2747 = vld [vmem:[#allocation2 + $0x69] sm:$0xff]
        %v2748 = vld [vmem:[#allocation2 + $0x99] sm:$0xff]
        %v2749 = vld [vmem:[%s2454 + $0x9] sm:$0xff]
        %v2750 = vld [vmem:[%s2454 + $0x39] sm:$0xff]
        %v2751 = vld [vmem:[%s2454 + $0x69] sm:$0xff]
        %v2752 = vld [vmem:[%s2454 + $0x99] sm:$0xff]
        %v2753 = vpack.c.bf16 %v2746, %v2745
        %v2754 = vpack.c.bf16 %v2748, %v2747
        %v2759 = vunpack.c.l.b16 %v2741
        %v2760 = vunpack.c.l.b16 %v2742
        %v2761 = vunpack.c.l.b16 %v2743
        %v2762 = vunpack.c.l.b16 %v2744
        %v2763 = vpack.c.b16 %v2760, %v2759
        %v2764 = vpack.c.b16 %v2762, %v2761
        %v2768 = vsel %vm2422, %v2753, 0
        %v2771 = vsel %vm2422, %v2754, 0
        %2773 = vmatprep.subr.bf16.mxu0 0
        %2774 = vmatpush1.bf16.msra.mxu0 %v2763
        %2775 = vmatprep.subr.bf16.mxu0 0
        %2776 = vmatpush1.bf16.msra.mxu0 %v2764
        %2777 = vmatprep.subr.bf16.mxu0 0
        %2778 = vmatpush1.bf16.msra.mxu0 0
        %2779 = vmatprep.subr.bf16.mxu0 0
        %2780 = vmatpush1.bf16.msra.mxu0 0
        %2781 = vmatprep.subr.bf16.mxu0 0
        %2782 = vmatpush1.bf16.msra.mxu0 0
        %2783 = vmatprep.subr.bf16.mxu0 0
        %2784 = vmatpush1.bf16.msra.mxu0 0
        %2785 = vmatprep.subr.bf16.mxu0 0
        %2786 = vmatpush1.bf16.msra.mxu0 0
        %2787 = vmatprep.subr.bf16.mxu0 0
        %2788 = vmatpush1.bf16.msra.mxu0 0
        %2789 = vmatprep.subr.bf16.mxu0 0
        %2790 = vmatpush1.bf16.msra.mxu0 0
        %2791 = vmatprep.subr.bf16.mxu0 0
        %2792 = vmatpush1.bf16.msra.mxu0 0
        %2793 = vmatprep.subr.bf16.mxu0 0
        %2794 = vmatpush1.bf16.msra.mxu0 0
        %2795 = vmatprep.subr.bf16.mxu0 0
        %2796 = vmatpush1.bf16.msra.mxu0 0
        %2797 = vmatprep.subr.bf16.mxu0 0
        %2798 = vmatpush1.bf16.msra.mxu0 0
        %2799 = vmatprep.subr.bf16.mxu0 0
        %2800 = vmatpush1.bf16.msra.mxu0 0
        %2801 = vmatprep.subr.bf16.mxu0 0
        %2802 = vmatpush1.bf16.msra.mxu0 0
        %2803 = vmatprep.subr.bf16.mxu0 0
        %2804 = vmatpush1.bf16.msra.mxu0 0
        %2805 = vmatprep.mubr.bf16.mxu0 0
        %2806 = vmatmul.mubr.bf16.gmra.mrb[0].mxu0 %v2768
        %v2807 = vpop.f32.mrb[0].mxu0
        %v2808 = vadd.f32 0.0, %v2807
        %v2809 = vpop.f32.mrb[0].mxu0
        %v2810 = vpop.f32.mrb[0].mxu0
        %v2811 = vadd.f32 0.0, %v2810
        %v2812 = vpop.f32.mrb[0].mxu0
        %2813 = vmatprep.mubr.bf16.mxu0 0
        %2814 = vmatmul.mubr.bf16.gmra.mrb[0].mxu0 %v2771
        %v2815 = vpop.f32.mrb[0].mxu0
        %v2816 = vadd.f32 0.0, %v2815
        %v2817 = vpop.f32.mrb[0].mxu0
        %v2818 = vpop.f32.mrb[0].mxu0
        %v2819 = vadd.f32 0.0, %v2818
        %v2820 = vpop.f32.mrb[0].mxu0
        %2821 = vdwg.mxu0
        %v2822 = vadd.f32 %v2614, %v2808
        %v2823 = vadd.f32 %v2617, %v2811
        %v2824 = vadd.f32 %v2622, %v2816
        %v2825 = vadd.f32 %v2625, %v2819
        %v2826 = vpack.c.bf16 %v2750, %v2749
        %v2827 = vpack.c.bf16 %v2752, %v2751
        %v2829 = vsel %vm2422, %v2826, 0
        %v2832 = vsel %vm2422, %v2827, 0
        %2834 = vmatprep.subr.bf16.mxu0 0
        %2835 = vmatpush1.bf16.msra.mxu0 %v2763
        %2836 = vmatprep.subr.bf16.mxu0 0
        %2837 = vmatpush1.bf16.msra.mxu0 %v2764
        %2838 = vmatprep.subr.bf16.mxu0 0
        %2839 = vmatpush1.bf16.msra.mxu0 0
        %2840 = vmatprep.subr.bf16.mxu0 0
        %2841 = vmatpush1.bf16.msra.mxu0 0
        %2842 = vmatprep.subr.bf16.mxu0 0
        %2843 = vmatpush1.bf16.msra.mxu0 0
        %2844 = vmatprep.subr.bf16.mxu0 0
        %2845 = vmatpush1.bf16.msra.mxu0 0
        %2846 = vmatprep.subr.bf16.mxu0 0
        %2847 = vmatpush1.bf16.msra.mxu0 0
        %2848 = vmatprep.subr.bf16.mxu0 0
        %2849 = vmatpush1.bf16.msra.mxu0 0
        %2850 = vmatprep.subr.bf16.mxu0 0
        %2851 = vmatpush1.bf16.msra.mxu0 0
        %2852 = vmatprep.subr.bf16.mxu0 0
        %2853 = vmatpush1.bf16.msra.mxu0 0
        %2854 = vmatprep.subr.bf16.mxu0 0
        %2855 = vmatpush1.bf16.msra.mxu0 0
        %2856 = vmatprep.subr.bf16.mxu0 0
        %2857 = vmatpush1.bf16.msra.mxu0 0
        %2858 = vmatprep.subr.bf16.mxu0 0
        %2859 = vmatpush1.bf16.msra.mxu0 0
        %2860 = vmatprep.subr.bf16.mxu0 0
        %2861 = vmatpush1.bf16.msra.mxu0 0
        %2862 = vmatprep.subr.bf16.mxu0 0
        %2863 = vmatpush1.bf16.msra.mxu0 0
        %2864 = vmatprep.subr.bf16.mxu0 0
        %2865 = vmatpush1.bf16.msra.mxu0 0
        %2866 = vmatprep.mubr.bf16.mxu0 0
        %2867 = vmatmul.mubr.bf16.gmra.mrb[0].mxu0 %v2829
        %v2868 = vpop.f32.mrb[0].mxu0
        %v2869 = vadd.f32 0.0, %v2868
        %v2870 = vpop.f32.mrb[0].mxu0
        %v2871 = vpop.f32.mrb[0].mxu0
        %v2872 = vadd.f32 0.0, %v2871
        %v2873 = vpop.f32.mrb[0].mxu0
        %2874 = vmatprep.mubr.bf16.mxu0 0
        %2875 = vmatmul.mubr.bf16.gmra.mrb[0].mxu0 %v2832
        %v2876 = vpop.f32.mrb[0].mxu0
        %v2877 = vadd.f32 0.0, %v2876
        %v2878 = vpop.f32.mrb[0].mxu0
        %v2879 = vpop.f32.mrb[0].mxu0
        %v2880 = vadd.f32 0.0, %v2879
        %v2881 = vpop.f32.mrb[0].mxu0
        %2882 = vdwg.mxu0
        %v2883 = vadd.f32 %v2726, %v2869
        %v2884 = vadd.f32 %v2729, %v2872
        %v2885 = vadd.f32 %v2734, %v2877
        %v2886 = vadd.f32 %v2737, %v2880
        %s2887 = scalar_lea.vmem %s3, 48
        %v2888 = vld [vmem:[%s2887] sm:$0xf]
        %v2889 = vld [vmem:[%s2887 + $0x4] sm:$0xf]
        %v2890 = vld [vmem:[%s2887 + $0x8] sm:$0xf]
        %v2891 = vld [vmem:[%s2887 + $0xc] sm:$0xf]
        %s2892 = scalar_lea.vmem [#allocation2], 48
        %v2893 = vld [vmem:[%s2892 + $0x7] sm:$0xff]
        %v2894 = vld [vmem:[%s2892 + $0x37] sm:$0xff]
        %v2895 = vld [vmem:[%s2892 + $0x67] sm:$0xff]
        %v2896 = vld [vmem:[%s2892 + $0x97] sm:$0xff]
        %v2901 = vunpack.c.l.b16 %v2888
        %v2902 = vunpack.c.l.b16 %v2889
        %v2903 = vunpack.c.l.b16 %v2890
        %v2904 = vunpack.c.l.b16 %v2891
        %v2905 = vpack.c.b16 %v2902, %v2901
        %v2906 = vpack.c.b16 %v2904, %v2903
        %2909 = vmatprep.subr.bf16.mxu0 0
        %2910 = vmatpush1.bf16.msra.mxu0 %v2905
        %2911 = vmatprep.subr.bf16.mxu0 0
        %2912 = vmatpush1.bf16.msra.mxu0 %v2906
        %2913 = vmatprep.subr.bf16.mxu0 0
        %2914 = vmatpush1.bf16.msra.mxu0 0
        %2915 = vmatprep.subr.bf16.mxu0 0
        %2916 = vmatpush1.bf16.msra.mxu0 0
        %2917 = vmatprep.subr.bf16.mxu0 0
        %2918 = vmatpush1.bf16.msra.mxu0 0
        %2919 = vmatprep.subr.bf16.mxu0 0
        %2920 = vmatpush1.bf16.msra.mxu0 0
        %2921 = vmatprep.subr.bf16.mxu0 0
        %2922 = vmatpush1.bf16.msra.mxu0 0
        %2923 = vmatprep.subr.bf16.mxu0 0
        %2924 = vmatpush1.bf16.msra.mxu0 0
        %2925 = vmatprep.subr.bf16.mxu0 0
        %2926 = vmatpush1.bf16.msra.mxu0 0
        %2927 = vmatprep.subr.bf16.mxu0 0
        %2928 = vmatpush1.bf16.msra.mxu0 0
        %2929 = vmatprep.subr.bf16.mxu0 0
        %2930 = vmatpush1.bf16.msra.mxu0 0
        %2931 = vmatprep.subr.bf16.mxu0 0
        %2932 = vmatpush1.bf16.msra.mxu0 0
        %2933 = vmatprep.subr.bf16.mxu0 0
        %2934 = vmatpush1.bf16.msra.mxu0 0
        %2935 = vmatprep.subr.bf16.mxu0 0
        %2936 = vmatpush1.bf16.msra.mxu0 0
        %2937 = vmatprep.subr.bf16.mxu0 0
        %2938 = vmatpush1.bf16.msra.mxu0 0
        %2939 = vmatprep.subr.bf16.mxu0 0
        %2940 = vmatpush1.bf16.msra.mxu0 0
        %2941 = vmatprep.mubr.bf16.mxu0 0
        %2942 = vmatmul.mubr.bf16.gmra.mrb[0].mxu0 %v2686
        %v2943 = vpop.f32.mrb[0].mxu0
        %v2944 = vadd.f32 0.0, %v2943
        %v2945 = vpop.f32.mrb[0].mxu0
        %v2946 = vpop.f32.mrb[0].mxu0
        %v2947 = vadd.f32 0.0, %v2946
        %v2948 = vpop.f32.mrb[0].mxu0
        %2949 = vmatprep.mubr.bf16.mxu0 0
        %2950 = vmatmul.mubr.bf16.gmra.mrb[0].mxu0 %v2689
        %v2951 = vpop.f32.mrb[0].mxu0
        %v2952 = vadd.f32 0.0, %v2951
        %v2953 = vpop.f32.mrb[0].mxu0
        %v2954 = vpop.f32.mrb[0].mxu0
        %v2955 = vadd.f32 0.0, %v2954
        %v2956 = vpop.f32.mrb[0].mxu0
        %2957 = vdwg.mxu0
        %v2958 = vadd.f32 %v2822, %v2944
        %v2959 = vadd.f32 %v2823, %v2947
        %v2960 = vadd.f32 %v2824, %v2952
        %v2961 = vadd.f32 %v2825, %v2955
        %v2962 = vpack.c.bf16 %v2894, %v2893
        %v2963 = vpack.c.bf16 %v2896, %v2895
        %v2965 = vsel %vm2422, %v2962, 0
        %v2968 = vsel %vm2422, %v2963, 0
        %2970 = vmatprep.subr.bf16.mxu0 0
        %2971 = vmatpush1.bf16.msra.mxu0 %v2905
        %2972 = vmatprep.subr.bf16.mxu0 0
        %2973 = vmatpush1.bf16.msra.mxu0 %v2906
        %2974 = vmatprep.subr.bf16.mxu0 0
        %2975 = vmatpush1.bf16.msra.mxu0 0
        %2976 = vmatprep.subr.bf16.mxu0 0
        %2977 = vmatpush1.bf16.msra.mxu0 0
        %2978 = vmatprep.subr.bf16.mxu0 0
        %2979 = vmatpush1.bf16.msra.mxu0 0
        %2980 = vmatprep.subr.bf16.mxu0 0
        %2981 = vmatpush1.bf16.msra.mxu0 0
        %2982 = vmatprep.subr.bf16.mxu0 0
        %2983 = vmatpush1.bf16.msra.mxu0 0
        %2984 = vmatprep.subr.bf16.mxu0 0
        %2985 = vmatpush1.bf16.msra.mxu0 0
        %2986 = vmatprep.subr.bf16.mxu0 0
        %2987 = vmatpush1.bf16.msra.mxu0 0
        %2988 = vmatprep.subr.bf16.mxu0 0
        %2989 = vmatpush1.bf16.msra.mxu0 0
        %2990 = vmatprep.subr.bf16.mxu0 0
        %2991 = vmatpush1.bf16.msra.mxu0 0
        %2992 = vmatprep.subr.bf16.mxu0 0
        %2993 = vmatpush1.bf16.msra.mxu0 0
        %2994 = vmatprep.subr.bf16.mxu0 0
        %2995 = vmatpush1.bf16.msra.mxu0 0
        %2996 = vmatprep.subr.bf16.mxu0 0
        %2997 = vmatpush1.bf16.msra.mxu0 0
        %2998 = vmatprep.subr.bf16.mxu0 0
        %2999 = vmatpush1.bf16.msra.mxu0 0
        %3000 = vmatprep.subr.bf16.mxu0 0
        %3001 = vmatpush1.bf16.msra.mxu0 0
        %3002 = vmatprep.mubr.bf16.mxu0 0
        %3003 = vmatmul.mubr.bf16.gmra.mrb[0].mxu0 %v2965
        %v3004 = vpop.f32.mrb[0].mxu0
        %v3005 = vadd.f32 0.0, %v3004
        %v3006 = vpop.f32.mrb[0].mxu0
        %v3007 = vpop.f32.mrb[0].mxu0
        %v3008 = vadd.f32 0.0, %v3007
        %v3009 = vpop.f32.mrb[0].mxu0
        %3010 = vmatprep.mubr.bf16.mxu0 0
        %3011 = vmatmul.mubr.bf16.gmra.mrb[0].mxu0 %v2968
        %v3012 = vpop.f32.mrb[0].mxu0
        %v3013 = vadd.f32 0.0, %v3012
        %v3014 = vpop.f32.mrb[0].mxu0
        %v3015 = vpop.f32.mrb[0].mxu0
        %v3016 = vadd.f32 0.0, %v3015
        %v3017 = vpop.f32.mrb[0].mxu0
        %3018 = vdwg.mxu0
        %v3019 = vadd.f32 %v2883, %v3005
        %v3020 = vadd.f32 %v2884, %v3008
        %v3021 = vadd.f32 %v2885, %v3013
        %v3022 = vadd.f32 %v2886, %v3016
        %s3023 = scalar_lea.vmem %s3, 64
        %v3024 = vld [vmem:[%s3023] sm:$0xf]
        %v3025 = vld [vmem:[%s3023 + $0x4] sm:$0xf]
        %v3026 = vld [vmem:[%s3023 + $0x8] sm:$0xf]
        %v3027 = vld [vmem:[%s3023 + $0xc] sm:$0xf]
        %v3028 = vld [vmem:[%s2892 + $0x8] sm:$0xff]
        %v3029 = vld [vmem:[%s2892 + $0x38] sm:$0xff]
        %v3030 = vld [vmem:[%s2892 + $0x68] sm:$0xff]
        %v3031 = vld [vmem:[%s2892 + $0x98] sm:$0xff]
        %v3036 = vunpack.c.l.b16 %v3024
        %v3037 = vunpack.c.l.b16 %v3025
        %v3038 = vunpack.c.l.b16 %v3026
        %v3039 = vunpack.c.l.b16 %v3027
        %v3040 = vpack.c.b16 %v3037, %v3036
        %v3041 = vpack.c.b16 %v3039, %v3038
        %3044 = vmatprep.subr.bf16.mxu0 0
        %3045 = vmatpush1.bf16.msra.mxu0 %v3040
        %3046 = vmatprep.subr.bf16.mxu0 0
        %3047 = vmatpush1.bf16.msra.mxu0 %v3041
        %3048 = vmatprep.subr.bf16.mxu0 0
        %3049 = vmatpush1.bf16.msra.mxu0 0
        %3050 = vmatprep.subr.bf16.mxu0 0
        %3051 = vmatpush1.bf16.msra.mxu0 0
        %3052 = vmatprep.subr.bf16.mxu0 0
        %3053 = vmatpush1.bf16.msra.mxu0 0
        %3054 = vmatprep.subr.bf16.mxu0 0
        %3055 = vmatpush1.bf16.msra.mxu0 0
        %3056 = vmatprep.subr.bf16.mxu0 0
        %3057 = vmatpush1.bf16.msra.mxu0 0
        %3058 = vmatprep.subr.bf16.mxu0 0
        %3059 = vmatpush1.bf16.msra.mxu0 0
        %3060 = vmatprep.subr.bf16.mxu0 0
        %3061 = vmatpush1.bf16.msra.mxu0 0
        %3062 = vmatprep.subr.bf16.mxu0 0
        %3063 = vmatpush1.bf16.msra.mxu0 0
        %3064 = vmatprep.subr.bf16.mxu0 0
        %3065 = vmatpush1.bf16.msra.mxu0 0
        %3066 = vmatprep.subr.bf16.mxu0 0
        %3067 = vmatpush1.bf16.msra.mxu0 0
        %3068 = vmatprep.subr.bf16.mxu0 0
        %3069 = vmatpush1.bf16.msra.mxu0 0
        %3070 = vmatprep.subr.bf16.mxu0 0
        %3071 = vmatpush1.bf16.msra.mxu0 0
        %3072 = vmatprep.subr.bf16.mxu0 0
        %3073 = vmatpush1.bf16.msra.mxu0 0
        %3074 = vmatprep.subr.bf16.mxu0 0
        %3075 = vmatpush1.bf16.msra.mxu0 0
        %3076 = vmatprep.mubr.bf16.mxu0 0
        %3077 = vmatmul.mubr.bf16.gmra.mrb[0].mxu0 %v2631
        %v3078 = vpop.f32.mrb[0].mxu0
        %v3079 = vadd.f32 0.0, %v3078
        %v3080 = vpop.f32.mrb[0].mxu0
        %v3081 = vpop.f32.mrb[0].mxu0
        %v3082 = vadd.f32 0.0, %v3081
        %v3083 = vpop.f32.mrb[0].mxu0
        %3084 = vmatprep.mubr.bf16.mxu0 0
        %3085 = vmatmul.mubr.bf16.gmra.mrb[0].mxu0 %v2634
        %v3086 = vpop.f32.mrb[0].mxu0
        %v3087 = vadd.f32 0.0, %v3086
        %v3088 = vpop.f32.mrb[0].mxu0
        %v3089 = vpop.f32.mrb[0].mxu0
        %v3090 = vadd.f32 0.0, %v3089
        %v3091 = vpop.f32.mrb[0].mxu0
        %3092 = vdwg.mxu0
        %v3093 = vadd.f32 %v2958, %v3079
        %v3094 = vadd.f32 %v2959, %v3082
        %v3095 = vadd.f32 %v2960, %v3087
        %v3096 = vadd.f32 %v2961, %v3090
        %v3097 = vpack.c.bf16 %v3029, %v3028
        %v3098 = vpack.c.bf16 %v3031, %v3030
        %v3100 = vsel %vm2422, %v3097, 0
        %v3103 = vsel %vm2422, %v3098, 0
        %3105 = vmatprep.subr.bf16.mxu0 0
        %3106 = vmatpush1.bf16.msra.mxu0 %v3040
        %3107 = vmatprep.subr.bf16.mxu0 0
        %3108 = vmatpush1.bf16.msra.mxu0 %v3041
        %3109 = vmatprep.subr.bf16.mxu0 0
        %3110 = vmatpush1.bf16.msra.mxu0 0
        %3111 = vmatprep.subr.bf16.mxu0 0
        %3112 = vmatpush1.bf16.msra.mxu0 0
        %3113 = vmatprep.subr.bf16.mxu0 0
        %3114 = vmatpush1.bf16.msra.mxu0 0
        %3115 = vmatprep.subr.bf16.mxu0 0
        %3116 = vmatpush1.bf16.msra.mxu0 0
        %3117 = vmatprep.subr.bf16.mxu0 0
        %3118 = vmatpush1.bf16.msra.mxu0 0
        %3119 = vmatprep.subr.bf16.mxu0 0
        %3120 = vmatpush1.bf16.msra.mxu0 0
        %3121 = vmatprep.subr.bf16.mxu0 0
        %3122 = vmatpush1.bf16.msra.mxu0 0
        %3123 = vmatprep.subr.bf16.mxu0 0
        %3124 = vmatpush1.bf16.msra.mxu0 0
        %3125 = vmatprep.subr.bf16.mxu0 0
        %3126 = vmatpush1.bf16.msra.mxu0 0
        %3127 = vmatprep.subr.bf16.mxu0 0
        %3128 = vmatpush1.bf16.msra.mxu0 0
        %3129 = vmatprep.subr.bf16.mxu0 0
        %3130 = vmatpush1.bf16.msra.mxu0 0
        %3131 = vmatprep.subr.bf16.mxu0 0
        %3132 = vmatpush1.bf16.msra.mxu0 0
        %3133 = vmatprep.subr.bf16.mxu0 0
        %3134 = vmatpush1.bf16.msra.mxu0 0
        %3135 = vmatprep.subr.bf16.mxu0 0
        %3136 = vmatpush1.bf16.msra.mxu0 0
        %3137 = vmatprep.mubr.bf16.mxu0 0
        %3138 = vmatmul.mubr.bf16.gmra.mrb[0].mxu0 %v3100
        %v3139 = vpop.f32.mrb[0].mxu0
        %v3140 = vadd.f32 0.0, %v3139
        %v3141 = vpop.f32.mrb[0].mxu0
        %v3142 = vpop.f32.mrb[0].mxu0
        %v3143 = vadd.f32 0.0, %v3142
        %v3144 = vpop.f32.mrb[0].mxu0
        %3145 = vmatprep.mubr.bf16.mxu0 0
        %3146 = vmatmul.mubr.bf16.gmra.mrb[0].mxu0 %v3103
        %v3147 = vpop.f32.mrb[0].mxu0
        %v3148 = vadd.f32 0.0, %v3147
        %v3149 = vpop.f32.mrb[0].mxu0
        %v3150 = vpop.f32.mrb[0].mxu0
        %v3151 = vadd.f32 0.0, %v3150
        %v3152 = vpop.f32.mrb[0].mxu0
        %3153 = vdwg.mxu0
        %v3154 = vadd.f32 %v3019, %v3140
        %v3155 = vadd.f32 %v3020, %v3143
        %v3156 = vadd.f32 %v3021, %v3148
        %v3157 = vadd.f32 %v3022, %v3151
        %s3158 = scalar_lea.vmem %s3, 80
        %v3159 = vld [vmem:[%s3158] sm:$0xf]
        %v3160 = vld [vmem:[%s3158 + $0x4] sm:$0xf]
        %v3161 = vld [vmem:[%s3158 + $0x8] sm:$0xf]
        %v3162 = vld [vmem:[%s3158 + $0xc] sm:$0xf]
        %v3163 = vld [vmem:[%s2892 + $0x9] sm:$0xff]
        %v3164 = vld [vmem:[%s2892 + $0x39] sm:$0xff]
        %v3165 = vld [vmem:[%s2892 + $0x69] sm:$0xff]
        %v3166 = vld [vmem:[%s2892 + $0x99] sm:$0xff]
        %v3171 = vunpack.c.l.b16 %v3159
        %v3172 = vunpack.c.l.b16 %v3160
        %v3173 = vunpack.c.l.b16 %v3161
        %v3174 = vunpack.c.l.b16 %v3162
        %v3175 = vpack.c.b16 %v3172, %v3171
        %v3176 = vpack.c.b16 %v3174, %v3173
        %3179 = vmatprep.subr.bf16.mxu0 0
        %3180 = vmatpush1.bf16.msra.mxu0 %v3175
        %3181 = vmatprep.subr.bf16.mxu0 0
        %3182 = vmatpush1.bf16.msra.mxu0 %v3176
        %3183 = vmatprep.subr.bf16.mxu0 0
        %3184 = vmatpush1.bf16.msra.mxu0 0
        %3185 = vmatprep.subr.bf16.mxu0 0
        %3186 = vmatpush1.bf16.msra.mxu0 0
        %3187 = vmatprep.subr.bf16.mxu0 0
        %3188 = vmatpush1.bf16.msra.mxu0 0
        %3189 = vmatprep.subr.bf16.mxu0 0
        %3190 = vmatpush1.bf16.msra.mxu0 0
        %3191 = vmatprep.subr.bf16.mxu0 0
        %3192 = vmatpush1.bf16.msra.mxu0 0
        %3193 = vmatprep.subr.bf16.mxu0 0
        %3194 = vmatpush1.bf16.msra.mxu0 0
        %3195 = vmatprep.subr.bf16.mxu0 0
        %3196 = vmatpush1.bf16.msra.mxu0 0
        %3197 = vmatprep.subr.bf16.mxu0 0
        %3198 = vmatpush1.bf16.msra.mxu0 0
        %3199 = vmatprep.subr.bf16.mxu0 0
        %3200 = vmatpush1.bf16.msra.mxu0 0
        %3201 = vmatprep.subr.bf16.mxu0 0
        %3202 = vmatpush1.bf16.msra.mxu0 0
        %3203 = vmatprep.subr.bf16.mxu0 0
        %3204 = vmatpush1.bf16.msra.mxu0 0
        %3205 = vmatprep.subr.bf16.mxu0 0
        %3206 = vmatpush1.bf16.msra.mxu0 0
        %3207 = vmatprep.subr.bf16.mxu0 0
        %3208 = vmatpush1.bf16.msra.mxu0 0
        %3209 = vmatprep.subr.bf16.mxu0 0
        %3210 = vmatpush1.bf16.msra.mxu0 0
        %3211 = vmatprep.mubr.bf16.mxu0 0
        %3212 = vmatmul.mubr.bf16.gmra.mrb[0].mxu0 %v2829
        %v3213 = vpop.f32.mrb[0].mxu0
        %v3214 = vadd.f32 0.0, %v3213
        %v3215 = vpop.f32.mrb[0].mxu0
        %v3216 = vpop.f32.mrb[0].mxu0
        %v3217 = vadd.f32 0.0, %v3216
        %v3218 = vpop.f32.mrb[0].mxu0
        %3219 = vmatprep.mubr.bf16.mxu0 0
        %3220 = vmatmul.mubr.bf16.gmra.mrb[0].mxu0 %v2832
        %v3221 = vpop.f32.mrb[0].mxu0
        %v3222 = vadd.f32 0.0, %v3221
        %v3223 = vpop.f32.mrb[0].mxu0
        %v3224 = vpop.f32.mrb[0].mxu0
        %v3225 = vadd.f32 0.0, %v3224
        %v3226 = vpop.f32.mrb[0].mxu0
        %3227 = vdwg.mxu0
        %v3228 = vadd.f32 %v3093, %v3214
        %v3229 = vadd.f32 %v3094, %v3217
        %v3230 = vadd.f32 %v3095, %v3222
        %v3231 = vadd.f32 %v3096, %v3225
        %v3232 = vpack.c.bf16 %v3164, %v3163
        %v3233 = vpack.c.bf16 %v3166, %v3165
        %v3235 = vsel %vm2422, %v3232, 0
        %v3238 = vsel %vm2422, %v3233, 0
        %3240 = vmatprep.subr.bf16.mxu0 0
        %3241 = vmatpush1.bf16.msra.mxu0 %v3175
        %3242 = vmatprep.subr.bf16.mxu0 0
        %3243 = vmatpush1.bf16.msra.mxu0 %v3176
        %3244 = vmatprep.subr.bf16.mxu0 0
        %3245 = vmatpush1.bf16.msra.mxu0 0
        %3246 = vmatprep.subr.bf16.mxu0 0
        %3247 = vmatpush1.bf16.msra.mxu0 0
        %3248 = vmatprep.subr.bf16.mxu0 0
        %3249 = vmatpush1.bf16.msra.mxu0 0
        %3250 = vmatprep.subr.bf16.mxu0 0
        %3251 = vmatpush1.bf16.msra.mxu0 0
        %3252 = vmatprep.subr.bf16.mxu0 0
        %3253 = vmatpush1.bf16.msra.mxu0 0
        %3254 = vmatprep.subr.bf16.mxu0 0
        %3255 = vmatpush1.bf16.msra.mxu0 0
        %3256 = vmatprep.subr.bf16.mxu0 0
        %3257 = vmatpush1.bf16.msra.mxu0 0
        %3258 = vmatprep.subr.bf16.mxu0 0
        %3259 = vmatpush1.bf16.msra.mxu0 0
        %3260 = vmatprep.subr.bf16.mxu0 0
        %3261 = vmatpush1.bf16.msra.mxu0 0
        %3262 = vmatprep.subr.bf16.mxu0 0
        %3263 = vmatpush1.bf16.msra.mxu0 0
        %3264 = vmatprep.subr.bf16.mxu0 0
        %3265 = vmatpush1.bf16.msra.mxu0 0
        %3266 = vmatprep.subr.bf16.mxu0 0
        %3267 = vmatpush1.bf16.msra.mxu0 0
        %3268 = vmatprep.subr.bf16.mxu0 0
        %3269 = vmatpush1.bf16.msra.mxu0 0
        %3270 = vmatprep.subr.bf16.mxu0 0
        %3271 = vmatpush1.bf16.msra.mxu0 0
        %3272 = vmatprep.mubr.bf16.mxu0 0
        %3273 = vmatmul.mubr.bf16.gmra.mrb[0].mxu0 %v3235
        %v3274 = vpop.f32.mrb[0].mxu0
        %v3275 = vadd.f32 0.0, %v3274
        %v3276 = vpop.f32.mrb[0].mxu0
        %v3277 = vpop.f32.mrb[0].mxu0
        %v3278 = vadd.f32 0.0, %v3277
        %v3279 = vpop.f32.mrb[0].mxu0
        %3280 = vmatprep.mubr.bf16.mxu0 0
        %3281 = vmatmul.mubr.bf16.gmra.mrb[0].mxu0 %v3238
        %v3282 = vpop.f32.mrb[0].mxu0
        %v3283 = vadd.f32 0.0, %v3282
        %v3284 = vpop.f32.mrb[0].mxu0
        %v3285 = vpop.f32.mrb[0].mxu0
        %v3286 = vadd.f32 0.0, %v3285
        %v3287 = vpop.f32.mrb[0].mxu0
        %3288 = vdwg.mxu0
        %v3289 = vadd.f32 %v3154, %v3275
        %v3290 = vadd.f32 %v3155, %v3278
        %v3291 = vadd.f32 %v3156, %v3283
        %v3292 = vadd.f32 %v3157, %v3286
        %s3293 = scalar_lea.vmem %s3, 96
        %v3294 = vld [vmem:[%s3293] sm:$0xf]
        %v3295 = vld [vmem:[%s3293 + $0x4] sm:$0xf]
        %v3296 = vld [vmem:[%s3293 + $0x8] sm:$0xf]
        %v3297 = vld [vmem:[%s3293 + $0xc] sm:$0xf]
        %s3298 = scalar_lea.vmem [#allocation2], 72
        %v3299 = vld [vmem:[%s3298 + $0x7] sm:$0xff]
        %v3300 = vld [vmem:[%s3298 + $0x37] sm:$0xff]
        %v3301 = vld [vmem:[%s3298 + $0x67] sm:$0xff]
        %v3302 = vld [vmem:[%s3298 + $0x97] sm:$0xff]
        %v3307 = vunpack.c.l.b16 %v3294
        %v3308 = vunpack.c.l.b16 %v3295
        %v3309 = vunpack.c.l.b16 %v3296
        %v3310 = vunpack.c.l.b16 %v3297
        %v3311 = vpack.c.b16 %v3308, %v3307
        %v3312 = vpack.c.b16 %v3310, %v3309
        %3315 = vmatprep.subr.bf16.mxu0 0
        %3316 = vmatpush1.bf16.msra.mxu0 %v3311
        %3317 = vmatprep.subr.bf16.mxu0 0
        %3318 = vmatpush1.bf16.msra.mxu0 %v3312
        %3319 = vmatprep.subr.bf16.mxu0 0
        %3320 = vmatpush1.bf16.msra.mxu0 0
        %3321 = vmatprep.subr.bf16.mxu0 0
        %3322 = vmatpush1.bf16.msra.mxu0 0
        %3323 = vmatprep.subr.bf16.mxu0 0
        %3324 = vmatpush1.bf16.msra.mxu0 0
        %3325 = vmatprep.subr.bf16.mxu0 0
        %3326 = vmatpush1.bf16.msra.mxu0 0
        %3327 = vmatprep.subr.bf16.mxu0 0
        %3328 = vmatpush1.bf16.msra.mxu0 0
        %3329 = vmatprep.subr.bf16.mxu0 0
        %3330 = vmatpush1.bf16.msra.mxu0 0
        %3331 = vmatprep.subr.bf16.mxu0 0
        %3332 = vmatpush1.bf16.msra.mxu0 0
        %3333 = vmatprep.subr.bf16.mxu0 0
        %3334 = vmatpush1.bf16.msra.mxu0 0
        %3335 = vmatprep.subr.bf16.mxu0 0
        %3336 = vmatpush1.bf16.msra.mxu0 0
        %3337 = vmatprep.subr.bf16.mxu0 0
        %3338 = vmatpush1.bf16.msra.mxu0 0
        %3339 = vmatprep.subr.bf16.mxu0 0
        %3340 = vmatpush1.bf16.msra.mxu0 0
        %3341 = vmatprep.subr.bf16.mxu0 0
        %3342 = vmatpush1.bf16.msra.mxu0 0
        %3343 = vmatprep.subr.bf16.mxu0 0
        %3344 = vmatpush1.bf16.msra.mxu0 0
        %3345 = vmatprep.subr.bf16.mxu0 0
        %3346 = vmatpush1.bf16.msra.mxu0 0
        %3347 = vmatprep.mubr.bf16.mxu0 0
        %3348 = vmatmul.mubr.bf16.gmra.mrb[0].mxu0 %v2965
        %v3349 = vpop.f32.mrb[0].mxu0
        %v3350 = vadd.f32 0.0, %v3349
        %v3351 = vpop.f32.mrb[0].mxu0
        %v3352 = vpop.f32.mrb[0].mxu0
        %v3353 = vadd.f32 0.0, %v3352
        %v3354 = vpop.f32.mrb[0].mxu0
        %3355 = vmatprep.mubr.bf16.mxu0 0
        %3356 = vmatmul.mubr.bf16.gmra.mrb[0].mxu0 %v2968
        %v3357 = vpop.f32.mrb[0].mxu0
        %v3358 = vadd.f32 0.0, %v3357
        %v3359 = vpop.f32.mrb[0].mxu0
        %v3360 = vpop.f32.mrb[0].mxu0
        %v3361 = vadd.f32 0.0, %v3360
        %v3362 = vpop.f32.mrb[0].mxu0
        %3363 = vdwg.mxu0
        %v3364 = vadd.f32 %v3228, %v3350
        %v3365 = vadd.f32 %v3229, %v3353
        %v3366 = vadd.f32 %v3230, %v3358
        %v3367 = vadd.f32 %v3231, %v3361
        %v3368 = vpack.c.bf16 %v3300, %v3299
        %v3369 = vpack.c.bf16 %v3302, %v3301
        %v3371 = vsel %vm2422, %v3368, 0
        %v3374 = vsel %vm2422, %v3369, 0
        %3376 = vmatprep.subr.bf16.mxu0 0
        %3377 = vmatpush1.bf16.msra.mxu0 %v3311
        %3378 = vmatprep.subr.bf16.mxu0 0
        %3379 = vmatpush1.bf16.msra.mxu0 %v3312
        %3380 = vmatprep.subr.bf16.mxu0 0
        %3381 = vmatpush1.bf16.msra.mxu0 0
        %3382 = vmatprep.subr.bf16.mxu0 0
        %3383 = vmatpush1.bf16.msra.mxu0 0
        %3384 = vmatprep.subr.bf16.mxu0 0
        %3385 = vmatpush1.bf16.msra.mxu0 0
        %3386 = vmatprep.subr.bf16.mxu0 0
        %3387 = vmatpush1.bf16.msra.mxu0 0
        %3388 = vmatprep.subr.bf16.mxu0 0
        %3389 = vmatpush1.bf16.msra.mxu0 0
        %3390 = vmatprep.subr.bf16.mxu0 0
        %3391 = vmatpush1.bf16.msra.mxu0 0
        %3392 = vmatprep.subr.bf16.mxu0 0
        %3393 = vmatpush1.bf16.msra.mxu0 0
        %3394 = vmatprep.subr.bf16.mxu0 0
        %3395 = vmatpush1.bf16.msra.mxu0 0
        %3396 = vmatprep.subr.bf16.mxu0 0
        %3397 = vmatpush1.bf16.msra.mxu0 0
        %3398 = vmatprep.subr.bf16.mxu0 0
        %3399 = vmatpush1.bf16.msra.mxu0 0
        %3400 = vmatprep.subr.bf16.mxu0 0
        %3401 = vmatpush1.bf16.msra.mxu0 0
        %3402 = vmatprep.subr.bf16.mxu0 0
        %3403 = vmatpush1.bf16.msra.mxu0 0
        %3404 = vmatprep.subr.bf16.mxu0 0
        %3405 = vmatpush1.bf16.msra.mxu0 0
        %3406 = vmatprep.subr.bf16.mxu0 0
        %3407 = vmatpush1.bf16.msra.mxu0 0
        %3408 = vmatprep.mubr.bf16.mxu0 0
        %3409 = vmatmul.mubr.bf16.gmra.mrb[0].mxu0 %v3371
        %v3410 = vpop.f32.mrb[0].mxu0
        %v3411 = vadd.f32 0.0, %v3410
        %v3412 = vpop.f32.mrb[0].mxu0
        %v3413 = vpop.f32.mrb[0].mxu0
        %v3414 = vadd.f32 0.0, %v3413
        %v3415 = vpop.f32.mrb[0].mxu0
        %3416 = vmatprep.mubr.bf16.mxu0 0
        %3417 = vmatmul.mubr.bf16.gmra.mrb[0].mxu0 %v3374
        %v3418 = vpop.f32.mrb[0].mxu0
        %v3419 = vadd.f32 0.0, %v3418
        %v3420 = vpop.f32.mrb[0].mxu0
        %v3421 = vpop.f32.mrb[0].mxu0
        %v3422 = vadd.f32 0.0, %v3421
        %v3423 = vpop.f32.mrb[0].mxu0
        %3424 = vdwg.mxu0
        %v3425 = vadd.f32 %v3289, %v3411
        %v3426 = vadd.f32 %v3290, %v3414
        %v3427 = vadd.f32 %v3291, %v3419
        %v3428 = vadd.f32 %v3292, %v3422
        %s3429 = scalar_lea.vmem %s3, 112
        %v3430 = vld [vmem:[%s3429] sm:$0xf]
        %v3431 = vld [vmem:[%s3429 + $0x4] sm:$0xf]
        %v3432 = vld [vmem:[%s3429 + $0x8] sm:$0xf]
        %v3433 = vld [vmem:[%s3429 + $0xc] sm:$0xf]
        %v3434 = vld [vmem:[%s3298 + $0x8] sm:$0xff]
        %v3435 = vld [vmem:[%s3298 + $0x38] sm:$0xff]
        %v3436 = vld [vmem:[%s3298 + $0x68] sm:$0xff]
        %v3437 = vld [vmem:[%s3298 + $0x98] sm:$0xff]
        %v3442 = vunpack.c.l.b16 %v3430
        %v3443 = vunpack.c.l.b16 %v3431
        %v3444 = vunpack.c.l.b16 %v3432
        %v3445 = vunpack.c.l.b16 %v3433
        %v3446 = vpack.c.b16 %v3443, %v3442
        %v3447 = vpack.c.b16 %v3445, %v3444
        %3450 = vmatprep.subr.bf16.mxu0 0
        %3451 = vmatpush1.bf16.msra.mxu0 %v3446
        %3452 = vmatprep.subr.bf16.mxu0 0
        %3453 = vmatpush1.bf16.msra.mxu0 %v3447
        %3454 = vmatprep.subr.bf16.mxu0 0
        %3455 = vmatpush1.bf16.msra.mxu0 0
        %3456 = vmatprep.subr.bf16.mxu0 0
        %3457 = vmatpush1.bf16.msra.mxu0 0
        %3458 = vmatprep.subr.bf16.mxu0 0
        %3459 = vmatpush1.bf16.msra.mxu0 0
        %3460 = vmatprep.subr.bf16.mxu0 0
        %3461 = vmatpush1.bf16.msra.mxu0 0
        %3462 = vmatprep.subr.bf16.mxu0 0
        %3463 = vmatpush1.bf16.msra.mxu0 0
        %3464 = vmatprep.subr.bf16.mxu0 0
        %3465 = vmatpush1.bf16.msra.mxu0 0
        %3466 = vmatprep.subr.bf16.mxu0 0
        %3467 = vmatpush1.bf16.msra.mxu0 0
        %3468 = vmatprep.subr.bf16.mxu0 0
        %3469 = vmatpush1.bf16.msra.mxu0 0
        %3470 = vmatprep.subr.bf16.mxu0 0
        %3471 = vmatpush1.bf16.msra.mxu0 0
        %3472 = vmatprep.subr.bf16.mxu0 0
        %3473 = vmatpush1.bf16.msra.mxu0 0
        %3474 = vmatprep.subr.bf16.mxu0 0
        %3475 = vmatpush1.bf16.msra.mxu0 0
        %3476 = vmatprep.subr.bf16.mxu0 0
        %3477 = vmatpush1.bf16.msra.mxu0 0
        %3478 = vmatprep.subr.bf16.mxu0 0
        %3479 = vmatpush1.bf16.msra.mxu0 0
        %3480 = vmatprep.subr.bf16.mxu0 0
        %3481 = vmatpush1.bf16.msra.mxu0 0
        %3482 = vmatprep.mubr.bf16.mxu0 0
        %3483 = vmatmul.mubr.bf16.gmra.mrb[0].mxu0 %v3100
        %v3484 = vpop.f32.mrb[0].mxu0
        %v3485 = vadd.f32 0.0, %v3484
        %v3486 = vpop.f32.mrb[0].mxu0
        %v3487 = vpop.f32.mrb[0].mxu0
        %v3488 = vadd.f32 0.0, %v3487
        %v3489 = vpop.f32.mrb[0].mxu0
        %3490 = vmatprep.mubr.bf16.mxu0 0
        %3491 = vmatmul.mubr.bf16.gmra.mrb[0].mxu0 %v3103
        %v3492 = vpop.f32.mrb[0].mxu0
        %v3493 = vadd.f32 0.0, %v3492
        %v3494 = vpop.f32.mrb[0].mxu0
        %v3495 = vpop.f32.mrb[0].mxu0
        %v3496 = vadd.f32 0.0, %v3495
        %v3497 = vpop.f32.mrb[0].mxu0
        %3498 = vdwg.mxu0
        %v3499 = vadd.f32 %v3364, %v3485
        %v3500 = vadd.f32 %v3365, %v3488
        %v3501 = vadd.f32 %v3366, %v3493
        %v3502 = vadd.f32 %v3367, %v3496
        %v3503 = vpack.c.bf16 %v3435, %v3434
        %v3504 = vpack.c.bf16 %v3437, %v3436
        %v3506 = vsel %vm2422, %v3503, 0
        %v3509 = vsel %vm2422, %v3504, 0
        %3511 = vmatprep.subr.bf16.mxu0 0
        %3512 = vmatpush1.bf16.msra.mxu0 %v3446
        %3513 = vmatprep.subr.bf16.mxu0 0
        %3514 = vmatpush1.bf16.msra.mxu0 %v3447
        %3515 = vmatprep.subr.bf16.mxu0 0
        %3516 = vmatpush1.bf16.msra.mxu0 0
        %3517 = vmatprep.subr.bf16.mxu0 0
        %3518 = vmatpush1.bf16.msra.mxu0 0
        %3519 = vmatprep.subr.bf16.mxu0 0
        %3520 = vmatpush1.bf16.msra.mxu0 0
        %3521 = vmatprep.subr.bf16.mxu0 0
        %3522 = vmatpush1.bf16.msra.mxu0 0
        %3523 = vmatprep.subr.bf16.mxu0 0
        %3524 = vmatpush1.bf16.msra.mxu0 0
        %3525 = vmatprep.subr.bf16.mxu0 0
        %3526 = vmatpush1.bf16.msra.mxu0 0
        %3527 = vmatprep.subr.bf16.mxu0 0
        %3528 = vmatpush1.bf16.msra.mxu0 0
        %3529 = vmatprep.subr.bf16.mxu0 0
        %3530 = vmatpush1.bf16.msra.mxu0 0
        %3531 = vmatprep.subr.bf16.mxu0 0
        %3532 = vmatpush1.bf16.msra.mxu0 0
        %3533 = vmatprep.subr.bf16.mxu0 0
        %3534 = vmatpush1.bf16.msra.mxu0 0
        %3535 = vmatprep.subr.bf16.mxu0 0
        %3536 = vmatpush1.bf16.msra.mxu0 0
        %3537 = vmatprep.subr.bf16.mxu0 0
        %3538 = vmatpush1.bf16.msra.mxu0 0
        %3539 = vmatprep.subr.bf16.mxu0 0
        %3540 = vmatpush1.bf16.msra.mxu0 0
        %3541 = vmatprep.subr.bf16.mxu0 0
        %3542 = vmatpush1.bf16.msra.mxu0 0
        %3543 = vmatprep.mubr.bf16.mxu0 0
        %3544 = vmatmul.mubr.bf16.gmra.mrb[0].mxu0 %v3506
        %v3545 = vpop.f32.mrb[0].mxu0
        %v3546 = vadd.f32 0.0, %v3545
        %v3547 = vpop.f32.mrb[0].mxu0
        %v3548 = vpop.f32.mrb[0].mxu0
        %v3549 = vadd.f32 0.0, %v3548
        %v3550 = vpop.f32.mrb[0].mxu0
        %3551 = vmatprep.mubr.bf16.mxu0 0
        %3552 = vmatmul.mubr.bf16.gmra.mrb[0].mxu0 %v3509
        %v3553 = vpop.f32.mrb[0].mxu0
        %v3554 = vadd.f32 0.0, %v3553
        %v3555 = vpop.f32.mrb[0].mxu0
        %v3556 = vpop.f32.mrb[0].mxu0
        %v3557 = vadd.f32 0.0, %v3556
        %v3558 = vpop.f32.mrb[0].mxu0
        %3559 = vdwg.mxu0
        %v3560 = vadd.f32 %v3425, %v3546
        %v3561 = vadd.f32 %v3426, %v3549
        %v3562 = vadd.f32 %v3427, %v3554
        %v3563 = vadd.f32 %v3428, %v3557
        %s3564 = scalar_lea.vmem %s3, 128
        %v3565 = vld [vmem:[%s3564] sm:$0xf]
        %v3566 = vld [vmem:[%s3564 + $0x4] sm:$0xf]
        %v3567 = vld [vmem:[%s3564 + $0x8] sm:$0xf]
        %v3568 = vld [vmem:[%s3564 + $0xc] sm:$0xf]
        %v3569 = vld [vmem:[%s3298 + $0x9] sm:$0xff]
        %v3570 = vld [vmem:[%s3298 + $0x39] sm:$0xff]
        %v3571 = vld [vmem:[%s3298 + $0x69] sm:$0xff]
        %v3572 = vld [vmem:[%s3298 + $0x99] sm:$0xff]
        %v3577 = vunpack.c.l.b16 %v3565
        %v3578 = vunpack.c.l.b16 %v3566
        %v3579 = vunpack.c.l.b16 %v3567
        %v3580 = vunpack.c.l.b16 %v3568
        %v3581 = vpack.c.b16 %v3578, %v3577
        %v3582 = vpack.c.b16 %v3580, %v3579
        %3585 = vmatprep.subr.bf16.mxu0 0
        %3586 = vmatpush1.bf16.msra.mxu0 %v3581
        %3587 = vmatprep.subr.bf16.mxu0 0
        %3588 = vmatpush1.bf16.msra.mxu0 %v3582
        %3589 = vmatprep.subr.bf16.mxu0 0
        %3590 = vmatpush1.bf16.msra.mxu0 0
        %3591 = vmatprep.subr.bf16.mxu0 0
        %3592 = vmatpush1.bf16.msra.mxu0 0
        %3593 = vmatprep.subr.bf16.mxu0 0
        %3594 = vmatpush1.bf16.msra.mxu0 0
        %3595 = vmatprep.subr.bf16.mxu0 0
        %3596 = vmatpush1.bf16.msra.mxu0 0
        %3597 = vmatprep.subr.bf16.mxu0 0
        %3598 = vmatpush1.bf16.msra.mxu0 0
        %3599 = vmatprep.subr.bf16.mxu0 0
        %3600 = vmatpush1.bf16.msra.mxu0 0
        %3601 = vmatprep.subr.bf16.mxu0 0
        %3602 = vmatpush1.bf16.msra.mxu0 0
        %3603 = vmatprep.subr.bf16.mxu0 0
        %3604 = vmatpush1.bf16.msra.mxu0 0
        %3605 = vmatprep.subr.bf16.mxu0 0
        %3606 = vmatpush1.bf16.msra.mxu0 0
        %3607 = vmatprep.subr.bf16.mxu0 0
        %3608 = vmatpush1.bf16.msra.mxu0 0
        %3609 = vmatprep.subr.bf16.mxu0 0
        %3610 = vmatpush1.bf16.msra.mxu0 0
        %3611 = vmatprep.subr.bf16.mxu0 0
        %3612 = vmatpush1.bf16.msra.mxu0 0
        %3613 = vmatprep.subr.bf16.mxu0 0
        %3614 = vmatpush1.bf16.msra.mxu0 0
        %3615 = vmatprep.subr.bf16.mxu0 0
        %3616 = vmatpush1.bf16.msra.mxu0 0
        %3617 = vmatprep.mubr.bf16.mxu0 0
        %3618 = vmatmul.mubr.bf16.gmra.mrb[0].mxu0 %v3235
        %v3619 = vpop.f32.mrb[0].mxu0
        %v3620 = vadd.f32 0.0, %v3619
        %v3621 = vpop.f32.mrb[0].mxu0
        %v3622 = vpop.f32.mrb[0].mxu0
        %v3623 = vadd.f32 0.0, %v3622
        %v3624 = vpop.f32.mrb[0].mxu0
        %3625 = vmatprep.mubr.bf16.mxu0 0
        %3626 = vmatmul.mubr.bf16.gmra.mrb[0].mxu0 %v3238
        %v3627 = vpop.f32.mrb[0].mxu0
        %v3628 = vadd.f32 0.0, %v3627
        %v3629 = vpop.f32.mrb[0].mxu0
        %v3630 = vpop.f32.mrb[0].mxu0
        %v3631 = vadd.f32 0.0, %v3630
        %v3632 = vpop.f32.mrb[0].mxu0
        %3633 = vdwg.mxu0
        %v3634 = vadd.f32 %v3499, %v3620
        %v3635 = vadd.f32 %v3500, %v3623
        %v3636 = vadd.f32 %v3501, %v3628
        %v3637 = vadd.f32 %v3502, %v3631
        %v3638 = vpack.c.bf16 %v3570, %v3569
        %v3639 = vpack.c.bf16 %v3572, %v3571
        %v3641 = vsel %vm2422, %v3638, 0
        %v3644 = vsel %vm2422, %v3639, 0
        %3646 = vmatprep.subr.bf16.mxu0 0
        %3647 = vmatpush1.bf16.msra.mxu0 %v3581
        %3648 = vmatprep.subr.bf16.mxu0 0
        %3649 = vmatpush1.bf16.msra.mxu0 %v3582
        %3650 = vmatprep.subr.bf16.mxu0 0
        %3651 = vmatpush1.bf16.msra.mxu0 0
        %3652 = vmatprep.subr.bf16.mxu0 0
        %3653 = vmatpush1.bf16.msra.mxu0 0
        %3654 = vmatprep.subr.bf16.mxu0 0
        %3655 = vmatpush1.bf16.msra.mxu0 0
        %3656 = vmatprep.subr.bf16.mxu0 0
        %3657 = vmatpush1.bf16.msra.mxu0 0
        %3658 = vmatprep.subr.bf16.mxu0 0
        %3659 = vmatpush1.bf16.msra.mxu0 0
        %3660 = vmatprep.subr.bf16.mxu0 0
        %3661 = vmatpush1.bf16.msra.mxu0 0
        %3662 = vmatprep.subr.bf16.mxu0 0
        %3663 = vmatpush1.bf16.msra.mxu0 0
        %3664 = vmatprep.subr.bf16.mxu0 0
        %3665 = vmatpush1.bf16.msra.mxu0 0
        %3666 = vmatprep.subr.bf16.mxu0 0
        %3667 = vmatpush1.bf16.msra.mxu0 0
        %3668 = vmatprep.subr.bf16.mxu0 0
        %3669 = vmatpush1.bf16.msra.mxu0 0
        %3670 = vmatprep.subr.bf16.mxu0 0
        %3671 = vmatpush1.bf16.msra.mxu0 0
        %3672 = vmatprep.subr.bf16.mxu0 0
        %3673 = vmatpush1.bf16.msra.mxu0 0
        %3674 = vmatprep.subr.bf16.mxu0 0
        %3675 = vmatpush1.bf16.msra.mxu0 0
        %3676 = vmatprep.subr.bf16.mxu0 0
        %3677 = vmatpush1.bf16.msra.mxu0 0
        %3678 = vmatprep.mubr.bf16.mxu0 0
        %3679 = vmatmul.mubr.bf16.gmra.mrb[0].mxu0 %v3641
        %v3680 = vpop.f32.mrb[0].mxu0
        %v3681 = vadd.f32 0.0, %v3680
        %v3682 = vpop.f32.mrb[0].mxu0
        %v3683 = vpop.f32.mrb[0].mxu0
        %v3684 = vadd.f32 0.0, %v3683
        %v3685 = vpop.f32.mrb[0].mxu0
        %3686 = vmatprep.mubr.bf16.mxu0 0
        %3687 = vmatmul.mubr.bf16.gmra.mrb[0].mxu0 %v3644
        %v3688 = vpop.f32.mrb[0].mxu0
        %v3689 = vadd.f32 0.0, %v3688
        %v3690 = vpop.f32.mrb[0].mxu0
        %v3691 = vpop.f32.mrb[0].mxu0
        %v3692 = vadd.f32 0.0, %v3691
        %v3693 = vpop.f32.mrb[0].mxu0
        %3694 = vdwg.mxu0
        %v3695 = vadd.f32 %v3560, %v3681
        %v3696 = vadd.f32 %v3561, %v3684
        %v3697 = vadd.f32 %v3562, %v3689
        %v3698 = vadd.f32 %v3563, %v3692
        %v3699 = vmax.f32 %v3634, %v3695
        %v3700 = vmax.f32 %v3635, %v3696
        %v3701 = vmax.f32 %v3636, %v3697
        %v3702 = vmax.f32 %v3637, %v3698
        %v3703 = vld [vmem:[%s4] sm:$0x1]
        %v3705 = vlaneseq
        %v3706 = vshrl.u32 %v3705, 7
        %v3707 = vsub.s32 0, %v3706
        %v3708 = vrot.slane %v3703, %v3707
        %v3710 = vadd.f32 %v3699, %v3708
        %v3711 = vadd.f32 %v3700, %v3708
        %v3712 = vadd.f32 %v3701, %v3708
        %v3713 = vadd.f32 %v3702, %v3708
        %v3714 = vmax.f32 %v3710, 0.0
        %v3715 = vmax.f32 %v3711, 0.0
        %v3716 = vmax.f32 %v3712, 0.0
        %v3717 = vmax.f32 %v3713, 0.0
        %vm3718 = vcmask 523264
        %3719 = vst.msk [vmem:[#allocation3] sm:$0xff] %vm3718, %v3714
        %3720 = vst.msk [vmem:[#allocation3 + $0x8] sm:$0xff] %vm3718, %v3715
        %3721 = vst.msk [vmem:[#allocation3 + $0x10] sm:$0xff] %vm3718, %v3716
        %3722 = vst.msk [vmem:[#allocation3 + $0x18] sm:$0xff] %vm3718, %v3717
        %v3723 = vld [vmem:[#allocation3] ss:$32 sm:$0x1]
        %s3724 = scalar_lea.vmem [#allocation3], 1
        %v3725 = vld [vmem:[%s3724] ss:$32 sm:$0x1]
        %v3726 = vmax.f32 %v3723, %v3725
        %v3727 = vpack.c.bf16 %v3726, %v3726
        %v3728 = vld [vmem:[%s5] sm:$0xf]
        %v3729 = vld [vmem:[%s5 + $0x4] sm:$0xf]
        %v3730 = vld [vmem:[%s5 + $0x8] sm:$0xf]
        %v3731 = vld [vmem:[%s5 + $0xc] sm:$0xf]
        %v3732 = vld [vmem:[%s5 + $0x10] sm:$0xf]
        %v3733 = vld [vmem:[%s5 + $0x14] sm:$0xf]
        %v3734 = vld [vmem:[%s5 + $0x18] sm:$0xf]
        %v3735 = vld [vmem:[%s5 + $0x1c] sm:$0xf]
        %s3736 = scalar_lea.vmem [#allocation3], 2
        %v3737 = vld [vmem:[%s3736] ss:$32 sm:$0x1]
        %s3738 = scalar_lea.vmem [#allocation3], 3
        %v3739 = vld [vmem:[%s3738] ss:$32 sm:$0x1]
        %v3740 = vmax.f32 %v3737, %v3739
        %v3741 = vpack.c.bf16 %v3740, %v3740
        %s3742 = scalar_lea.vmem %s5, 32
        %v3743 = vld [vmem:[%s3742] sm:$0xf]
        %v3744 = vld [vmem:[%s3742 + $0x4] sm:$0xf]
        %v3745 = vld [vmem:[%s3742 + $0x8] sm:$0xf]
        %v3746 = vld [vmem:[%s3742 + $0xc] sm:$0xf]
        %v3747 = vld [vmem:[%s3742 + $0x10] sm:$0xf]
        %v3748 = vld [vmem:[%s3742 + $0x14] sm:$0xf]
        %v3749 = vld [vmem:[%s3742 + $0x18] sm:$0xf]
        %v3750 = vld [vmem:[%s3742 + $0x1c] sm:$0xf]
        %v3759 = vunpack.c.l.b16 %v3743
        %v3760 = vunpack.c.l.b16 %v3744
        %v3761 = vunpack.c.l.b16 %v3745
        %v3762 = vunpack.c.l.b16 %v3746
        %v3763 = vunpack.c.l.b16 %v3747
        %v3764 = vunpack.c.l.b16 %v3748
        %v3765 = vunpack.c.l.b16 %v3749
        %v3766 = vunpack.c.l.b16 %v3750
        %v3767 = vpack.c.b16 %v3760, %v3759
        %v3768 = vpack.c.b16 %v3762, %v3761
        %v3769 = vpack.c.b16 %v3764, %v3763
        %v3770 = vpack.c.b16 %v3766, %v3765
        %v3776 = vsel %vm3718, %v3741, 0
        %3778 = vmatprep.subr.bf16.mxu0 0
        %3779 = vmatpush1.bf16.msra.mxu0 %v3767
        %3780 = vmatprep.subr.bf16.mxu0 0
        %3781 = vmatpush1.bf16.msra.mxu0 %v3768
        %3782 = vmatprep.subr.bf16.mxu0 0
        %3783 = vmatpush1.bf16.msra.mxu0 %v3769
        %3784 = vmatprep.subr.bf16.mxu0 0
        %3785 = vmatpush1.bf16.msra.mxu0 %v3770
        %3786 = vmatprep.subr.bf16.mxu0 0
        %3787 = vmatpush1.bf16.msra.mxu0 0
        %3788 = vmatprep.subr.bf16.mxu0 0
        %3789 = vmatpush1.bf16.msra.mxu0 0
        %3790 = vmatprep.subr.bf16.mxu0 0
        %3791 = vmatpush1.bf16.msra.mxu0 0
        %3792 = vmatprep.subr.bf16.mxu0 0
        %3793 = vmatpush1.bf16.msra.mxu0 0
        %3794 = vmatprep.subr.bf16.mxu0 0
        %3795 = vmatpush1.bf16.msra.mxu0 0
        %3796 = vmatprep.subr.bf16.mxu0 0
        %3797 = vmatpush1.bf16.msra.mxu0 0
        %3798 = vmatprep.subr.bf16.mxu0 0
        %3799 = vmatpush1.bf16.msra.mxu0 0
        %3800 = vmatprep.subr.bf16.mxu0 0
        %3801 = vmatpush1.bf16.msra.mxu0 0
        %3802 = vmatprep.subr.bf16.mxu0 0
        %3803 = vmatpush1.bf16.msra.mxu0 0
        %3804 = vmatprep.subr.bf16.mxu0 0
        %3805 = vmatpush1.bf16.msra.mxu0 0
        %3806 = vmatprep.subr.bf16.mxu0 0
        %3807 = vmatpush1.bf16.msra.mxu0 0
        %3808 = vmatprep.subr.bf16.mxu0 0
        %3809 = vmatpush1.bf16.msra.mxu0 0
        %3810 = vmatprep.mubr.bf16.mxu0 0
        %3811 = vmatmul.mubr.bf16.gmra.mrb[0].mxu0 %v3776
        %v3812 = vpop.f32.mrb[0].mxu0
        %v3813 = vadd.f32 0.0, %v3812
        %v3814 = vpop.f32.mrb[0].mxu0
        %v3815 = vpop.f32.mrb[0].mxu0
        %v3816 = vpop.f32.mrb[0].mxu0
        %3817 = vdwg.mxu0
        %v3826 = vunpack.c.l.b16 %v3728
        %v3827 = vunpack.c.l.b16 %v3729
        %v3828 = vunpack.c.l.b16 %v3730
        %v3829 = vunpack.c.l.b16 %v3731
        %v3830 = vunpack.c.l.b16 %v3732
        %v3831 = vunpack.c.l.b16 %v3733
        %v3832 = vunpack.c.l.b16 %v3734
        %v3833 = vunpack.c.l.b16 %v3735
        %v3834 = vpack.c.b16 %v3827, %v3826
        %v3835 = vpack.c.b16 %v3829, %v3828
        %v3836 = vpack.c.b16 %v3831, %v3830
        %v3837 = vpack.c.b16 %v3833, %v3832
        %v3843 = vsel %vm3718, %v3727, 0
        %3845 = vmatprep.subr.bf16.mxu0 0
        %3846 = vmatpush1.bf16.msra.mxu0 %v3834
        %3847 = vmatprep.subr.bf16.mxu0 0
        %3848 = vmatpush1.bf16.msra.mxu0 %v3835
        %3849 = vmatprep.subr.bf16.mxu0 0
        %3850 = vmatpush1.bf16.msra.mxu0 %v3836
        %3851 = vmatprep.subr.bf16.mxu0 0
        %3852 = vmatpush1.bf16.msra.mxu0 %v3837
        %3853 = vmatprep.subr.bf16.mxu0 0
        %3854 = vmatpush1.bf16.msra.mxu0 0
        %3855 = vmatprep.subr.bf16.mxu0 0
        %3856 = vmatpush1.bf16.msra.mxu0 0
        %3857 = vmatprep.subr.bf16.mxu0 0
        %3858 = vmatpush1.bf16.msra.mxu0 0
        %3859 = vmatprep.subr.bf16.mxu0 0
        %3860 = vmatpush1.bf16.msra.mxu0 0
        %3861 = vmatprep.subr.bf16.mxu0 0
        %3862 = vmatpush1.bf16.msra.mxu0 0
        %3863 = vmatprep.subr.bf16.mxu0 0
        %3864 = vmatpush1.bf16.msra.mxu0 0
        %3865 = vmatprep.subr.bf16.mxu0 0
        %3866 = vmatpush1.bf16.msra.mxu0 0
        %3867 = vmatprep.subr.bf16.mxu0 0
        %3868 = vmatpush1.bf16.msra.mxu0 0
        %3869 = vmatprep.subr.bf16.mxu0 0
        %3870 = vmatpush1.bf16.msra.mxu0 0
        %3871 = vmatprep.subr.bf16.mxu0 0
        %3872 = vmatpush1.bf16.msra.mxu0 0
        %3873 = vmatprep.subr.bf16.mxu0 0
        %3874 = vmatpush1.bf16.msra.mxu0 0
        %3875 = vmatprep.subr.bf16.mxu0 0
        %3876 = vmatpush1.bf16.msra.mxu0 0
        %3877 = vmatprep.mubr.bf16.mxu0 0
        %3878 = vmatmul.mubr.bf16.gmra.mrb[0].mxu0 %v3843
        %v3879 = vpop.f32.mrb[0].mxu0
        %v3880 = vadd.f32 %v3813, %v3879
        %v3881 = vpop.f32.mrb[0].mxu0
        %v3882 = vpop.f32.mrb[0].mxu0
        %v3883 = vpop.f32.mrb[0].mxu0
        %3884 = vdwg.mxu0
        %s3885 = scalar_lea.vmem [#allocation3], 4
        %v3886 = vld [vmem:[%s3885] ss:$32 sm:$0x1]
        %s3887 = scalar_lea.vmem [#allocation3], 5
        %v3888 = vld [vmem:[%s3887] ss:$32 sm:$0x1]
        %v3889 = vmax.f32 %v3886, %v3888
        %v3890 = vpack.c.bf16 %v3889, %v3889
        %s3891 = scalar_lea.vmem %s5, 64
        %v3892 = vld [vmem:[%s3891] sm:$0xf]
        %v3893 = vld [vmem:[%s3891 + $0x4] sm:$0xf]
        %v3894 = vld [vmem:[%s3891 + $0x8] sm:$0xf]
        %v3895 = vld [vmem:[%s3891 + $0xc] sm:$0xf]
        %v3896 = vld [vmem:[%s3891 + $0x10] sm:$0xf]
        %v3897 = vld [vmem:[%s3891 + $0x14] sm:$0xf]
        %v3898 = vld [vmem:[%s3891 + $0x18] sm:$0xf]
        %v3899 = vld [vmem:[%s3891 + $0x1c] sm:$0xf]
        %v3908 = vunpack.c.l.b16 %v3892
        %v3909 = vunpack.c.l.b16 %v3893
        %v3910 = vunpack.c.l.b16 %v3894
        %v3911 = vunpack.c.l.b16 %v3895
        %v3912 = vunpack.c.l.b16 %v3896
        %v3913 = vunpack.c.l.b16 %v3897
        %v3914 = vunpack.c.l.b16 %v3898
        %v3915 = vunpack.c.l.b16 %v3899
        %v3916 = vpack.c.b16 %v3909, %v3908
        %v3917 = vpack.c.b16 %v3911, %v3910
        %v3918 = vpack.c.b16 %v3913, %v3912
        %v3919 = vpack.c.b16 %v3915, %v3914
        %v3925 = vsel %vm3718, %v3890, 0
        %3927 = vmatprep.subr.bf16.mxu0 0
        %3928 = vmatpush1.bf16.msra.mxu0 %v3916
        %3929 = vmatprep.subr.bf16.mxu0 0
        %3930 = vmatpush1.bf16.msra.mxu0 %v3917
        %3931 = vmatprep.subr.bf16.mxu0 0
        %3932 = vmatpush1.bf16.msra.mxu0 %v3918
        %3933 = vmatprep.subr.bf16.mxu0 0
        %3934 = vmatpush1.bf16.msra.mxu0 %v3919
        %3935 = vmatprep.subr.bf16.mxu0 0
        %3936 = vmatpush1.bf16.msra.mxu0 0
        %3937 = vmatprep.subr.bf16.mxu0 0
        %3938 = vmatpush1.bf16.msra.mxu0 0
        %3939 = vmatprep.subr.bf16.mxu0 0
        %3940 = vmatpush1.bf16.msra.mxu0 0
        %3941 = vmatprep.subr.bf16.mxu0 0
        %3942 = vmatpush1.bf16.msra.mxu0 0
        %3943 = vmatprep.subr.bf16.mxu0 0
        %3944 = vmatpush1.bf16.msra.mxu0 0
        %3945 = vmatprep.subr.bf16.mxu0 0
        %3946 = vmatpush1.bf16.msra.mxu0 0
        %3947 = vmatprep.subr.bf16.mxu0 0
        %3948 = vmatpush1.bf16.msra.mxu0 0
        %3949 = vmatprep.subr.bf16.mxu0 0
        %3950 = vmatpush1.bf16.msra.mxu0 0
        %3951 = vmatprep.subr.bf16.mxu0 0
        %3952 = vmatpush1.bf16.msra.mxu0 0
        %3953 = vmatprep.subr.bf16.mxu0 0
        %3954 = vmatpush1.bf16.msra.mxu0 0
        %3955 = vmatprep.subr.bf16.mxu0 0
        %3956 = vmatpush1.bf16.msra.mxu0 0
        %3957 = vmatprep.subr.bf16.mxu0 0
        %3958 = vmatpush1.bf16.msra.mxu0 0
        %3959 = vmatprep.mubr.bf16.mxu0 0
        %3960 = vmatmul.mubr.bf16.gmra.mrb[0].mxu0 %v3925
        %v3961 = vpop.f32.mrb[0].mxu0
        %v3962 = vadd.f32 0.0, %v3961
        %v3963 = vpop.f32.mrb[0].mxu0
        %v3964 = vpop.f32.mrb[0].mxu0
        %v3965 = vpop.f32.mrb[0].mxu0
        %3966 = vdwg.mxu0
        %v3967 = vadd.f32 %v3880, %v3962
        %s3968 = scalar_lea.vmem [#allocation3], 6
        %v3969 = vld [vmem:[%s3968] ss:$32 sm:$0x1]
        %s3970 = scalar_lea.vmem [#allocation3], 7
        %v3971 = vld [vmem:[%s3970] ss:$32 sm:$0x1]
        %v3972 = vmax.f32 %v3969, %v3971
        %v3973 = vpack.c.bf16 %v3972, %v3972
        %s3974 = scalar_lea.vmem %s5, 96
        %v3975 = vld [vmem:[%s3974] sm:$0xf]
        %v3976 = vld [vmem:[%s3974 + $0x4] sm:$0xf]
        %v3977 = vld [vmem:[%s3974 + $0x8] sm:$0xf]
        %v3978 = vld [vmem:[%s3974 + $0xc] sm:$0xf]
        %v3979 = vld [vmem:[%s3974 + $0x10] sm:$0xf]
        %v3980 = vld [vmem:[%s3974 + $0x14] sm:$0xf]
        %v3981 = vld [vmem:[%s3974 + $0x18] sm:$0xf]
        %v3982 = vld [vmem:[%s3974 + $0x1c] sm:$0xf]
        %v3991 = vunpack.c.l.b16 %v3975
        %v3992 = vunpack.c.l.b16 %v3976
        %v3993 = vunpack.c.l.b16 %v3977
        %v3994 = vunpack.c.l.b16 %v3978
        %v3995 = vunpack.c.l.b16 %v3979
        %v3996 = vunpack.c.l.b16 %v3980
        %v3997 = vunpack.c.l.b16 %v3981
        %v3998 = vunpack.c.l.b16 %v3982
        %v3999 = vpack.c.b16 %v3992, %v3991
        %v4000 = vpack.c.b16 %v3994, %v3993
        %v4001 = vpack.c.b16 %v3996, %v3995
        %v4002 = vpack.c.b16 %v3998, %v3997
        %v4008 = vsel %vm3718, %v3973, 0
        %4010 = vmatprep.subr.bf16.mxu0 0
        %4011 = vmatpush1.bf16.msra.mxu0 %v3999
        %4012 = vmatprep.subr.bf16.mxu0 0
        %4013 = vmatpush1.bf16.msra.mxu0 %v4000
        %4014 = vmatprep.subr.bf16.mxu0 0
        %4015 = vmatpush1.bf16.msra.mxu0 %v4001
        %4016 = vmatprep.subr.bf16.mxu0 0
        %4017 = vmatpush1.bf16.msra.mxu0 %v4002
        %4018 = vmatprep.subr.bf16.mxu0 0
        %4019 = vmatpush1.bf16.msra.mxu0 0
        %4020 = vmatprep.subr.bf16.mxu0 0
        %4021 = vmatpush1.bf16.msra.mxu0 0
        %4022 = vmatprep.subr.bf16.mxu0 0
        %4023 = vmatpush1.bf16.msra.mxu0 0
        %4024 = vmatprep.subr.bf16.mxu0 0
        %4025 = vmatpush1.bf16.msra.mxu0 0
        %4026 = vmatprep.subr.bf16.mxu0 0
        %4027 = vmatpush1.bf16.msra.mxu0 0
        %4028 = vmatprep.subr.bf16.mxu0 0
        %4029 = vmatpush1.bf16.msra.mxu0 0
        %4030 = vmatprep.subr.bf16.mxu0 0
        %4031 = vmatpush1.bf16.msra.mxu0 0
        %4032 = vmatprep.subr.bf16.mxu0 0
        %4033 = vmatpush1.bf16.msra.mxu0 0
        %4034 = vmatprep.subr.bf16.mxu0 0
        %4035 = vmatpush1.bf16.msra.mxu0 0
        %4036 = vmatprep.subr.bf16.mxu0 0
        %4037 = vmatpush1.bf16.msra.mxu0 0
        %4038 = vmatprep.subr.bf16.mxu0 0
        %4039 = vmatpush1.bf16.msra.mxu0 0
        %4040 = vmatprep.subr.bf16.mxu0 0
        %4041 = vmatpush1.bf16.msra.mxu0 0
        %4042 = vmatprep.mubr.bf16.mxu0 0
        %4043 = vmatmul.mubr.bf16.gmra.mrb[0].mxu0 %v4008
        %v4044 = vpop.f32.mrb[0].mxu0
        %v4045 = vadd.f32 0.0, %v4044
        %v4046 = vpop.f32.mrb[0].mxu0
        %v4047 = vpop.f32.mrb[0].mxu0
        %v4048 = vpop.f32.mrb[0].mxu0
        %4049 = vdwg.mxu0
        %v4050 = vadd.f32 %v3967, %v4045
        %s4051 = scalar_lea.vmem [#allocation3], 8
        %v4052 = vld [vmem:[%s4051] ss:$32 sm:$0x1]
        %s4053 = scalar_lea.vmem [#allocation3], 9
        %v4054 = vld [vmem:[%s4053] ss:$32 sm:$0x1]
        %v4055 = vmax.f32 %v4052, %v4054
        %v4056 = vpack.c.bf16 %v4055, %v4055
        %s4057 = scalar_lea.vmem %s5, 128
        %v4058 = vld [vmem:[%s4057] sm:$0xf]
        %v4059 = vld [vmem:[%s4057 + $0x4] sm:$0xf]
        %v4060 = vld [vmem:[%s4057 + $0x8] sm:$0xf]
        %v4061 = vld [vmem:[%s4057 + $0xc] sm:$0xf]
        %v4062 = vld [vmem:[%s4057 + $0x10] sm:$0xf]
        %v4063 = vld [vmem:[%s4057 + $0x14] sm:$0xf]
        %v4064 = vld [vmem:[%s4057 + $0x18] sm:$0xf]
        %v4065 = vld [vmem:[%s4057 + $0x1c] sm:$0xf]
        %v4074 = vunpack.c.l.b16 %v4058
        %v4075 = vunpack.c.l.b16 %v4059
        %v4076 = vunpack.c.l.b16 %v4060
        %v4077 = vunpack.c.l.b16 %v4061
        %v4078 = vunpack.c.l.b16 %v4062
        %v4079 = vunpack.c.l.b16 %v4063
        %v4080 = vunpack.c.l.b16 %v4064
        %v4081 = vunpack.c.l.b16 %v4065
        %v4082 = vpack.c.b16 %v4075, %v4074
        %v4083 = vpack.c.b16 %v4077, %v4076
        %v4084 = vpack.c.b16 %v4079, %v4078
        %v4085 = vpack.c.b16 %v4081, %v4080
        %v4091 = vsel %vm3718, %v4056, 0
        %4093 = vmatprep.subr.bf16.mxu0 0
        %4094 = vmatpush1.bf16.msra.mxu0 %v4082
        %4095 = vmatprep.subr.bf16.mxu0 0
        %4096 = vmatpush1.bf16.msra.mxu0 %v4083
        %4097 = vmatprep.subr.bf16.mxu0 0
        %4098 = vmatpush1.bf16.msra.mxu0 %v4084
        %4099 = vmatprep.subr.bf16.mxu0 0
        %4100 = vmatpush1.bf16.msra.mxu0 %v4085
        %4101 = vmatprep.subr.bf16.mxu0 0
        %4102 = vmatpush1.bf16.msra.mxu0 0
        %4103 = vmatprep.subr.bf16.mxu0 0
        %4104 = vmatpush1.bf16.msra.mxu0 0
        %4105 = vmatprep.subr.bf16.mxu0 0
        %4106 = vmatpush1.bf16.msra.mxu0 0
        %4107 = vmatprep.subr.bf16.mxu0 0
        %4108 = vmatpush1.bf16.msra.mxu0 0
        %4109 = vmatprep.subr.bf16.mxu0 0
        %4110 = vmatpush1.bf16.msra.mxu0 0
        %4111 = vmatprep.subr.bf16.mxu0 0
        %4112 = vmatpush1.bf16.msra.mxu0 0
        %4113 = vmatprep.subr.bf16.mxu0 0
        %4114 = vmatpush1.bf16.msra.mxu0 0
        %4115 = vmatprep.subr.bf16.mxu0 0
        %4116 = vmatpush1.bf16.msra.mxu0 0
        %4117 = vmatprep.subr.bf16.mxu0 0
        %4118 = vmatpush1.bf16.msra.mxu0 0
        %4119 = vmatprep.subr.bf16.mxu0 0
        %4120 = vmatpush1.bf16.msra.mxu0 0
        %4121 = vmatprep.subr.bf16.mxu0 0
        %4122 = vmatpush1.bf16.msra.mxu0 0
        %4123 = vmatprep.subr.bf16.mxu0 0
        %4124 = vmatpush1.bf16.msra.mxu0 0
        %4125 = vmatprep.mubr.bf16.mxu0 0
        %4126 = vmatmul.mubr.bf16.gmra.mrb[0].mxu0 %v4091
        %v4127 = vpop.f32.mrb[0].mxu0
        %v4128 = vadd.f32 0.0, %v4127
        %v4129 = vpop.f32.mrb[0].mxu0
        %v4130 = vpop.f32.mrb[0].mxu0
        %v4131 = vpop.f32.mrb[0].mxu0
        %4132 = vdwg.mxu0
        %v4133 = vadd.f32 %v4050, %v4128
        %s4134 = scalar_lea.vmem [#allocation3], 10
        %v4135 = vld [vmem:[%s4134] ss:$32 sm:$0x1]
        %s4136 = scalar_lea.vmem [#allocation3], 11
        %v4137 = vld [vmem:[%s4136] ss:$32 sm:$0x1]
        %v4138 = vmax.f32 %v4135, %v4137
        %v4139 = vpack.c.bf16 %v4138, %v4138
        %s4140 = scalar_lea.vmem %s5, 160
        %v4141 = vld [vmem:[%s4140] sm:$0xf]
        %v4142 = vld [vmem:[%s4140 + $0x4] sm:$0xf]
        %v4143 = vld [vmem:[%s4140 + $0x8] sm:$0xf]
        %v4144 = vld [vmem:[%s4140 + $0xc] sm:$0xf]
        %v4145 = vld [vmem:[%s4140 + $0x10] sm:$0xf]
        %v4146 = vld [vmem:[%s4140 + $0x14] sm:$0xf]
        %v4147 = vld [vmem:[%s4140 + $0x18] sm:$0xf]
        %v4148 = vld [vmem:[%s4140 + $0x1c] sm:$0xf]
        %v4157 = vunpack.c.l.b16 %v4141
        %v4158 = vunpack.c.l.b16 %v4142
        %v4159 = vunpack.c.l.b16 %v4143
        %v4160 = vunpack.c.l.b16 %v4144
        %v4161 = vunpack.c.l.b16 %v4145
        %v4162 = vunpack.c.l.b16 %v4146
        %v4163 = vunpack.c.l.b16 %v4147
        %v4164 = vunpack.c.l.b16 %v4148
        %v4165 = vpack.c.b16 %v4158, %v4157
        %v4166 = vpack.c.b16 %v4160, %v4159
        %v4167 = vpack.c.b16 %v4162, %v4161
        %v4168 = vpack.c.b16 %v4164, %v4163
        %v4174 = vsel %vm3718, %v4139, 0
        %4176 = vmatprep.subr.bf16.mxu0 0
        %4177 = vmatpush1.bf16.msra.mxu0 %v4165
        %4178 = vmatprep.subr.bf16.mxu0 0
        %4179 = vmatpush1.bf16.msra.mxu0 %v4166
        %4180 = vmatprep.subr.bf16.mxu0 0
        %4181 = vmatpush1.bf16.msra.mxu0 %v4167
        %4182 = vmatprep.subr.bf16.mxu0 0
        %4183 = vmatpush1.bf16.msra.mxu0 %v4168
        %4184 = vmatprep.subr.bf16.mxu0 0
        %4185 = vmatpush1.bf16.msra.mxu0 0
        %4186 = vmatprep.subr.bf16.mxu0 0
        %4187 = vmatpush1.bf16.msra.mxu0 0
        %4188 = vmatprep.subr.bf16.mxu0 0
        %4189 = vmatpush1.bf16.msra.mxu0 0
        %4190 = vmatprep.subr.bf16.mxu0 0
        %4191 = vmatpush1.bf16.msra.mxu0 0
        %4192 = vmatprep.subr.bf16.mxu0 0
        %4193 = vmatpush1.bf16.msra.mxu0 0
        %4194 = vmatprep.subr.bf16.mxu0 0
        %4195 = vmatpush1.bf16.msra.mxu0 0
        %4196 = vmatprep.subr.bf16.mxu0 0
        %4197 = vmatpush1.bf16.msra.mxu0 0
        %4198 = vmatprep.subr.bf16.mxu0 0
        %4199 = vmatpush1.bf16.msra.mxu0 0
        %4200 = vmatprep.subr.bf16.mxu0 0
        %4201 = vmatpush1.bf16.msra.mxu0 0
        %4202 = vmatprep.subr.bf16.mxu0 0
        %4203 = vmatpush1.bf16.msra.mxu0 0
        %4204 = vmatprep.subr.bf16.mxu0 0
        %4205 = vmatpush1.bf16.msra.mxu0 0
        %4206 = vmatprep.subr.bf16.mxu0 0
        %4207 = vmatpush1.bf16.msra.mxu0 0
        %4208 = vmatprep.mubr.bf16.mxu0 0
        %4209 = vmatmul.mubr.bf16.gmra.mrb[0].mxu0 %v4174
        %v4210 = vpop.f32.mrb[0].mxu0
        %v4211 = vadd.f32 0.0, %v4210
        %v4212 = vpop.f32.mrb[0].mxu0
        %v4213 = vpop.f32.mrb[0].mxu0
        %v4214 = vpop.f32.mrb[0].mxu0
        %4215 = vdwg.mxu0
        %v4216 = vadd.f32 %v4133, %v4211
        %s4217 = scalar_lea.vmem [#allocation3], 12
        %v4218 = vld [vmem:[%s4217] ss:$32 sm:$0x1]
        %s4219 = scalar_lea.vmem [#allocation3], 13
        %v4220 = vld [vmem:[%s4219] ss:$32 sm:$0x1]
        %v4221 = vmax.f32 %v4218, %v4220
        %v4222 = vpack.c.bf16 %v4221, %v4221
        %s4223 = scalar_lea.vmem %s5, 192
        %v4224 = vld [vmem:[%s4223] sm:$0xf]
        %v4225 = vld [vmem:[%s4223 + $0x4] sm:$0xf]
        %v4226 = vld [vmem:[%s4223 + $0x8] sm:$0xf]
        %v4227 = vld [vmem:[%s4223 + $0xc] sm:$0xf]
        %v4228 = vld [vmem:[%s4223 + $0x10] sm:$0xf]
        %v4229 = vld [vmem:[%s4223 + $0x14] sm:$0xf]
        %v4230 = vld [vmem:[%s4223 + $0x18] sm:$0xf]
        %v4231 = vld [vmem:[%s4223 + $0x1c] sm:$0xf]
        %v4240 = vunpack.c.l.b16 %v4224
        %v4241 = vunpack.c.l.b16 %v4225
        %v4242 = vunpack.c.l.b16 %v4226
        %v4243 = vunpack.c.l.b16 %v4227
        %v4244 = vunpack.c.l.b16 %v4228
        %v4245 = vunpack.c.l.b16 %v4229
        %v4246 = vunpack.c.l.b16 %v4230
        %v4247 = vunpack.c.l.b16 %v4231
        %v4248 = vpack.c.b16 %v4241, %v4240
        %v4249 = vpack.c.b16 %v4243, %v4242
        %v4250 = vpack.c.b16 %v4245, %v4244
        %v4251 = vpack.c.b16 %v4247, %v4246
        %v4257 = vsel %vm3718, %v4222, 0
        %4259 = vmatprep.subr.bf16.mxu0 0
        %4260 = vmatpush1.bf16.msra.mxu0 %v4248
        %4261 = vmatprep.subr.bf16.mxu0 0
        %4262 = vmatpush1.bf16.msra.mxu0 %v4249
        %4263 = vmatprep.subr.bf16.mxu0 0
        %4264 = vmatpush1.bf16.msra.mxu0 %v4250
        %4265 = vmatprep.subr.bf16.mxu0 0
        %4266 = vmatpush1.bf16.msra.mxu0 %v4251
        %4267 = vmatprep.subr.bf16.mxu0 0
        %4268 = vmatpush1.bf16.msra.mxu0 0
        %4269 = vmatprep.subr.bf16.mxu0 0
        %4270 = vmatpush1.bf16.msra.mxu0 0
        %4271 = vmatprep.subr.bf16.mxu0 0
        %4272 = vmatpush1.bf16.msra.mxu0 0
        %4273 = vmatprep.subr.bf16.mxu0 0
        %4274 = vmatpush1.bf16.msra.mxu0 0
        %4275 = vmatprep.subr.bf16.mxu0 0
        %4276 = vmatpush1.bf16.msra.mxu0 0
        %4277 = vmatprep.subr.bf16.mxu0 0
        %4278 = vmatpush1.bf16.msra.mxu0 0
        %4279 = vmatprep.subr.bf16.mxu0 0
        %4280 = vmatpush1.bf16.msra.mxu0 0
        %4281 = vmatprep.subr.bf16.mxu0 0
        %4282 = vmatpush1.bf16.msra.mxu0 0
        %4283 = vmatprep.subr.bf16.mxu0 0
        %4284 = vmatpush1.bf16.msra.mxu0 0
        %4285 = vmatprep.subr.bf16.mxu0 0
        %4286 = vmatpush1.bf16.msra.mxu0 0
        %4287 = vmatprep.subr.bf16.mxu0 0
        %4288 = vmatpush1.bf16.msra.mxu0 0
        %4289 = vmatprep.subr.bf16.mxu0 0
        %4290 = vmatpush1.bf16.msra.mxu0 0
        %4291 = vmatprep.mubr.bf16.mxu0 0
        %4292 = vmatmul.mubr.bf16.gmra.mrb[0].mxu0 %v4257
        %v4293 = vpop.f32.mrb[0].mxu0
        %v4294 = vadd.f32 0.0, %v4293
        %v4295 = vpop.f32.mrb[0].mxu0
        %v4296 = vpop.f32.mrb[0].mxu0
        %v4297 = vpop.f32.mrb[0].mxu0
        %4298 = vdwg.mxu0
        %v4299 = vadd.f32 %v4216, %v4294
        %s4300 = scalar_lea.vmem [#allocation3], 14
        %v4301 = vld [vmem:[%s4300] ss:$32 sm:$0x1]
        %s4302 = scalar_lea.vmem [#allocation3], 15
        %v4303 = vld [vmem:[%s4302] ss:$32 sm:$0x1]
        %v4304 = vmax.f32 %v4301, %v4303
        %v4305 = vpack.c.bf16 %v4304, %v4304
        %s4306 = scalar_lea.vmem %s5, 224
        %v4307 = vld [vmem:[%s4306] sm:$0xf]
        %v4308 = vld [vmem:[%s4306 + $0x4] sm:$0xf]
        %v4309 = vld [vmem:[%s4306 + $0x8] sm:$0xf]
        %v4310 = vld [vmem:[%s4306 + $0xc] sm:$0xf]
        %v4311 = vld [vmem:[%s4306 + $0x10] sm:$0xf]
        %v4312 = vld [vmem:[%s4306 + $0x14] sm:$0xf]
        %v4313 = vld [vmem:[%s4306 + $0x18] sm:$0xf]
        %v4314 = vld [vmem:[%s4306 + $0x1c] sm:$0xf]
        %v4323 = vunpack.c.l.b16 %v4307
        %v4324 = vunpack.c.l.b16 %v4308
        %v4325 = vunpack.c.l.b16 %v4309
        %v4326 = vunpack.c.l.b16 %v4310
        %v4327 = vunpack.c.l.b16 %v4311
        %v4328 = vunpack.c.l.b16 %v4312
        %v4329 = vunpack.c.l.b16 %v4313
        %v4330 = vunpack.c.l.b16 %v4314
        %v4331 = vpack.c.b16 %v4324, %v4323
        %v4332 = vpack.c.b16 %v4326, %v4325
        %v4333 = vpack.c.b16 %v4328, %v4327
        %v4334 = vpack.c.b16 %v4330, %v4329
        %v4340 = vsel %vm3718, %v4305, 0
        %4342 = vmatprep.subr.bf16.mxu0 0
        %4343 = vmatpush1.bf16.msra.mxu0 %v4331
        %4344 = vmatprep.subr.bf16.mxu0 0
        %4345 = vmatpush1.bf16.msra.mxu0 %v4332
        %4346 = vmatprep.subr.bf16.mxu0 0
        %4347 = vmatpush1.bf16.msra.mxu0 %v4333
        %4348 = vmatprep.subr.bf16.mxu0 0
        %4349 = vmatpush1.bf16.msra.mxu0 %v4334
        %4350 = vmatprep.subr.bf16.mxu0 0
        %4351 = vmatpush1.bf16.msra.mxu0 0
        %4352 = vmatprep.subr.bf16.mxu0 0
        %4353 = vmatpush1.bf16.msra.mxu0 0
        %4354 = vmatprep.subr.bf16.mxu0 0
        %4355 = vmatpush1.bf16.msra.mxu0 0
        %4356 = vmatprep.subr.bf16.mxu0 0
        %4357 = vmatpush1.bf16.msra.mxu0 0
        %4358 = vmatprep.subr.bf16.mxu0 0
        %4359 = vmatpush1.bf16.msra.mxu0 0
        %4360 = vmatprep.subr.bf16.mxu0 0
        %4361 = vmatpush1.bf16.msra.mxu0 0
        %4362 = vmatprep.subr.bf16.mxu0 0
        %4363 = vmatpush1.bf16.msra.mxu0 0
        %4364 = vmatprep.subr.bf16.mxu0 0
        %4365 = vmatpush1.bf16.msra.mxu0 0
        %4366 = vmatprep.subr.bf16.mxu0 0
        %4367 = vmatpush1.bf16.msra.mxu0 0
        %4368 = vmatprep.subr.bf16.mxu0 0
        %4369 = vmatpush1.bf16.msra.mxu0 0
        %4370 = vmatprep.subr.bf16.mxu0 0
        %4371 = vmatpush1.bf16.msra.mxu0 0
        %4372 = vmatprep.subr.bf16.mxu0 0
        %4373 = vmatpush1.bf16.msra.mxu0 0
        %4374 = vmatprep.mubr.bf16.mxu0 0
        %4375 = vmatmul.mubr.bf16.gmra.mrb[0].mxu0 %v4340
        %v4376 = vpop.f32.mrb[0].mxu0
        %v4377 = vadd.f32 0.0, %v4376
        %v4378 = vpop.f32.mrb[0].mxu0
        %v4379 = vpop.f32.mrb[0].mxu0
        %v4380 = vpop.f32.mrb[0].mxu0
        %4381 = vdwg.mxu0
        %v4382 = vadd.f32 %v4299, %v4377
        %s4383 = scalar_lea.vmem [#allocation3], 16
        %v4384 = vld [vmem:[%s4383] ss:$32 sm:$0x1]
        %s4385 = scalar_lea.vmem [#allocation3], 17
        %v4386 = vld [vmem:[%s4385] ss:$32 sm:$0x1]
        %v4387 = vmax.f32 %v4384, %v4386
        %v4388 = vpack.c.bf16 %v4387, %v4387
        %s4389 = scalar_lea.vmem %s5, 256
        %v4390 = vld [vmem:[%s4389] sm:$0xf]
        %v4391 = vld [vmem:[%s4389 + $0x4] sm:$0xf]
        %v4392 = vld [vmem:[%s4389 + $0x8] sm:$0xf]
        %v4393 = vld [vmem:[%s4389 + $0xc] sm:$0xf]
        %v4394 = vld [vmem:[%s4389 + $0x10] sm:$0xf]
        %v4395 = vld [vmem:[%s4389 + $0x14] sm:$0xf]
        %v4396 = vld [vmem:[%s4389 + $0x18] sm:$0xf]
        %v4397 = vld [vmem:[%s4389 + $0x1c] sm:$0xf]
        %v4406 = vunpack.c.l.b16 %v4390
        %v4407 = vunpack.c.l.b16 %v4391
        %v4408 = vunpack.c.l.b16 %v4392
        %v4409 = vunpack.c.l.b16 %v4393
        %v4410 = vunpack.c.l.b16 %v4394
        %v4411 = vunpack.c.l.b16 %v4395
        %v4412 = vunpack.c.l.b16 %v4396
        %v4413 = vunpack.c.l.b16 %v4397
        %v4414 = vpack.c.b16 %v4407, %v4406
        %v4415 = vpack.c.b16 %v4409, %v4408
        %v4416 = vpack.c.b16 %v4411, %v4410
        %v4417 = vpack.c.b16 %v4413, %v4412
        %v4423 = vsel %vm3718, %v4388, 0
        %4425 = vmatprep.subr.bf16.mxu0 0
        %4426 = vmatpush1.bf16.msra.mxu0 %v4414
        %4427 = vmatprep.subr.bf16.mxu0 0
        %4428 = vmatpush1.bf16.msra.mxu0 %v4415
        %4429 = vmatprep.subr.bf16.mxu0 0
        %4430 = vmatpush1.bf16.msra.mxu0 %v4416
        %4431 = vmatprep.subr.bf16.mxu0 0
        %4432 = vmatpush1.bf16.msra.mxu0 %v4417
        %4433 = vmatprep.subr.bf16.mxu0 0
        %4434 = vmatpush1.bf16.msra.mxu0 0
        %4435 = vmatprep.subr.bf16.mxu0 0
        %4436 = vmatpush1.bf16.msra.mxu0 0
        %4437 = vmatprep.subr.bf16.mxu0 0
        %4438 = vmatpush1.bf16.msra.mxu0 0
        %4439 = vmatprep.subr.bf16.mxu0 0
        %4440 = vmatpush1.bf16.msra.mxu0 0
        %4441 = vmatprep.subr.bf16.mxu0 0
        %4442 = vmatpush1.bf16.msra.mxu0 0
        %4443 = vmatprep.subr.bf16.mxu0 0
        %4444 = vmatpush1.bf16.msra.mxu0 0
        %4445 = vmatprep.subr.bf16.mxu0 0
        %4446 = vmatpush1.bf16.msra.mxu0 0
        %4447 = vmatprep.subr.bf16.mxu0 0
        %4448 = vmatpush1.bf16.msra.mxu0 0
        %4449 = vmatprep.subr.bf16.mxu0 0
        %4450 = vmatpush1.bf16.msra.mxu0 0
        %4451 = vmatprep.subr.bf16.mxu0 0
        %4452 = vmatpush1.bf16.msra.mxu0 0
        %4453 = vmatprep.subr.bf16.mxu0 0
        %4454 = vmatpush1.bf16.msra.mxu0 0
        %4455 = vmatprep.subr.bf16.mxu0 0
        %4456 = vmatpush1.bf16.msra.mxu0 0
        %4457 = vmatprep.mubr.bf16.mxu0 0
        %4458 = vmatmul.mubr.bf16.gmra.mrb[0].mxu0 %v4423
        %v4459 = vpop.f32.mrb[0].mxu0
        %v4460 = vadd.f32 0.0, %v4459
        %v4461 = vpop.f32.mrb[0].mxu0
        %v4462 = vpop.f32.mrb[0].mxu0
        %v4463 = vpop.f32.mrb[0].mxu0
        %4464 = vdwg.mxu0
        %v4465 = vadd.f32 %v4382, %v4460
        %s4466 = scalar_lea.vmem [#allocation3], 18
        %v4467 = vld [vmem:[%s4466] ss:$32 sm:$0x1]
        %s4468 = scalar_lea.vmem [#allocation3], 19
        %v4469 = vld [vmem:[%s4468] ss:$32 sm:$0x1]
        %v4470 = vmax.f32 %v4467, %v4469
        %v4471 = vpack.c.bf16 %v4470, %v4470
        %s4472 = scalar_lea.vmem %s5, 288
        %v4473 = vld [vmem:[%s4472] sm:$0xf]
        %v4474 = vld [vmem:[%s4472 + $0x4] sm:$0xf]
        %v4475 = vld [vmem:[%s4472 + $0x8] sm:$0xf]
        %v4476 = vld [vmem:[%s4472 + $0xc] sm:$0xf]
        %v4477 = vld [vmem:[%s4472 + $0x10] sm:$0xf]
        %v4478 = vld [vmem:[%s4472 + $0x14] sm:$0xf]
        %v4479 = vld [vmem:[%s4472 + $0x18] sm:$0xf]
        %v4480 = vld [vmem:[%s4472 + $0x1c] sm:$0xf]
        %v4489 = vunpack.c.l.b16 %v4473
        %v4490 = vunpack.c.l.b16 %v4474
        %v4491 = vunpack.c.l.b16 %v4475
        %v4492 = vunpack.c.l.b16 %v4476
        %v4493 = vunpack.c.l.b16 %v4477
        %v4494 = vunpack.c.l.b16 %v4478
        %v4495 = vunpack.c.l.b16 %v4479
        %v4496 = vunpack.c.l.b16 %v4480
        %v4497 = vpack.c.b16 %v4490, %v4489
        %v4498 = vpack.c.b16 %v4492, %v4491
        %v4499 = vpack.c.b16 %v4494, %v4493
        %v4500 = vpack.c.b16 %v4496, %v4495
        %v4506 = vsel %vm3718, %v4471, 0
        %4508 = vmatprep.subr.bf16.mxu0 0
        %4509 = vmatpush1.bf16.msra.mxu0 %v4497
        %4510 = vmatprep.subr.bf16.mxu0 0
        %4511 = vmatpush1.bf16.msra.mxu0 %v4498
        %4512 = vmatprep.subr.bf16.mxu0 0
        %4513 = vmatpush1.bf16.msra.mxu0 %v4499
        %4514 = vmatprep.subr.bf16.mxu0 0
        %4515 = vmatpush1.bf16.msra.mxu0 %v4500
        %4516 = vmatprep.subr.bf16.mxu0 0
        %4517 = vmatpush1.bf16.msra.mxu0 0
        %4518 = vmatprep.subr.bf16.mxu0 0
        %4519 = vmatpush1.bf16.msra.mxu0 0
        %4520 = vmatprep.subr.bf16.mxu0 0
        %4521 = vmatpush1.bf16.msra.mxu0 0
        %4522 = vmatprep.subr.bf16.mxu0 0
        %4523 = vmatpush1.bf16.msra.mxu0 0
        %4524 = vmatprep.subr.bf16.mxu0 0
        %4525 = vmatpush1.bf16.msra.mxu0 0
        %4526 = vmatprep.subr.bf16.mxu0 0
        %4527 = vmatpush1.bf16.msra.mxu0 0
        %4528 = vmatprep.subr.bf16.mxu0 0
        %4529 = vmatpush1.bf16.msra.mxu0 0
        %4530 = vmatprep.subr.bf16.mxu0 0
        %4531 = vmatpush1.bf16.msra.mxu0 0
        %4532 = vmatprep.subr.bf16.mxu0 0
        %4533 = vmatpush1.bf16.msra.mxu0 0
        %4534 = vmatprep.subr.bf16.mxu0 0
        %4535 = vmatpush1.bf16.msra.mxu0 0
        %4536 = vmatprep.subr.bf16.mxu0 0
        %4537 = vmatpush1.bf16.msra.mxu0 0
        %4538 = vmatprep.subr.bf16.mxu0 0
        %4539 = vmatpush1.bf16.msra.mxu0 0
        %4540 = vmatprep.mubr.bf16.mxu0 0
        %4541 = vmatmul.mubr.bf16.gmra.mrb[0].mxu0 %v4506
        %v4542 = vpop.f32.mrb[0].mxu0
        %v4543 = vadd.f32 0.0, %v4542
        %v4544 = vpop.f32.mrb[0].mxu0
        %v4545 = vpop.f32.mrb[0].mxu0
        %v4546 = vpop.f32.mrb[0].mxu0
        %4547 = vdwg.mxu0
        %v4548 = vadd.f32 %v4465, %v4543
        %s4549 = scalar_lea.vmem [#allocation3], 20
        %v4550 = vld [vmem:[%s4549] ss:$32 sm:$0x1]
        %s4551 = scalar_lea.vmem [#allocation3], 21
        %v4552 = vld [vmem:[%s4551] ss:$32 sm:$0x1]
        %v4553 = vmax.f32 %v4550, %v4552
        %v4554 = vpack.c.bf16 %v4553, %v4553
        %s4555 = scalar_lea.vmem %s5, 320
        %v4556 = vld [vmem:[%s4555] sm:$0xf]
        %v4557 = vld [vmem:[%s4555 + $0x4] sm:$0xf]
        %v4558 = vld [vmem:[%s4555 + $0x8] sm:$0xf]
        %v4559 = vld [vmem:[%s4555 + $0xc] sm:$0xf]
        %v4560 = vld [vmem:[%s4555 + $0x10] sm:$0xf]
        %v4561 = vld [vmem:[%s4555 + $0x14] sm:$0xf]
        %v4562 = vld [vmem:[%s4555 + $0x18] sm:$0xf]
        %v4563 = vld [vmem:[%s4555 + $0x1c] sm:$0xf]
        %v4572 = vunpack.c.l.b16 %v4556
        %v4573 = vunpack.c.l.b16 %v4557
        %v4574 = vunpack.c.l.b16 %v4558
        %v4575 = vunpack.c.l.b16 %v4559
        %v4576 = vunpack.c.l.b16 %v4560
        %v4577 = vunpack.c.l.b16 %v4561
        %v4578 = vunpack.c.l.b16 %v4562
        %v4579 = vunpack.c.l.b16 %v4563
        %v4580 = vpack.c.b16 %v4573, %v4572
        %v4581 = vpack.c.b16 %v4575, %v4574
        %v4582 = vpack.c.b16 %v4577, %v4576
        %v4583 = vpack.c.b16 %v4579, %v4578
        %v4589 = vsel %vm3718, %v4554, 0
        %4591 = vmatprep.subr.bf16.mxu0 0
        %4592 = vmatpush1.bf16.msra.mxu0 %v4580
        %4593 = vmatprep.subr.bf16.mxu0 0
        %4594 = vmatpush1.bf16.msra.mxu0 %v4581
        %4595 = vmatprep.subr.bf16.mxu0 0
        %4596 = vmatpush1.bf16.msra.mxu0 %v4582
        %4597 = vmatprep.subr.bf16.mxu0 0
        %4598 = vmatpush1.bf16.msra.mxu0 %v4583
        %4599 = vmatprep.subr.bf16.mxu0 0
        %4600 = vmatpush1.bf16.msra.mxu0 0
        %4601 = vmatprep.subr.bf16.mxu0 0
        %4602 = vmatpush1.bf16.msra.mxu0 0
        %4603 = vmatprep.subr.bf16.mxu0 0
        %4604 = vmatpush1.bf16.msra.mxu0 0
        %4605 = vmatprep.subr.bf16.mxu0 0
        %4606 = vmatpush1.bf16.msra.mxu0 0
        %4607 = vmatprep.subr.bf16.mxu0 0
        %4608 = vmatpush1.bf16.msra.mxu0 0
        %4609 = vmatprep.subr.bf16.mxu0 0
        %4610 = vmatpush1.bf16.msra.mxu0 0
        %4611 = vmatprep.subr.bf16.mxu0 0
        %4612 = vmatpush1.bf16.msra.mxu0 0
        %4613 = vmatprep.subr.bf16.mxu0 0
        %4614 = vmatpush1.bf16.msra.mxu0 0
        %4615 = vmatprep.subr.bf16.mxu0 0
        %4616 = vmatpush1.bf16.msra.mxu0 0
        %4617 = vmatprep.subr.bf16.mxu0 0
        %4618 = vmatpush1.bf16.msra.mxu0 0
        %4619 = vmatprep.subr.bf16.mxu0 0
        %4620 = vmatpush1.bf16.msra.mxu0 0
        %4621 = vmatprep.subr.bf16.mxu0 0
        %4622 = vmatpush1.bf16.msra.mxu0 0
        %4623 = vmatprep.mubr.bf16.mxu0 0
        %4624 = vmatmul.mubr.bf16.gmra.mrb[0].mxu0 %v4589
        %v4625 = vpop.f32.mrb[0].mxu0
        %v4626 = vadd.f32 0.0, %v4625
        %v4627 = vpop.f32.mrb[0].mxu0
        %v4628 = vpop.f32.mrb[0].mxu0
        %v4629 = vpop.f32.mrb[0].mxu0
        %4630 = vdwg.mxu0
        %v4631 = vadd.f32 %v4548, %v4626
        %s4632 = scalar_lea.vmem [#allocation3], 22
        %v4633 = vld [vmem:[%s4632] ss:$32 sm:$0x1]
        %s4634 = scalar_lea.vmem [#allocation3], 23
        %v4635 = vld [vmem:[%s4634] ss:$32 sm:$0x1]
        %v4636 = vmax.f32 %v4633, %v4635
        %v4637 = vpack.c.bf16 %v4636, %v4636
        %s4638 = scalar_lea.vmem %s5, 352
        %v4639 = vld [vmem:[%s4638] sm:$0xf]
        %v4640 = vld [vmem:[%s4638 + $0x4] sm:$0xf]
        %v4641 = vld [vmem:[%s4638 + $0x8] sm:$0xf]
        %v4642 = vld [vmem:[%s4638 + $0xc] sm:$0xf]
        %v4643 = vld [vmem:[%s4638 + $0x10] sm:$0xf]
        %v4644 = vld [vmem:[%s4638 + $0x14] sm:$0xf]
        %v4645 = vld [vmem:[%s4638 + $0x18] sm:$0xf]
        %v4646 = vld [vmem:[%s4638 + $0x1c] sm:$0xf]
        %v4655 = vunpack.c.l.b16 %v4639
        %v4656 = vunpack.c.l.b16 %v4640
        %v4657 = vunpack.c.l.b16 %v4641
        %v4658 = vunpack.c.l.b16 %v4642
        %v4659 = vunpack.c.l.b16 %v4643
        %v4660 = vunpack.c.l.b16 %v4644
        %v4661 = vunpack.c.l.b16 %v4645
        %v4662 = vunpack.c.l.b16 %v4646
        %v4663 = vpack.c.b16 %v4656, %v4655
        %v4664 = vpack.c.b16 %v4658, %v4657
        %v4665 = vpack.c.b16 %v4660, %v4659
        %v4666 = vpack.c.b16 %v4662, %v4661
        %v4672 = vsel %vm3718, %v4637, 0
        %4674 = vmatprep.subr.bf16.mxu0 0
        %4675 = vmatpush1.bf16.msra.mxu0 %v4663
        %4676 = vmatprep.subr.bf16.mxu0 0
        %4677 = vmatpush1.bf16.msra.mxu0 %v4664
        %4678 = vmatprep.subr.bf16.mxu0 0
        %4679 = vmatpush1.bf16.msra.mxu0 %v4665
        %4680 = vmatprep.subr.bf16.mxu0 0
        %4681 = vmatpush1.bf16.msra.mxu0 %v4666
        %4682 = vmatprep.subr.bf16.mxu0 0
        %4683 = vmatpush1.bf16.msra.mxu0 0
        %4684 = vmatprep.subr.bf16.mxu0 0
        %4685 = vmatpush1.bf16.msra.mxu0 0
        %4686 = vmatprep.subr.bf16.mxu0 0
        %4687 = vmatpush1.bf16.msra.mxu0 0
        %4688 = vmatprep.subr.bf16.mxu0 0
        %4689 = vmatpush1.bf16.msra.mxu0 0
        %4690 = vmatprep.subr.bf16.mxu0 0
        %4691 = vmatpush1.bf16.msra.mxu0 0
        %4692 = vmatprep.subr.bf16.mxu0 0
        %4693 = vmatpush1.bf16.msra.mxu0 0
        %4694 = vmatprep.subr.bf16.mxu0 0
        %4695 = vmatpush1.bf16.msra.mxu0 0
        %4696 = vmatprep.subr.bf16.mxu0 0
        %4697 = vmatpush1.bf16.msra.mxu0 0
        %4698 = vmatprep.subr.bf16.mxu0 0
        %4699 = vmatpush1.bf16.msra.mxu0 0
        %4700 = vmatprep.subr.bf16.mxu0 0
        %4701 = vmatpush1.bf16.msra.mxu0 0
        %4702 = vmatprep.subr.bf16.mxu0 0
        %4703 = vmatpush1.bf16.msra.mxu0 0
        %4704 = vmatprep.subr.bf16.mxu0 0
        %4705 = vmatpush1.bf16.msra.mxu0 0
        %4706 = vmatprep.mubr.bf16.mxu0 0
        %4707 = vmatmul.mubr.bf16.gmra.mrb[0].mxu0 %v4672
        %v4708 = vpop.f32.mrb[0].mxu0
        %v4709 = vadd.f32 0.0, %v4708
        %v4710 = vpop.f32.mrb[0].mxu0
        %v4711 = vpop.f32.mrb[0].mxu0
        %v4712 = vpop.f32.mrb[0].mxu0
        %4713 = vdwg.mxu0
        %v4714 = vadd.f32 %v4631, %v4709
        %s4715 = scalar_lea.vmem [#allocation3], 24
        %v4716 = vld [vmem:[%s4715] ss:$32 sm:$0x1]
        %s4717 = scalar_lea.vmem [#allocation3], 25
        %v4718 = vld [vmem:[%s4717] ss:$32 sm:$0x1]
        %v4719 = vmax.f32 %v4716, %v4718
        %v4720 = vpack.c.bf16 %v4719, %v4719
        %s4721 = scalar_lea.vmem %s5, 384
        %v4722 = vld [vmem:[%s4721] sm:$0xf]
        %v4723 = vld [vmem:[%s4721 + $0x4] sm:$0xf]
        %v4724 = vld [vmem:[%s4721 + $0x8] sm:$0xf]
        %v4725 = vld [vmem:[%s4721 + $0xc] sm:$0xf]
        %v4726 = vld [vmem:[%s4721 + $0x10] sm:$0xf]
        %v4727 = vld [vmem:[%s4721 + $0x14] sm:$0xf]
        %v4728 = vld [vmem:[%s4721 + $0x18] sm:$0xf]
        %v4729 = vld [vmem:[%s4721 + $0x1c] sm:$0xf]
        %v4738 = vunpack.c.l.b16 %v4722
        %v4739 = vunpack.c.l.b16 %v4723
        %v4740 = vunpack.c.l.b16 %v4724
        %v4741 = vunpack.c.l.b16 %v4725
        %v4742 = vunpack.c.l.b16 %v4726
        %v4743 = vunpack.c.l.b16 %v4727
        %v4744 = vunpack.c.l.b16 %v4728
        %v4745 = vunpack.c.l.b16 %v4729
        %v4746 = vpack.c.b16 %v4739, %v4738
        %v4747 = vpack.c.b16 %v4741, %v4740
        %v4748 = vpack.c.b16 %v4743, %v4742
        %v4749 = vpack.c.b16 %v4745, %v4744
        %v4755 = vsel %vm3718, %v4720, 0
        %4757 = vmatprep.subr.bf16.mxu0 0
        %4758 = vmatpush1.bf16.msra.mxu0 %v4746
        %4759 = vmatprep.subr.bf16.mxu0 0
        %4760 = vmatpush1.bf16.msra.mxu0 %v4747
        %4761 = vmatprep.subr.bf16.mxu0 0
        %4762 = vmatpush1.bf16.msra.mxu0 %v4748
        %4763 = vmatprep.subr.bf16.mxu0 0
        %4764 = vmatpush1.bf16.msra.mxu0 %v4749
        %4765 = vmatprep.subr.bf16.mxu0 0
        %4766 = vmatpush1.bf16.msra.mxu0 0
        %4767 = vmatprep.subr.bf16.mxu0 0
        %4768 = vmatpush1.bf16.msra.mxu0 0
        %4769 = vmatprep.subr.bf16.mxu0 0
        %4770 = vmatpush1.bf16.msra.mxu0 0
        %4771 = vmatprep.subr.bf16.mxu0 0
        %4772 = vmatpush1.bf16.msra.mxu0 0
        %4773 = vmatprep.subr.bf16.mxu0 0
        %4774 = vmatpush1.bf16.msra.mxu0 0
        %4775 = vmatprep.subr.bf16.mxu0 0
        %4776 = vmatpush1.bf16.msra.mxu0 0
        %4777 = vmatprep.subr.bf16.mxu0 0
        %4778 = vmatpush1.bf16.msra.mxu0 0
        %4779 = vmatprep.subr.bf16.mxu0 0
        %4780 = vmatpush1.bf16.msra.mxu0 0
        %4781 = vmatprep.subr.bf16.mxu0 0
        %4782 = vmatpush1.bf16.msra.mxu0 0
        %4783 = vmatprep.subr.bf16.mxu0 0
        %4784 = vmatpush1.bf16.msra.mxu0 0
        %4785 = vmatprep.subr.bf16.mxu0 0
        %4786 = vmatpush1.bf16.msra.mxu0 0
        %4787 = vmatprep.subr.bf16.mxu0 0
        %4788 = vmatpush1.bf16.msra.mxu0 0
        %4789 = vmatprep.mubr.bf16.mxu0 0
        %4790 = vmatmul.mubr.bf16.gmra.mrb[0].mxu0 %v4755
        %v4791 = vpop.f32.mrb[0].mxu0
        %v4792 = vadd.f32 0.0, %v4791
        %v4793 = vpop.f32.mrb[0].mxu0
        %v4794 = vpop.f32.mrb[0].mxu0
        %v4795 = vpop.f32.mrb[0].mxu0
        %4796 = vdwg.mxu0
        %v4797 = vadd.f32 %v4714, %v4792
        %s4798 = scalar_lea.vmem [#allocation3], 26
        %v4799 = vld [vmem:[%s4798] ss:$32 sm:$0x1]
        %s4800 = scalar_lea.vmem [#allocation3], 27
        %v4801 = vld [vmem:[%s4800] ss:$32 sm:$0x1]
        %v4802 = vmax.f32 %v4799, %v4801
        %v4803 = vpack.c.bf16 %v4802, %v4802
        %s4804 = scalar_lea.vmem %s5, 416
        %v4805 = vld [vmem:[%s4804] sm:$0xf]
        %v4806 = vld [vmem:[%s4804 + $0x4] sm:$0xf]
        %v4807 = vld [vmem:[%s4804 + $0x8] sm:$0xf]
        %v4808 = vld [vmem:[%s4804 + $0xc] sm:$0xf]
        %v4809 = vld [vmem:[%s4804 + $0x10] sm:$0xf]
        %v4810 = vld [vmem:[%s4804 + $0x14] sm:$0xf]
        %v4811 = vld [vmem:[%s4804 + $0x18] sm:$0xf]
        %v4812 = vld [vmem:[%s4804 + $0x1c] sm:$0xf]
        %v4821 = vunpack.c.l.b16 %v4805
        %v4822 = vunpack.c.l.b16 %v4806
        %v4823 = vunpack.c.l.b16 %v4807
        %v4824 = vunpack.c.l.b16 %v4808
        %v4825 = vunpack.c.l.b16 %v4809
        %v4826 = vunpack.c.l.b16 %v4810
        %v4827 = vunpack.c.l.b16 %v4811
        %v4828 = vunpack.c.l.b16 %v4812
        %v4829 = vpack.c.b16 %v4822, %v4821
        %v4830 = vpack.c.b16 %v4824, %v4823
        %v4831 = vpack.c.b16 %v4826, %v4825
        %v4832 = vpack.c.b16 %v4828, %v4827
        %v4838 = vsel %vm3718, %v4803, 0
        %4840 = vmatprep.subr.bf16.mxu0 0
        %4841 = vmatpush1.bf16.msra.mxu0 %v4829
        %4842 = vmatprep.subr.bf16.mxu0 0
        %4843 = vmatpush1.bf16.msra.mxu0 %v4830
        %4844 = vmatprep.subr.bf16.mxu0 0
        %4845 = vmatpush1.bf16.msra.mxu0 %v4831
        %4846 = vmatprep.subr.bf16.mxu0 0
        %4847 = vmatpush1.bf16.msra.mxu0 %v4832
        %4848 = vmatprep.subr.bf16.mxu0 0
        %4849 = vmatpush1.bf16.msra.mxu0 0
        %4850 = vmatprep.subr.bf16.mxu0 0
        %4851 = vmatpush1.bf16.msra.mxu0 0
        %4852 = vmatprep.subr.bf16.mxu0 0
        %4853 = vmatpush1.bf16.msra.mxu0 0
        %4854 = vmatprep.subr.bf16.mxu0 0
        %4855 = vmatpush1.bf16.msra.mxu0 0
        %4856 = vmatprep.subr.bf16.mxu0 0
        %4857 = vmatpush1.bf16.msra.mxu0 0
        %4858 = vmatprep.subr.bf16.mxu0 0
        %4859 = vmatpush1.bf16.msra.mxu0 0
        %4860 = vmatprep.subr.bf16.mxu0 0
        %4861 = vmatpush1.bf16.msra.mxu0 0
        %4862 = vmatprep.subr.bf16.mxu0 0
        %4863 = vmatpush1.bf16.msra.mxu0 0
        %4864 = vmatprep.subr.bf16.mxu0 0
        %4865 = vmatpush1.bf16.msra.mxu0 0
        %4866 = vmatprep.subr.bf16.mxu0 0
        %4867 = vmatpush1.bf16.msra.mxu0 0
        %4868 = vmatprep.subr.bf16.mxu0 0
        %4869 = vmatpush1.bf16.msra.mxu0 0
        %4870 = vmatprep.subr.bf16.mxu0 0
        %4871 = vmatpush1.bf16.msra.mxu0 0
        %4872 = vmatprep.mubr.bf16.mxu0 0
        %4873 = vmatmul.mubr.bf16.gmra.mrb[0].mxu0 %v4838
        %v4874 = vpop.f32.mrb[0].mxu0
        %v4875 = vadd.f32 0.0, %v4874
        %v4876 = vpop.f32.mrb[0].mxu0
        %v4877 = vpop.f32.mrb[0].mxu0
        %v4878 = vpop.f32.mrb[0].mxu0
        %4879 = vdwg.mxu0
        %v4880 = vadd.f32 %v4797, %v4875
        %s4881 = scalar_lea.vmem [#allocation3], 28
        %v4882 = vld [vmem:[%s4881] ss:$32 sm:$0x1]
        %s4883 = scalar_lea.vmem [#allocation3], 29
        %v4884 = vld [vmem:[%s4883] ss:$32 sm:$0x1]
        %v4885 = vmax.f32 %v4882, %v4884
        %v4886 = vpack.c.bf16 %v4885, %v4885
        %s4887 = scalar_lea.vmem %s5, 448
        %v4888 = vld [vmem:[%s4887] sm:$0xf]
        %v4889 = vld [vmem:[%s4887 + $0x4] sm:$0xf]
        %v4890 = vld [vmem:[%s4887 + $0x8] sm:$0xf]
        %v4891 = vld [vmem:[%s4887 + $0xc] sm:$0xf]
        %v4892 = vld [vmem:[%s4887 + $0x10] sm:$0xf]
        %v4893 = vld [vmem:[%s4887 + $0x14] sm:$0xf]
        %v4894 = vld [vmem:[%s4887 + $0x18] sm:$0xf]
        %v4895 = vld [vmem:[%s4887 + $0x1c] sm:$0xf]
        %v4904 = vunpack.c.l.b16 %v4888
        %v4905 = vunpack.c.l.b16 %v4889
        %v4906 = vunpack.c.l.b16 %v4890
        %v4907 = vunpack.c.l.b16 %v4891
        %v4908 = vunpack.c.l.b16 %v4892
        %v4909 = vunpack.c.l.b16 %v4893
        %v4910 = vunpack.c.l.b16 %v4894
        %v4911 = vunpack.c.l.b16 %v4895
        %v4912 = vpack.c.b16 %v4905, %v4904
        %v4913 = vpack.c.b16 %v4907, %v4906
        %v4914 = vpack.c.b16 %v4909, %v4908
        %v4915 = vpack.c.b16 %v4911, %v4910
        %v4921 = vsel %vm3718, %v4886, 0
        %4923 = vmatprep.subr.bf16.mxu0 0
        %4924 = vmatpush1.bf16.msra.mxu0 %v4912
        %4925 = vmatprep.subr.bf16.mxu0 0
        %4926 = vmatpush1.bf16.msra.mxu0 %v4913
        %4927 = vmatprep.subr.bf16.mxu0 0
        %4928 = vmatpush1.bf16.msra.mxu0 %v4914
        %4929 = vmatprep.subr.bf16.mxu0 0
        %4930 = vmatpush1.bf16.msra.mxu0 %v4915
        %4931 = vmatprep.subr.bf16.mxu0 0
        %4932 = vmatpush1.bf16.msra.mxu0 0
        %4933 = vmatprep.subr.bf16.mxu0 0
        %4934 = vmatpush1.bf16.msra.mxu0 0
        %4935 = vmatprep.subr.bf16.mxu0 0
        %4936 = vmatpush1.bf16.msra.mxu0 0
        %4937 = vmatprep.subr.bf16.mxu0 0
        %4938 = vmatpush1.bf16.msra.mxu0 0
        %4939 = vmatprep.subr.bf16.mxu0 0
        %4940 = vmatpush1.bf16.msra.mxu0 0
        %4941 = vmatprep.subr.bf16.mxu0 0
        %4942 = vmatpush1.bf16.msra.mxu0 0
        %4943 = vmatprep.subr.bf16.mxu0 0
        %4944 = vmatpush1.bf16.msra.mxu0 0
        %4945 = vmatprep.subr.bf16.mxu0 0
        %4946 = vmatpush1.bf16.msra.mxu0 0
        %4947 = vmatprep.subr.bf16.mxu0 0
        %4948 = vmatpush1.bf16.msra.mxu0 0
        %4949 = vmatprep.subr.bf16.mxu0 0
        %4950 = vmatpush1.bf16.msra.mxu0 0
        %4951 = vmatprep.subr.bf16.mxu0 0
        %4952 = vmatpush1.bf16.msra.mxu0 0
        %4953 = vmatprep.subr.bf16.mxu0 0
        %4954 = vmatpush1.bf16.msra.mxu0 0
        %4955 = vmatprep.mubr.bf16.mxu0 0
        %4956 = vmatmul.mubr.bf16.gmra.mrb[0].mxu0 %v4921
        %v4957 = vpop.f32.mrb[0].mxu0
        %v4958 = vadd.f32 0.0, %v4957
        %v4959 = vpop.f32.mrb[0].mxu0
        %v4960 = vpop.f32.mrb[0].mxu0
        %v4961 = vpop.f32.mrb[0].mxu0
        %4962 = vdwg.mxu0
        %v4963 = vadd.f32 %v4880, %v4958
        %s4964 = scalar_lea.vmem [#allocation3], 30
        %v4965 = vld [vmem:[%s4964] ss:$32 sm:$0x1]
        %s4966 = scalar_lea.vmem [#allocation3], 31
        %v4967 = vld [vmem:[%s4966] ss:$32 sm:$0x1]
        %v4968 = vmax.f32 %v4965, %v4967
        %v4969 = vpack.c.bf16 %v4968, %v4968
        %s4970 = scalar_lea.vmem %s5, 480
        %v4971 = vld [vmem:[%s4970] sm:$0xf]
        %v4972 = vld [vmem:[%s4970 + $0x4] sm:$0xf]
        %v4973 = vld [vmem:[%s4970 + $0x8] sm:$0xf]
        %v4974 = vld [vmem:[%s4970 + $0xc] sm:$0xf]
        %v4975 = vld [vmem:[%s4970 + $0x10] sm:$0xf]
        %v4976 = vld [vmem:[%s4970 + $0x14] sm:$0xf]
        %v4977 = vld [vmem:[%s4970 + $0x18] sm:$0xf]
        %v4978 = vld [vmem:[%s4970 + $0x1c] sm:$0xf]
        %v4987 = vunpack.c.l.b16 %v4971
        %v4988 = vunpack.c.l.b16 %v4972
        %v4989 = vunpack.c.l.b16 %v4973
        %v4990 = vunpack.c.l.b16 %v4974
        %v4991 = vunpack.c.l.b16 %v4975
        %v4992 = vunpack.c.l.b16 %v4976
        %v4993 = vunpack.c.l.b16 %v4977
        %v4994 = vunpack.c.l.b16 %v4978
        %v4995 = vpack.c.b16 %v4988, %v4987
        %v4996 = vpack.c.b16 %v4990, %v4989
        %v4997 = vpack.c.b16 %v4992, %v4991
        %v4998 = vpack.c.b16 %v4994, %v4993
        %v5004 = vsel %vm3718, %v4969, 0
        %5006 = vmatprep.subr.bf16.mxu0 0
        %5007 = vmatpush1.bf16.msra.mxu0 %v4995
        %5008 = vmatprep.subr.bf16.mxu0 0
        %5009 = vmatpush1.bf16.msra.mxu0 %v4996
        %5010 = vmatprep.subr.bf16.mxu0 0
        %5011 = vmatpush1.bf16.msra.mxu0 %v4997
        %5012 = vmatprep.subr.bf16.mxu0 0
        %5013 = vmatpush1.bf16.msra.mxu0 %v4998
        %5014 = vmatprep.subr.bf16.mxu0 0
        %5015 = vmatpush1.bf16.msra.mxu0 0
        %5016 = vmatprep.subr.bf16.mxu0 0
        %5017 = vmatpush1.bf16.msra.mxu0 0
        %5018 = vmatprep.subr.bf16.mxu0 0
        %5019 = vmatpush1.bf16.msra.mxu0 0
        %5020 = vmatprep.subr.bf16.mxu0 0
        %5021 = vmatpush1.bf16.msra.mxu0 0
        %5022 = vmatprep.subr.bf16.mxu0 0
        %5023 = vmatpush1.bf16.msra.mxu0 0
        %5024 = vmatprep.subr.bf16.mxu0 0
        %5025 = vmatpush1.bf16.msra.mxu0 0
        %5026 = vmatprep.subr.bf16.mxu0 0
        %5027 = vmatpush1.bf16.msra.mxu0 0
        %5028 = vmatprep.subr.bf16.mxu0 0
        %5029 = vmatpush1.bf16.msra.mxu0 0
        %5030 = vmatprep.subr.bf16.mxu0 0
        %5031 = vmatpush1.bf16.msra.mxu0 0
        %5032 = vmatprep.subr.bf16.mxu0 0
        %5033 = vmatpush1.bf16.msra.mxu0 0
        %5034 = vmatprep.subr.bf16.mxu0 0
        %5035 = vmatpush1.bf16.msra.mxu0 0
        %5036 = vmatprep.subr.bf16.mxu0 0
        %5037 = vmatpush1.bf16.msra.mxu0 0
        %5038 = vmatprep.mubr.bf16.mxu0 0
        %5039 = vmatmul.mubr.bf16.gmra.mrb[0].mxu0 %v5004
        %v5040 = vpop.f32.mrb[0].mxu0
        %v5041 = vadd.f32 0.0, %v5040
        %v5042 = vpop.f32.mrb[0].mxu0
        %v5043 = vpop.f32.mrb[0].mxu0
        %v5044 = vpop.f32.mrb[0].mxu0
        %5045 = vdwg.mxu0
        %v5046 = vadd.f32 %v4963, %v5041
        %v5047 = vld [vmem:[%s6] sm:$0x1]
        %v5048 = vadd.f32 %v5046, %v5047
        %v5049 = vmax.f32 %v5048, 0.0
        %v5050 = vpack.c.bf16 %v5049, %v5049
        %v5051 = vld [vmem:[%s7] sm:$0xf]
        %v5052 = vld [vmem:[%s7 + $0x4] sm:$0xf]
        %v5053 = vld [vmem:[%s7 + $0x8] sm:$0xf]
        %v5054 = vld [vmem:[%s7 + $0xc] sm:$0xf]
        %v5055 = vld [vmem:[%s7 + $0x10] sm:$0xf]
        %v5056 = vld [vmem:[%s7 + $0x14] sm:$0xf]
        %v5057 = vld [vmem:[%s7 + $0x18] sm:$0xf]
        %v5058 = vld [vmem:[%s7 + $0x1c] sm:$0xf]
        %v5059 = vld [vmem:[%s8] sm:$0x1]
        %v5068 = vunpack.c.l.b16 %v5051
        %v5069 = vunpack.c.l.b16 %v5052
        %v5070 = vunpack.c.l.b16 %v5053
        %v5071 = vunpack.c.l.b16 %v5054
        %v5072 = vunpack.c.l.b16 %v5055
        %v5073 = vunpack.c.l.b16 %v5056
        %v5074 = vunpack.c.l.b16 %v5057
        %v5075 = vunpack.c.l.b16 %v5058
        %v5076 = vpack.c.b16 %v5069, %v5068
        %v5077 = vpack.c.b16 %v5071, %v5070
        %v5078 = vpack.c.b16 %v5073, %v5072
        %v5079 = vpack.c.b16 %v5075, %v5074
        %v5085 = vsel %vm3718, %v5050, 0
        %5087 = vmatprep.subr.bf16.mxu0 0
        %5088 = vmatpush1.bf16.msra.mxu0 %v5076
        %5089 = vmatprep.subr.bf16.mxu0 0
        %5090 = vmatpush1.bf16.msra.mxu0 %v5077
        %5091 = vmatprep.subr.bf16.mxu0 0
        %5092 = vmatpush1.bf16.msra.mxu0 %v5078
        %5093 = vmatprep.subr.bf16.mxu0 0
        %5094 = vmatpush1.bf16.msra.mxu0 %v5079
        %5095 = vmatprep.subr.bf16.mxu0 0
        %5096 = vmatpush1.bf16.msra.mxu0 0
        %5097 = vmatprep.subr.bf16.mxu0 0
        %5098 = vmatpush1.bf16.msra.mxu0 0
        %5099 = vmatprep.subr.bf16.mxu0 0
        %5100 = vmatpush1.bf16.msra.mxu0 0
        %5101 = vmatprep.subr.bf16.mxu0 0
        %5102 = vmatpush1.bf16.msra.mxu0 0
        %5103 = vmatprep.subr.bf16.mxu0 0
        %5104 = vmatpush1.bf16.msra.mxu0 0
        %5105 = vmatprep.subr.bf16.mxu0 0
        %5106 = vmatpush1.bf16.msra.mxu0 0
        %5107 = vmatprep.subr.bf16.mxu0 0
        %5108 = vmatpush1.bf16.msra.mxu0 0
        %5109 = vmatprep.subr.bf16.mxu0 0
        %5110 = vmatpush1.bf16.msra.mxu0 0
        %5111 = vmatprep.subr.bf16.mxu0 0
        %5112 = vmatpush1.bf16.msra.mxu0 0
        %5113 = vmatprep.subr.bf16.mxu0 0
        %5114 = vmatpush1.bf16.msra.mxu0 0
        %5115 = vmatprep.subr.bf16.mxu0 0
        %5116 = vmatpush1.bf16.msra.mxu0 0
        %5117 = vmatprep.subr.bf16.mxu0 0
        %5118 = vmatpush1.bf16.msra.mxu0 0
        %5119 = vmatprep.mubr.bf16.mxu0 0
        %5120 = vmatmul.mubr.bf16.gmra.mrb[0].mxu0 %v5085
        %v5121 = vpop.f32.mrb[0].mxu0
        %v5122 = vadd.f32 %v5059, %v5121
        %v5123 = vpop.f32.mrb[0].mxu0
        %v5124 = vpop.f32.mrb[0].mxu0
        %v5125 = vpop.f32.mrb[0].mxu0
        %5126 = vdwg.mxu0
        %v5127 = vmax.f32 %v5122, 0.0
        %v5128 = vpack.c.bf16 %v5127, %v5127
        %v5129 = vld [vmem:[%s9] sm:$0xf]
        %v5130 = vld [vmem:[%s9 + $0x4] sm:$0xf]
        %v5131 = vld [vmem:[%s9 + $0x8] sm:$0xf]
        %v5132 = vld [vmem:[%s9 + $0xc] sm:$0xf]
        %v5133 = vld [vmem:[%s10] sm:$0x1]
        %v5138 = vunpack.c.l.b16 %v5129
        %v5139 = vunpack.c.l.b16 %v5130
        %v5140 = vunpack.c.l.b16 %v5131
        %v5141 = vunpack.c.l.b16 %v5132
        %v5142 = vpack.c.b16 %v5139, %v5138
        %v5143 = vpack.c.b16 %v5141, %v5140
        %v5147 = vsel %vm2422, %v5128, 0
        %5149 = vmatprep.subr.bf16.mxu0 0
        %5150 = vmatpush1.bf16.msra.mxu0 %v5142
        %5151 = vmatprep.subr.bf16.mxu0 0
        %5152 = vmatpush1.bf16.msra.mxu0 %v5143
        %5153 = vmatprep.subr.bf16.mxu0 0
        %5154 = vmatpush1.bf16.msra.mxu0 0
        %5155 = vmatprep.subr.bf16.mxu0 0
        %5156 = vmatpush1.bf16.msra.mxu0 0
        %5157 = vmatprep.subr.bf16.mxu0 0
        %5158 = vmatpush1.bf16.msra.mxu0 0
        %5159 = vmatprep.subr.bf16.mxu0 0
        %5160 = vmatpush1.bf16.msra.mxu0 0
        %5161 = vmatprep.subr.bf16.mxu0 0
        %5162 = vmatpush1.bf16.msra.mxu0 0
        %5163 = vmatprep.subr.bf16.mxu0 0
        %5164 = vmatpush1.bf16.msra.mxu0 0
        %5165 = vmatprep.subr.bf16.mxu0 0
        %5166 = vmatpush1.bf16.msra.mxu0 0
        %5167 = vmatprep.subr.bf16.mxu0 0
        %5168 = vmatpush1.bf16.msra.mxu0 0
        %5169 = vmatprep.subr.bf16.mxu0 0
        %5170 = vmatpush1.bf16.msra.mxu0 0
        %5171 = vmatprep.subr.bf16.mxu0 0
        %5172 = vmatpush1.bf16.msra.mxu0 0
        %5173 = vmatprep.subr.bf16.mxu0 0
        %5174 = vmatpush1.bf16.msra.mxu0 0
        %5175 = vmatprep.subr.bf16.mxu0 0
        %5176 = vmatpush1.bf16.msra.mxu0 0
        %5177 = vmatprep.subr.bf16.mxu0 0
        %5178 = vmatpush1.bf16.msra.mxu0 0
        %5179 = vmatprep.subr.bf16.mxu0 0
        %5180 = vmatpush1.bf16.msra.mxu0 0
        %5181 = vmatprep.mubr.bf16.mxu0 0
        %5182 = vmatmul.mubr.bf16.gmra.mrb[0].mxu0 %v5147
        %v5183 = vpop.f32.mrb[0].mxu0
        %v5184 = vadd.f32 %v5133, %v5183
        %v5185 = vpop.f32.mrb[0].mxu0
        %v5186 = vpop.f32.mrb[0].mxu0
        %v5187 = vpop.f32.mrb[0].mxu0
        %5188 = vdwg.mxu0
        %vm5189 = vcmask 8192
        %5190 = vst.msk [vmem:[%s378] sm:$0x1] %vm5189, %v5184
        %s5191 = sand.u32 %s269, 1
        %s5192 = scalar_lea.sflag [#allocation5], %s5191
        %s5193 = sand.u32 %s269, 1
        %s5194 = scalar_lea.vmem [#allocation4], %s5193
        // Predicated region
        $region65: #{custom_cnn_forward.1} parent=63 // pred_check
          %p5195 = pneg %p279
        $region66: #{custom_cnn_forward.1} parent=63 // pred_check_branch
          %5197 = sbr.rel (%p5195) target = $region68
        $region67: #{custom_cnn_forward.1} parent=63 // pred_region
          %s5199 = ssub.s32 16, 16
          %5200 = vsyncadd %s5192, %s5199
          %s5201 = smul.addr %s25, 16
          %s5202 = scalar_lea.hbm %s11, %s5201
          %s5204 = sshll.u32 %s5194, 4
          %s5205 = int_to_ptr.vmem [resolvable:$true] %s5204
          %5207 = dma.vmem_to_hbm [thread:$0]  %s5205, 16, %s5202, %s5192
        $region68: #{custom_cnn_forward.1} parent=63 // pred_fallthru
          _
      $region64: #{custom_cnn_forward.1} parent=5 // pred_fallthru
        _
      %p5208 = scmp.le.s32.totalorder 2, %s20
      // Predicated region
      $region69: #{custom_cnn_forward.1} parent=5 // pred_check
        %p5209 = pneg %p5208
      $region70: #{custom_cnn_forward.1} parent=5 // pred_check_branch
        %5211 = sbr.rel (%p5209) target = $region72
      $region71: #{custom_cnn_forward.1} parent=5 // pred_region
        %s5212 = ssub.s32 %s20, 2
        // Predicated region
        $region73: #{custom_cnn_forward.1} parent=71 // pred_check
          %p5213 = pneg %p285
        $region74: #{custom_cnn_forward.1} parent=71 // pred_check_branch
          %5215 = sbr.rel (%p5213) target = $region76
        $region75: #{custom_cnn_forward.1} parent=71 // pred_region
          %s5216 = sand.u32 %s270, 1
          %s5217 = scalar_lea.sflag [#allocation5], %s5216
          %s5218 = sand.u32 %s270, 1
          %s5219 = scalar_lea.vmem [#allocation4], %s5218
          %5220 = dma.done %s5217, 16
        $region76: #{custom_cnn_forward.1} parent=71 // pred_fallthru
          _
      $region72: #{custom_cnn_forward.1} parent=5 // pred_fallthru
        _
    $region6: #{custom_cnn_forward.1} parent=1 // loop_footer
      %s24 = sadd.s32 1, %s20
    $region7: #{custom_cnn_forward.1} parent=1 // loop_footer_branch
      %19 = sbr.rel target = $region3
    $region8: #{custom_cnn_forward.1} parent=1 // loop_exit
      _
    %5221 = vsyncpa [#allocation5], 1
    %s5222 = scalar_lea.sflag [#allocation5], 1
    %5223 = vsyncpa %s5222, 1

</llo_original>
